<compile_context>
chip_gen: v6e
topology: v6e:2x2x1
jax: 0.10.0
libtpu: 0.0.40
codegen_flags: <defaults>
</compile_context>

<pallas_src>
import functools

import jax
import jax.numpy as jnp
from jax.experimental import pallas as pl
from jax.experimental.pallas import tpu as pltpu


def _round_up(x, m):
    return (x + m - 1) // m * m


def _layer_norm(x, g, b, eps):
    mu = jnp.mean(x, axis=-1, keepdims=True)
    var = jnp.mean(jnp.square(x - mu), axis=-1, keepdims=True)
    return (x - mu) * jax.lax.rsqrt(var + eps) * g + b


def _softmax_last(s):
    m = jnp.max(s, axis=-1, keepdims=True)
    e = jnp.exp(s - m)
    return e / jnp.sum(e, axis=-1, keepdims=True)   # exact divide (bit parity)


def _split_heads(x2, bt, seq, n_head, d, col0=0):
    """(bt*seq, >=col0+n_head*d) -> (n_head*bt, seq, d), head-major batch.

    H lane slices (unavoidable head de-interleave) + one cheap axis-0 concat;
    feeds a single batched einsum instead of H per-head matmuls."""
    x3 = x2.reshape(bt, seq, x2.shape[-1])
    return jnp.concatenate(
        [x3[:, :, col0 + h * d: col0 + (h + 1) * d] for h in range(n_head)], axis=0)


def _merge_heads(ctx, bt, seq, n_head, d):
    """(n_head*bt, seq, d) -> (bt*seq, n_head*d) (one lane concat)."""
    parts = [ctx[h * bt:(h + 1) * bt] for h in range(n_head)]
    return jnp.concatenate(parts, axis=-1).reshape(bt * seq, n_head * d)


def _decoder_emo_kernel(
    # inputs
    dec_ref, enc_ref, mask_ref,
    s_wqkv_ref, s_wo_ref, c_wq_ref, c_wkv_ref, c_wo_ref,
    f_w1_ref, f_w2_ref, f_b1_ref, vec_ref,
    # outputs: out_ref, then (slf, enc_attn, energy) or (energy,)
    out_ref, *attn_refs,
    n_head, d_k, d_v, lq_real, ln_eps, emit_attns,
):
    if emit_attns:
        slf_ref, enc_attn_ref, energy_ref = attn_refs
    else:
        (energy_ref,) = attn_refs

    layer = pl.program_id(1)
    last_layer = pl.num_programs(1) - 1
    H, dk, dv = n_head, d_k, d_v
    Bt, Lq, D = out_ref.shape
    Lk = enc_ref.shape[1]
    bf16 = jnp.bfloat16

    # Layer 0: load decoder input into the output block, which doubles as the
    # activation carried (VMEM-resident) across the "arbitrary" layer axis.
    @pl.when(layer == 0)
    def _():
        out_ref[...] = dec_ref[...]

    x2 = out_ref[...].reshape(Bt * Lq, D)          # (Bt*Lq, D) f32 carried activation

    vecs = vec_ref[0]                              # (8, D) f32
    s_g, s_b = vecs[0:1], vecs[1:2]
    c_g, c_b = vecs[2:3], vecs[3:4]
    f_g, f_b = vecs[4:5], vecs[5:6]
    f_b2 = vecs[6:7]

    # ---------------- self attention (no mask, as in DecoderLayer) ----------------
    qkv = jnp.dot(x2.astype(bf16), s_wqkv_ref[0],
                  preferred_element_type=jnp.float32)           # (Bt*Lq, H*(2dk+dv))
    q = _split_heads(qkv, Bt, Lq, H, dk, 0).astype(bf16)        # (H*Bt, Lq, dk)
    k = _split_heads(qkv, Bt, Lq, H, dk, H * dk).astype(bf16)
    v = _split_heads(qkv, Bt, Lq, H, dv, 2 * H * dk).astype(bf16)

    s = jnp.einsum('bqd,bkd->bqk', q, k,
                   preferred_element_type=jnp.float32)          # (H*Bt, Lq, Lq)
    if Lq != lq_real:
        # Mask only wrapper-padded key rows; real region stays unmasked.
        kidx = jax.lax.broadcasted_iota(jnp.int32, s.shape, 2)
        s = jnp.where(kidx < lq_real, s, -1e9)
    attn = _softmax_last(s)
    if emit_attns:
        slf_ref[...] = attn.reshape(H, Bt, Lq, Lq).astype(bf16)   # one block store
    ctx = jnp.einsum('bqk,bkd->bqd', attn.astype(bf16), v,
                     preferred_element_type=jnp.float32)        # (H*Bt, Lq, dv)
    o = jnp.dot(_merge_heads(ctx, Bt, Lq, H, dv).astype(bf16), s_wo_ref[0],
                preferred_element_type=jnp.float32)
    x2 = _layer_norm(o + x2, s_g, s_b, ln_eps)

    # ---------------- encoder-decoder attention ----------------
    enc2 = enc_ref[...].reshape(Bt * Lk, D)                      # bf16 already
    kv = jnp.dot(enc2, c_wkv_ref[0],
                 preferred_element_type=jnp.float32)             # (Bt*Lk, H*(dk+dv))
    qc = jnp.dot(x2.astype(bf16), c_wq_ref[0],
                 preferred_element_type=jnp.float32)             # scale folded into weight
    q = _split_heads(qc, Bt, Lq, H, dk, 0).astype(bf16)          # (H*Bt, Lq, dk)
    k = _split_heads(kv, Bt, Lk, H, dk, 0).astype(bf16)          # (H*Bt, Lk, dk)
    v = _split_heads(kv, Bt, Lk, H, dv, H * dk).astype(bf16)     # (H*Bt, Lk, dv)

    s = jnp.einsum('bqd,bkd->bqk', q, k,
                   preferred_element_type=jnp.float32)           # (H*Bt, Lq, Lk)
    s4 = s.reshape(H, Bt, Lq, Lk)
    mask_keep = (mask_ref[...] != 0)[None]                       # (1, Bt, Lq, Lk)
    s4 = jnp.where(mask_keep, s4, -1e9)          # masked_fill(mask==0, -1e9), all heads at once

    # Only the last layer's energies are returned by the module.
    @pl.when(layer == last_layer)
    def _():
        energy_ref[...] = s4                                     # one block store

    attn4 = _softmax_last(s4)
    if emit_attns:
        enc_attn_ref[...] = attn4.astype(bf16)                   # one block store
    ctx = jnp.einsum('bqk,bkd->bqd', attn4.reshape(H * Bt, Lq, Lk).astype(bf16), v,
                     preferred_element_type=jnp.float32)
    o = jnp.dot(_merge_heads(ctx, Bt, Lq, H, dv).astype(bf16), c_wo_ref[0],
                preferred_element_type=jnp.float32)
    x2 = _layer_norm(o + x2, c_g, c_b, ln_eps)

    # ---------------- position-wise feed forward ----------------
    h1 = jnp.maximum(
        jnp.dot(x2.astype(bf16), f_w1_ref[0],
                preferred_element_type=jnp.float32) + f_b1_ref[0], 0.0)
    y = jnp.dot(h1.astype(bf16), f_w2_ref[0],
                preferred_element_type=jnp.float32) + f_b2
    x2 = _layer_norm(y + x2, f_g, f_b, ln_eps)

    out_ref[...] = x2.reshape(Bt, Lq, D)


def _decoder_emo_pallas(dec, enc, cross_mask, params, *, n_head, d_k, d_v,
                        bt, lq_real, ln_eps, emit_attns, vmem_limit):
    B, Lq, D = dec.shape
    Lk = enc.shape[1]
    H = n_head
    n_layers = params[0].shape[0]
    nbt = B // bt

    kernel = functools.partial(_decoder_emo_kernel, n_head=H, d_k=d_k, d_v=d_v,
                               lq_real=lq_real, ln_eps=ln_eps, emit_attns=emit_attns)

    def wspec(p):
        # one layer slice per grid step (layer axis iterates fastest -> weights for
        # layer l+1 are prefetched while layer l computes)
        return pl.BlockSpec((1,) + p.shape[1:],
                            lambda b, l, nd=p.ndim: (l,) + (0,) * (nd - 1))

    in_specs = [
        pl.BlockSpec((bt, Lq, D), lambda b, l: (b, 0, 0)),    # dec (read at layer 0)
        pl.BlockSpec((bt, Lk, D), lambda b, l: (b, 0, 0)),    # enc (bf16, resident per tile)
        pl.BlockSpec((bt, Lq, Lk), lambda b, l: (b, 0, 0)),   # cross-attn mask (bf16)
    ] + [wspec(p) for p in params]

    out_shape = [jax.ShapeDtypeStruct((B, Lq, D), jnp.float32)]
    out_specs = [pl.BlockSpec((bt, Lq, D), lambda b, l: (b, 0, 0))]   # carried across l
    if emit_attns:
        out_shape += [
            jax.ShapeDtypeStruct((n_layers * H, B, Lq, Lq), jnp.bfloat16),  # slf probs
            jax.ShapeDtypeStruct((n_layers * H, B, Lq, Lk), jnp.bfloat16),  # enc-dec probs
        ]
        out_specs += [
            pl.BlockSpec((H, bt, Lq, Lq), lambda b, l: (l, b, 0, 0)),
            pl.BlockSpec((H, bt, Lq, Lk), lambda b, l: (l, b, 0, 0)),
        ]
    out_shape += [jax.ShapeDtypeStruct((H, B, Lq, Lk), jnp.float32)]   # energies (last layer)
    out_specs += [pl.BlockSpec((H, bt, Lq, Lk), lambda b, l: (0, b, 0, 0))]  # written once

    return pl.pallas_call(
        kernel,
        out_shape=tuple(out_shape),
        grid_spec=pltpu.PrefetchScalarGridSpec(
            num_scalar_prefetch=0,
            grid=(nbt, n_layers),          # layer axis innermost
            in_specs=in_specs,
            out_specs=tuple(out_specs),
        ),
        compiler_params=pltpu.CompilerParams(
            dimension_semantics=("parallel", "arbitrary"),
            vmem_limit_bytes=vmem_limit,
        ),
    )(dec, enc, cross_mask, *params)


def _pick_bt(batch, lq_pad, tile_bytes_fn, budget, *, max_rows=1024, min_batch_tiles=1):
    """Largest divisor of `batch` whose tile fits the VMEM budget / row target.

    Set min_batch_tiles=2 on v7x (2 TensorCores/chip) so the 'parallel' batch
    axis can be sharded across both cores; keep it at 1 on single-TC chips so
    per-layer weights are streamed from HBM only once."""
    for bt in range(batch, 0, -1):
        if batch % bt:
            continue
        if batch // bt < min_batch_tiles and bt > 1:
            continue
        if bt * lq_pad > max_rows:
            continue
        if tile_bytes_fn(bt) > budget:
            continue
        return bt
    return 1


def init_decoder_emo_params(key, n_layers, n_head, d_k, d_v, d_model, d_inner):
    """Deterministic synthetic parameters matching the PyTorch module shapes."""
    layers = []
    for l in range(n_layers):
        k = jax.random.fold_in(key, l)
        ks = jax.random.split(k, 12)
        s = 0.02

        def w(kk, shape):
            return (s * jax.random.normal(kk, shape)).astype(jnp.float32)

        layers.append(dict(
            s_wq=w(ks[0], (d_model, n_head * d_k)),
            s_wk=w(ks[1], (d_model, n_head * d_k)),
            s_wv=w(ks[2], (d_model, n_head * d_v)),
            s_wo=w(ks[3], (n_head * d_v, d_model)),
            s_g=jnp.ones((d_model,), jnp.float32),
            s_b=jnp.zeros((d_model,), jnp.float32),
            c_wq=w(ks[4], (d_model, n_head * d_k)),
            c_wk=w(ks[5], (d_model, n_head * d_k)),
            c_wv=w(ks[6], (d_model, n_head * d_v)),
            c_wo=w(ks[7], (n_head * d_v, d_model)),
            c_g=jnp.ones((d_model,), jnp.float32),
            c_b=jnp.zeros((d_model,), jnp.float32),
            f_w1=w(ks[8], (d_model, d_inner)),
            f_b1=w(ks[9], (d_inner,)),
            f_w2=w(ks[10], (d_inner, d_model)),
            f_b2=w(ks[11], (d_model,)),
            f_g=jnp.ones((d_model,), jnp.float32),
            f_b=jnp.zeros((d_model,), jnp.float32),
        ))
    return layers


def pack_decoder_emo_params(layers, d_k):
    """Stack per-layer params (leading layer axis), fuse QKV/KV weights, fold the
    1/sqrt(d_k) attention scale into the Q weight columns, pack the small
    d_model-sized vectors into one (L, 8, D) array, cast matmul weights to bf16."""
    bf = jnp.bfloat16
    scale = 1.0 / (d_k ** 0.5)        # exact power of two for typical d_k

    def stk(fn, dtype):
        return jnp.stack([fn(p) for p in layers]).astype(dtype)

    s_wqkv = stk(lambda p: jnp.concatenate(
        [p['s_wq'] * scale, p['s_wk'], p['s_wv']], 1), bf)
    s_wo = stk(lambda p: p['s_wo'], bf)
    c_wq = stk(lambda p: p['c_wq'] * scale, bf)
    c_wkv = stk(lambda p: jnp.concatenate([p['c_wk'], p['c_wv']], 1), bf)
    c_wo = stk(lambda p: p['c_wo'], bf)
    f_w1 = stk(lambda p: p['f_w1'], bf)
    f_w2 = stk(lambda p: p['f_w2'], bf)
    f_b1 = stk(lambda p: p['f_b1'][None, :], jnp.float32)            # (L, 1, d_inner)
    vec = stk(lambda p: jnp.stack([p['s_g'], p['s_b'], p['c_g'], p['c_b'],
                                   p['f_g'], p['f_b'], p['f_b2'],
                                   jnp.zeros_like(p['f_b2'])]), jnp.float32)  # (L, 8, D)
    return (s_wqkv, s_wo, c_wq, c_wkv, c_wo, f_w1, f_w2, f_b1, vec)


def decoder_emo_forward(trg_seq_emb, enc_output, packed_params, mask=None, *,
                        n_head, d_k, d_v, return_attns=True, ln_eps=1e-6,
                        min_batch_tiles=1):
    """JAX/Pallas equivalent of Decoder_emo.forward (eval mode, dropout=identity)."""
    B, Lq, D = trg_seq_emb.shape
    Lk = enc_output.shape[1]
    H = n_head
    n_layers = packed_params[0].shape[0]
    d_inner = packed_params[5].shape[-1]

    # Pad sequence lengths so in-kernel reshapes are layout no-ops
    # (f32 activations: multiple of 8; bf16 encoder memory: multiple of 16).
    lq_p, lk_p = _round_up(Lq, 8), _round_up(Lk, 16)
    dec = jnp.pad(trg_seq_emb.astype(jnp.float32),
                  ((0, 0), (0, lq_p - Lq), (0, 0)))
    enc = jnp.pad(enc_output.astype(jnp.float32),
                  ((0, 0), (0, lk_p - Lk), (0, 0))).astype(jnp.bfloat16)
    if mask is None:
        mask = jnp.ones((B, Lq, Lk), jnp.float32)   # mask=None <=> no masking
    cross_mask = jnp.pad(mask.astype(jnp.float32),
                         ((0, 0), (0, lq_p - Lq), (0, lk_p - Lk))
                         ).astype(jnp.bfloat16)     # padded keys are masked (0)

    # Generation-aware VMEM sizing (v7x: 64 MiB, v5e/v6e: 128 MiB).
    try:
        vmem_cap = int(pltpu.get_tpu_info().vmem_capacity_bytes)
    except Exception:
        vmem_cap = 64 * 1024 * 1024
    vmem_limit = max(32 * 1024 * 1024, min(int(vmem_cap * 0.85), 112 * 1024 * 1024))
    budget = int(vmem_cap * 0.55)

    def tile_bytes(bt):
        f32b, bfb = 4, 2
        per = 2 * (bt * lq_p * D * f32b            # dec in  (double-buffered)
                   + bt * lk_p * D * bfb           # enc in
                   + bt * lq_p * lk_p * bfb        # mask
                   + bt * lq_p * D * f32b          # out (carried)
                   + H * bt * lq_p * lk_p * f32b)  # energies
        if return_attns:
            per += 2 * (H * bt * lq_p * lq_p * bfb + H * bt * lq_p * lk_p * bfb)
        w = (D * H * (2 * d_k + d_v) + H * d_v * D + D * H * d_k
             + D * H * (d_k + d_v) + H * d_v * D
             + D * d_inner + d_inner * D) * bfb + d_inner * f32b + 8 * D * f32b
        per += 2 * w                               # per-layer weights, double-buffered
        tmp = (4 * H * bt * lq_p * max(lq_p, lk_p) * f32b        # scores/probs temporaries
               + 2 * bt * lq_p * d_inner * f32b
               + 8 * bt * lq_p * D * f32b
               + 2 * bt * lk_p * H * (d_k + d_v) * f32b)
        return per + tmp

    bt = _pick_bt(B, lq_p, tile_bytes, budget, max_rows=1024,
                  min_batch_tiles=min_batch_tiles)

    outs = _decoder_emo_pallas(
        dec, enc, cross_mask, packed_params,
        n_head=H, d_k=d_k, d_v=d_v, bt=bt, lq_real=Lq, ln_eps=ln_eps,
        emit_attns=return_attns, vmem_limit=vmem_limit)

    if return_attns:
        dec_out, slf, enc_attn, energies = outs
    else:
        dec_out, energies = outs

    dec_out = dec_out[:, :Lq, :]
    energies = jnp.transpose(energies, (1, 0, 2, 3))[:, :, :Lq, :Lk]
    if not return_attns:
        return dec_out, energies

    slf = slf.reshape(n_layers, H, B, lq_p, lq_p).transpose(0, 2, 1, 3, 4)
    slf = slf[:, :, :, :Lq, :Lq].astype(jnp.float32)
    enc_attn = enc_attn.reshape(n_layers, H, B, lq_p, lk_p).transpose(0, 2, 1, 3, 4)
    enc_attn = enc_attn[:, :, :, :Lq, :Lk].astype(jnp.float32)
    slf_list = [slf[l] for l in range(n_layers)]
    enc_list = [enc_attn[l] for l in range(n_layers)]
    return dec_out, slf_list, enc_list, energies


if __name__ == "__main__":
    # small shapes consistent with the module
    n_layers, n_head, d_k, d_v = 2, 2, 16, 16
    d_model, d_inner = 32, 64
    B, Lq, Lk = 2, 8, 12

    key = jax.random.PRNGKey(0)
    k_trg, k_enc, k_par = jax.random.split(key, 3)
    trg_seq_emb = jax.random.normal(k_trg, (B, Lq, d_model), jnp.float32)
    enc_output = jax.random.normal(k_enc, (B, Lk, d_model), jnp.float32)

    raw_params = init_decoder_emo_params(
        k_par, n_layers, n_head, d_k, d_v, d_model, d_inner)
    params = pack_decoder_emo_params(raw_params, d_k)

    # return_attns=True path (full outputs)
    dec_out, slf_attns, enc_attns, energies = decoder_emo_forward(
        trg_seq_emb, enc_output, params, mask=None,
        n_head=n_head, d_k=d_k, d_v=d_v, return_attns=True)
    jax.block_until_ready(dec_out)
    jax.block_until_ready(energies)
    for a in slf_attns + enc_attns:
        jax.block_until_ready(a)

    assert dec_out.shape == (B, Lq, d_model)
    assert len(slf_attns) == n_layers and len(enc_attns) == n_layers
    assert slf_attns[0].shape == (B, n_head, Lq, Lq)
    assert enc_attns[0].shape == (B, n_head, Lq, Lk)
    assert energies.shape == (B, n_head, Lq, Lk)
    assert bool(jnp.all(jnp.isfinite(dec_out)))
    # attention rows should sum to ~1 (bf16 storage tolerance)
    assert bool(jnp.allclose(jnp.sum(enc_attns[0], axis=-1), 1.0, atol=5e-2))
    assert bool(jnp.allclose(jnp.sum(slf_attns[0], axis=-1), 1.0, atol=5e-2))

    # return_attns=False variant (no attention-probability HBM writeback)
    dec_out2, energies2 = decoder_emo_forward(
        trg_seq_emb, enc_output, params, mask=None,
        n_head=n_head, d_k=d_k, d_v=d_v, return_attns=False)
    jax.block_until_ready(dec_out2)
    assert dec_out2.shape == (B, Lq, d_model)
    assert energies2.shape == (B, n_head, Lq, Lk)
    assert bool(jnp.allclose(dec_out, dec_out2, atol=1e-5, rtol=1e-5))

    print("KERNEL_OK")
</pallas_src>

<mosaic_0001>
module attributes {stable_mosaic.version = 11 : i64} {
  func.func @_decoder_emo_kernel(%arg0: i32, %arg1: i32, %arg2: memref<2x8x32xf32, #tpu.memory_space<vmem>>, %arg3: memref<2x16x32xbf16, #tpu.memory_space<vmem>>, %arg4: memref<2x8x16xbf16, #tpu.memory_space<vmem>>, %arg5: memref<1x32x96xbf16, #tpu.memory_space<vmem>>, %arg6: memref<1x32x32xbf16, #tpu.memory_space<vmem>>, %arg7: memref<1x32x32xbf16, #tpu.memory_space<vmem>>, %arg8: memref<1x32x64xbf16, #tpu.memory_space<vmem>>, %arg9: memref<1x32x32xbf16, #tpu.memory_space<vmem>>, %arg10: memref<1x32x64xbf16, #tpu.memory_space<vmem>>, %arg11: memref<1x64x32xbf16, #tpu.memory_space<vmem>>, %arg12: memref<1x1x64xf32, #tpu.memory_space<vmem>>, %arg13: memref<1x8x32xf32, #tpu.memory_space<vmem>>, %arg14: memref<2x8x32xf32, #tpu.memory_space<vmem>>, %arg15: memref<2x2x8x8xbf16, #tpu.memory_space<vmem>>, %arg16: memref<2x2x8x16xbf16, #tpu.memory_space<vmem>>, %arg17: memref<2x2x8x16xf32, #tpu.memory_space<vmem>>) attributes {dimension_semantics = [#tpu.dimension_semantics<parallel>, #tpu.dimension_semantics<arbitrary>], iteration_bounds = array<i64: 1, 2>, scalar_prefetch = 0 : i64, scratch_operands = 0 : i64, tpu.core_type = #tpu.core_type<tc>, window_params = [{transform_indices = @transform_0, window_bounds = array<i64: 2, 8, 32>}, {transform_indices = @transform_1, window_bounds = array<i64: 2, 16, 32>}, {transform_indices = @transform_2, window_bounds = array<i64: 2, 8, 16>}, {transform_indices = @transform_3, window_bounds = array<i64: 1, 32, 96>}, {transform_indices = @transform_4, window_bounds = array<i64: 1, 32, 32>}, {transform_indices = @transform_5, window_bounds = array<i64: 1, 32, 32>}, {transform_indices = @transform_6, window_bounds = array<i64: 1, 32, 64>}, {transform_indices = @transform_7, window_bounds = array<i64: 1, 32, 32>}, {transform_indices = @transform_8, window_bounds = array<i64: 1, 32, 64>}, {transform_indices = @transform_9, window_bounds = array<i64: 1, 64, 32>}, {transform_indices = @transform_10, window_bounds = array<i64: 1, 1, 64>}, {transform_indices = @transform_11, window_bounds = array<i64: 1, 8, 32>}, {transform_indices = @transform_12, window_bounds = array<i64: 2, 8, 32>}, {transform_indices = @transform_13, window_bounds = array<i64: 2, 2, 8, 8>}, {transform_indices = @transform_14, window_bounds = array<i64: 2, 2, 8, 16>}, {transform_indices = @transform_15, window_bounds = array<i64: 2, 2, 8, 16>}]} {
    %c0_i32 = arith.constant 0 : i32
    %0 = arith.cmpi eq, %arg1, %c0_i32 : i32
    %1 = arith.extui %0 : i1 to i32
    %c0_i32_0 = arith.constant 0 : i32
    %2 = arith.cmpi ne, %1, %c0_i32_0 : i32
    scf.if %2 {
      %c0_80 = arith.constant 0 : index
      %c0_81 = arith.constant 0 : index
      %c0_82 = arith.constant 0 : index
      %202 = vector.load %arg2[%c0_80, %c0_81, %c0_82] : memref<2x8x32xf32, #tpu.memory_space<vmem>>, vector<2x8x32xf32>
      %c0_83 = arith.constant 0 : index
      %c0_84 = arith.constant 0 : index
      %c0_85 = arith.constant 0 : index
      %203 = vector.load %arg14[%c0_83, %c0_84, %c0_85] : memref<2x8x32xf32, #tpu.memory_space<vmem>>, vector<2x8x32xf32>
      tpu.vector_store %arg14[%c0_83, %c0_84, %c0_85], %202 {strides = array<i32>} : memref<2x8x32xf32, #tpu.memory_space<vmem>>, vector<2x8x32xf32>,
    } else {
    }
    %c0 = arith.constant 0 : index
    %c0_1 = arith.constant 0 : index
    %c0_2 = arith.constant 0 : index
    %3 = vector.load %arg14[%c0, %c0_1, %c0_2] : memref<2x8x32xf32, #tpu.memory_space<vmem>>, vector<2x8x32xf32>
    %4 = vector.shape_cast %3 : vector<2x8x32xf32> to vector<16x32xf32>
    %c0_3 = arith.constant 0 : index
    %c0_4 = arith.constant 0 : index
    %c0_5 = arith.constant 0 : index
    %5 = vector.load %arg13[%c0_3, %c0_4, %c0_5] : memref<1x8x32xf32, #tpu.memory_space<vmem>>, vector<1x8x32xf32>
    %6 = vector.shape_cast %5 : vector<1x8x32xf32> to vector<8x32xf32>
    %7 = vector.extract_strided_slice %6 {offsets = [0, 0], sizes = [1, 32], strides = [1, 1]} : vector<8x32xf32> to vector<1x32xf32>
    %8 = vector.extract_strided_slice %6 {offsets = [1, 0], sizes = [1, 32], strides = [1, 1]} : vector<8x32xf32> to vector<1x32xf32>
    %9 = vector.extract_strided_slice %6 {offsets = [2, 0], sizes = [1, 32], strides = [1, 1]} : vector<8x32xf32> to vector<1x32xf32>
    %10 = vector.extract_strided_slice %6 {offsets = [3, 0], sizes = [1, 32], strides = [1, 1]} : vector<8x32xf32> to vector<1x32xf32>
    %11 = vector.extract_strided_slice %6 {offsets = [4, 0], sizes = [1, 32], strides = [1, 1]} : vector<8x32xf32> to vector<1x32xf32>
    %12 = vector.extract_strided_slice %6 {offsets = [5, 0], sizes = [1, 32], strides = [1, 1]} : vector<8x32xf32> to vector<1x32xf32>
    %13 = vector.extract_strided_slice %6 {offsets = [6, 0], sizes = [1, 32], strides = [1, 1]} : vector<8x32xf32> to vector<1x32xf32>
    %14 = arith.truncf %4 : vector<16x32xf32> to vector<16x32xbf16>
    %c0_6 = arith.constant 0 : index
    %c0_7 = arith.constant 0 : index
    %c0_8 = arith.constant 0 : index
    %15 = vector.load %arg5[%c0_6, %c0_7, %c0_8] : memref<1x32x96xbf16, #tpu.memory_space<vmem>>, vector<1x32x96xbf16>
    %16 = vector.shape_cast %15 : vector<1x32x96xbf16> to vector<32x96xbf16>
    %cst = arith.constant dense<0.000000e+00> : vector<16x96xf32>
    %17 = tpu.matmul %14, %16, %cst {dimension_numbers = #tpu.dot_dimension_numbers<[1], [0], [0], [1], [0, 0, 1, 1], [], []>} : vector<16x32xbf16>, vector<32x96xbf16>, vector<16x96xf32> -> vector<16x96xf32>
    %18 = vector.shape_cast %17 : vector<16x96xf32> to vector<2x8x96xf32>
    %19 = vector.extract_strided_slice %18 {offsets = [0, 0, 0], sizes = [2, 8, 16], strides = [1, 1, 1]} : vector<2x8x96xf32> to vector<2x8x16xf32>
    %20 = vector.extract_strided_slice %18 {offsets = [0, 0, 16], sizes = [2, 8, 16], strides = [1, 1, 1]} : vector<2x8x96xf32> to vector<2x8x16xf32>
    %21 = tpu.concatenate %19, %20 in 0 : vector<2x8x16xf32>, vector<2x8x16xf32> -> vector<4x8x16xf32>
    %22 = arith.truncf %21 : vector<4x8x16xf32> to vector<4x8x16xbf16>
    %23 = vector.shape_cast %17 : vector<16x96xf32> to vector<2x8x96xf32>
    %24 = vector.extract_strided_slice %23 {offsets = [0, 0, 32], sizes = [2, 8, 16], strides = [1, 1, 1]} : vector<2x8x96xf32> to vector<2x8x16xf32>
    %25 = vector.extract_strided_slice %23 {offsets = [0, 0, 48], sizes = [2, 8, 16], strides = [1, 1, 1]} : vector<2x8x96xf32> to vector<2x8x16xf32>
    %26 = tpu.concatenate %24, %25 in 0 : vector<2x8x16xf32>, vector<2x8x16xf32> -> vector<4x8x16xf32>
    %27 = arith.truncf %26 : vector<4x8x16xf32> to vector<4x8x16xbf16>
    %28 = vector.shape_cast %17 : vector<16x96xf32> to vector<2x8x96xf32>
    %29 = vector.extract_strided_slice %28 {offsets = [0, 0, 64], sizes = [2, 8, 16], strides = [1, 1, 1]} : vector<2x8x96xf32> to vector<2x8x16xf32>
    %30 = vector.extract_strided_slice %28 {offsets = [0, 0, 80], sizes = [2, 8, 16], strides = [1, 1, 1]} : vector<2x8x96xf32> to vector<2x8x16xf32>
    %31 = tpu.concatenate %29, %30 in 0 : vector<2x8x16xf32>, vector<2x8x16xf32> -> vector<4x8x16xf32>
    %32 = arith.truncf %31 : vector<4x8x16xf32> to vector<4x8x16xbf16>
    "tpu.trace_start"() <{level = 10 : i32, message = "bqd,bkd->bqk"}> : () -> ()
    %cst_9 = arith.constant dense<0.000000e+00> : vector<4x8x8xf32>
    %33 = tpu.matmul %22, %27, %cst_9 {dimension_numbers = #tpu.dot_dimension_numbers<[2], [2], [1], [1], [0, 0, 0, 1, 1, 1], [0], [0]>} : vector<4x8x16xbf16>, vector<4x8x16xbf16>, vector<4x8x8xf32> -> vector<4x8x8xf32>
    "tpu.trace_stop"() : () -> ()
    %cst_10 = arith.constant dense<0xFF800000> : vector<4x8xf32>
    %34 = vector.multi_reduction <maximumf>, %33, %cst_10 [2] : vector<4x8x8xf32> to vector<4x8xf32>
    %35 = vector.shape_cast %34 : vector<4x8xf32> to vector<4x8x1xf32>
    %36 = vector.broadcast %35 : vector<4x8x1xf32> to vector<4x8x8xf32>
    %37 = arith.subf %33, %36 : vector<4x8x8xf32>
    %38 = math.exp %37 : vector<4x8x8xf32>
    %cst_11 = arith.constant dense<0.000000e+00> : vector<4x8xf32>
    %39 = vector.multi_reduction <add>, %38, %cst_11 [2] : vector<4x8x8xf32> to vector<4x8xf32>
    %40 = vector.shape_cast %39 : vector<4x8xf32> to vector<4x8x1xf32>
    %41 = vector.broadcast %40 : vector<4x8x1xf32> to vector<4x8x8xf32>
    %42 = arith.divf %38, %41 : vector<4x8x8xf32>
    %43 = vector.shape_cast %42 : vector<4x8x8xf32> to vector<2x2x8x8xf32>
    %44 = arith.truncf %43 : vector<2x2x8x8xf32> to vector<2x2x8x8xbf16>
    %c0_12 = arith.constant 0 : index
    %c0_13 = arith.constant 0 : index
    %c0_14 = arith.constant 0 : index
    %c0_15 = arith.constant 0 : index
    %45 = vector.load %arg15[%c0_12, %c0_13, %c0_14, %c0_15] : memref<2x2x8x8xbf16, #tpu.memory_space<vmem>>, vector<2x2x8x8xbf16>
    tpu.vector_store %arg15[%c0_12, %c0_13, %c0_14, %c0_15], %44 {strides = array<i32>} : memref<2x2x8x8xbf16, #tpu.memory_space<vmem>>, vector<2x2x8x8xbf16>,
    %46 = arith.truncf %42 : vector<4x8x8xf32> to vector<4x8x8xbf16>
    "tpu.trace_start"() <{level = 10 : i32, message = "bqk,bkd->bqd"}> : () -> ()
    %cst_16 = arith.constant dense<0.000000e+00> : vector<4x8x16xf32>
    %47 = tpu.matmul %46, %32, %cst_16 {dimension_numbers = #tpu.dot_dimension_numbers<[2], [1], [1], [2], [0, 0, 0, 1, 1, 2], [0], [0]>} : vector<4x8x8xbf16>, vector<4x8x16xbf16>, vector<4x8x16xf32> -> vector<4x8x16xf32>
    "tpu.trace_stop"() : () -> ()
    %48 = vector.extract_strided_slice %47 {offsets = [0, 0, 0], sizes = [2, 8, 16], strides = [1, 1, 1]} : vector<4x8x16xf32> to vector<2x8x16xf32>
    %49 = vector.extract_strided_slice %47 {offsets = [2, 0, 0], sizes = [2, 8, 16], strides = [1, 1, 1]} : vector<4x8x16xf32> to vector<2x8x16xf32>
    %50 = tpu.concatenate %48, %49 in 2 : vector<2x8x16xf32>, vector<2x8x16xf32> -> vector<2x8x32xf32>
    %51 = vector.shape_cast %50 : vector<2x8x32xf32> to vector<16x32xf32>
    %52 = arith.truncf %51 : vector<16x32xf32> to vector<16x32xbf16>
    %c0_17 = arith.constant 0 : index
    %c0_18 = arith.constant 0 : index
    %c0_19 = arith.constant 0 : index
    %53 = vector.load %arg6[%c0_17, %c0_18, %c0_19] : memref<1x32x32xbf16, #tpu.memory_space<vmem>>, vector<1x32x32xbf16>
    %54 = vector.shape_cast %53 : vector<1x32x32xbf16> to vector<32x32xbf16>
    %cst_20 = arith.constant dense<0.000000e+00> : vector<16x32xf32>
    %55 = tpu.matmul %52, %54, %cst_20 {dimension_numbers = #tpu.dot_dimension_numbers<[1], [0], [0], [1], [0, 0, 1, 1], [], []>} : vector<16x32xbf16>, vector<32x32xbf16>, vector<16x32xf32> -> vector<16x32xf32>
    %56 = arith.addf %55, %4 : vector<16x32xf32>
    %cst_21 = arith.constant dense<0.000000e+00> : vector<16xf32>
    %57 = vector.multi_reduction <add>, %56, %cst_21 [1] : vector<16x32xf32> to vector<16xf32>
    %58 = vector.shape_cast %57 : vector<16xf32> to vector<16x1xf32>
    %cst_22 = arith.constant 3.200000e+01 : f32
    %59 = vector.broadcast %cst_22 : f32 to vector<16x1xf32>
    %60 = arith.divf %58, %59 : vector<16x1xf32>
    %61 = vector.broadcast %60 : vector<16x1xf32> to vector<16x32xf32>
    %62 = arith.subf %56, %61 : vector<16x32xf32>
    %63 = arith.mulf %62, %62 : vector<16x32xf32>
    %cst_23 = arith.constant dense<0.000000e+00> : vector<16xf32>
    %64 = vector.multi_reduction <add>, %63, %cst_23 [1] : vector<16x32xf32> to vector<16xf32>
    %65 = vector.shape_cast %64 : vector<16xf32> to vector<16x1xf32>
    %cst_24 = arith.constant 3.200000e+01 : f32
    %66 = vector.broadcast %cst_24 : f32 to vector<16x1xf32>
    %67 = arith.divf %65, %66 : vector<16x1xf32>
    %68 = vector.broadcast %60 : vector<16x1xf32> to vector<16x32xf32>
    %69 = arith.subf %56, %68 : vector<16x32xf32>
    %cst_25 = arith.constant 9.99999997E-7 : f32
    %70 = vector.broadcast %cst_25 : f32 to vector<16x1xf32>
    %71 = arith.addf %67, %70 : vector<16x1xf32>
    %72 = math.rsqrt %71 : vector<16x1xf32>
    %73 = vector.broadcast %72 : vector<16x1xf32> to vector<16x32xf32>
    %74 = arith.mulf %69, %73 : vector<16x32xf32>
    %75 = vector.broadcast %7 : vector<1x32xf32> to vector<16x32xf32>
    %76 = arith.mulf %74, %75 : vector<16x32xf32>
    %77 = vector.broadcast %8 : vector<1x32xf32> to vector<16x32xf32>
    %78 = arith.addf %76, %77 : vector<16x32xf32>
    %c0_26 = arith.constant 0 : index
    %c0_27 = arith.constant 0 : index
    %c0_28 = arith.constant 0 : index
    %79 = vector.load %arg3[%c0_26, %c0_27, %c0_28] : memref<2x16x32xbf16, #tpu.memory_space<vmem>>, vector<2x16x32xbf16>
    %80 = vector.shape_cast %79 : vector<2x16x32xbf16> to vector<32x32xbf16>
    %c0_29 = arith.constant 0 : index
    %c0_30 = arith.constant 0 : index
    %c0_31 = arith.constant 0 : index
    %81 = vector.load %arg8[%c0_29, %c0_30, %c0_31] : memref<1x32x64xbf16, #tpu.memory_space<vmem>>, vector<1x32x64xbf16>
    %82 = vector.shape_cast %81 : vector<1x32x64xbf16> to vector<32x64xbf16>
    %cst_32 = arith.constant dense<0.000000e+00> : vector<32x64xf32>
    %83 = tpu.matmul %80, %82, %cst_32 {dimension_numbers = #tpu.dot_dimension_numbers<[1], [0], [0], [1], [0, 0, 1, 1], [], []>} : vector<32x32xbf16>, vector<32x64xbf16>, vector<32x64xf32> -> vector<32x64xf32>
    %84 = arith.truncf %78 : vector<16x32xf32> to vector<16x32xbf16>
    %c0_33 = arith.constant 0 : index
    %c0_34 = arith.constant 0 : index
    %c0_35 = arith.constant 0 : index
    %85 = vector.load %arg7[%c0_33, %c0_34, %c0_35] : memref<1x32x32xbf16, #tpu.memory_space<vmem>>, vector<1x32x32xbf16>
    %86 = vector.shape_cast %85 : vector<1x32x32xbf16> to vector<32x32xbf16>
    %cst_36 = arith.constant dense<0.000000e+00> : vector<16x32xf32>
    %87 = tpu.matmul %84, %86, %cst_36 {dimension_numbers = #tpu.dot_dimension_numbers<[1], [0], [0], [1], [0, 0, 1, 1], [], []>} : vector<16x32xbf16>, vector<32x32xbf16>, vector<16x32xf32> -> vector<16x32xf32>
    %88 = vector.shape_cast %87 : vector<16x32xf32> to vector<2x8x32xf32>
    %89 = vector.extract_strided_slice %88 {offsets = [0, 0, 0], sizes = [2, 8, 16], strides = [1, 1, 1]} : vector<2x8x32xf32> to vector<2x8x16xf32>
    %90 = vector.extract_strided_slice %88 {offsets = [0, 0, 16], sizes = [2, 8, 16], strides = [1, 1, 1]} : vector<2x8x32xf32> to vector<2x8x16xf32>
    %91 = tpu.concatenate %89, %90 in 0 : vector<2x8x16xf32>, vector<2x8x16xf32> -> vector<4x8x16xf32>
    %92 = arith.truncf %91 : vector<4x8x16xf32> to vector<4x8x16xbf16>
    %93 = vector.shape_cast %83 : vector<32x64xf32> to vector<2x16x64xf32>
    %94 = vector.extract_strided_slice %93 {offsets = [0, 0, 0], sizes = [2, 16, 16], strides = [1, 1, 1]} : vector<2x16x64xf32> to vector<2x16x16xf32>
    %95 = vector.extract_strided_slice %93 {offsets = [0, 0, 16], sizes = [2, 16, 16], strides = [1, 1, 1]} : vector<2x16x64xf32> to vector<2x16x16xf32>
    %96 = tpu.concatenate %94, %95 in 0 : vector<2x16x16xf32>, vector<2x16x16xf32> -> vector<4x16x16xf32>
    %97 = arith.truncf %96 : vector<4x16x16xf32> to vector<4x16x16xbf16>
    %98 = vector.shape_cast %83 : vector<32x64xf32> to vector<2x16x64xf32>
    %99 = vector.extract_strided_slice %98 {offsets = [0, 0, 32], sizes = [2, 16, 16], strides = [1, 1, 1]} : vector<2x16x64xf32> to vector<2x16x16xf32>
    %100 = vector.extract_strided_slice %98 {offsets = [0, 0, 48], sizes = [2, 16, 16], strides = [1, 1, 1]} : vector<2x16x64xf32> to vector<2x16x16xf32>
    %101 = tpu.concatenate %99, %100 in 0 : vector<2x16x16xf32>, vector<2x16x16xf32> -> vector<4x16x16xf32>
    %102 = arith.truncf %101 : vector<4x16x16xf32> to vector<4x16x16xbf16>
    "tpu.trace_start"() <{level = 10 : i32, message = "bqd,bkd->bqk"}> : () -> ()
    %cst_37 = arith.constant dense<0.000000e+00> : vector<4x8x16xf32>
    %103 = tpu.matmul %92, %97, %cst_37 {dimension_numbers = #tpu.dot_dimension_numbers<[2], [2], [1], [1], [0, 0, 0, 1, 1, 1], [0], [0]>} : vector<4x8x16xbf16>, vector<4x16x16xbf16>, vector<4x8x16xf32> -> vector<4x8x16xf32>
    "tpu.trace_stop"() : () -> ()
    %104 = vector.shape_cast %103 : vector<4x8x16xf32> to vector<2x2x8x16xf32>
    %c0_38 = arith.constant 0 : index
    %c0_39 = arith.constant 0 : index
    %c0_40 = arith.constant 0 : index
    %105 = vector.load %arg4[%c0_38, %c0_39, %c0_40] : memref<2x8x16xbf16, #tpu.memory_space<vmem>>, vector<2x8x16xbf16>
    %cst_41 = arith.constant 0.000000e+00 : bf16
    %106 = vector.broadcast %cst_41 : bf16 to vector<2x8x16xbf16>
    %107 = arith.cmpf one, %105, %106 : vector<2x8x16xbf16>
    %108 = vector.shape_cast %107 : vector<2x8x16xi1> to vector<1x2x8x16xi1>
    %cst_42 = arith.constant -1.000000e+09 : f32
    %109 = vector.shape_cast %108 : vector<1x2x8x16xi1> to vector<1x2x8x16xi1>
    %110 = vector.broadcast %109 : vector<1x2x8x16xi1> to vector<2x2x8x16xi1>
    %111 = vector.broadcast %cst_42 : f32 to vector<2x2x8x16xf32>
    %112 = arith.select %110, %104, %111 : vector<2x2x8x16xi1>, vector<2x2x8x16xf32>
    %c1_i32 = arith.constant 1 : i32
    %113 = arith.cmpi eq, %arg1, %c1_i32 : i32
    %114 = arith.extui %113 : i1 to i32
    %c0_i32_43 = arith.constant 0 : i32
    %115 = arith.cmpi ne, %114, %c0_i32_43 : i32
    scf.if %115 {
      %c0_80 = arith.constant 0 : index
      %c0_81 = arith.constant 0 : index
      %c0_82 = arith.constant 0 : index
      %c0_83 = arith.constant 0 : index
      %202 = vector.load %arg17[%c0_80, %c0_81, %c0_82, %c0_83] : memref<2x2x8x16xf32, #tpu.memory_space<vmem>>, vector<2x2x8x16xf32>
      tpu.vector_store %arg17[%c0_80, %c0_81, %c0_82, %c0_83], %112 {strides = array<i32>} : memref<2x2x8x16xf32, #tpu.memory_space<vmem>>, vector<2x2x8x16xf32>,
    } else {
    }
    %cst_44 = arith.constant dense<0xFF800000> : vector<2x2x8xf32>
    %116 = vector.multi_reduction <maximumf>, %112, %cst_44 [3] : vector<2x2x8x16xf32> to vector<2x2x8xf32>
    %117 = vector.shape_cast %116 : vector<2x2x8xf32> to vector<2x2x8x1xf32>
    %118 = vector.broadcast %117 : vector<2x2x8x1xf32> to vector<2x2x8x16xf32>
    %119 = arith.subf %112, %118 : vector<2x2x8x16xf32>
    %120 = math.exp %119 : vector<2x2x8x16xf32>
    %cst_45 = arith.constant dense<0.000000e+00> : vector<2x2x8xf32>
    %121 = vector.multi_reduction <add>, %120, %cst_45 [3] : vector<2x2x8x16xf32> to vector<2x2x8xf32>
    %122 = vector.shape_cast %121 : vector<2x2x8xf32> to vector<2x2x8x1xf32>
    %123 = vector.broadcast %122 : vector<2x2x8x1xf32> to vector<2x2x8x16xf32>
    %124 = arith.divf %120, %123 : vector<2x2x8x16xf32>
    %125 = arith.truncf %124 : vector<2x2x8x16xf32> to vector<2x2x8x16xbf16>
    %c0_46 = arith.constant 0 : index
    %c0_47 = arith.constant 0 : index
    %c0_48 = arith.constant 0 : index
    %c0_49 = arith.constant 0 : index
    %126 = vector.load %arg16[%c0_46, %c0_47, %c0_48, %c0_49] : memref<2x2x8x16xbf16, #tpu.memory_space<vmem>>, vector<2x2x8x16xbf16>
    tpu.vector_store %arg16[%c0_46, %c0_47, %c0_48, %c0_49], %125 {strides = array<i32>} : memref<2x2x8x16xbf16, #tpu.memory_space<vmem>>, vector<2x2x8x16xbf16>,
    %127 = vector.shape_cast %124 : vector<2x2x8x16xf32> to vector<4x8x16xf32>
    %128 = arith.truncf %127 : vector<4x8x16xf32> to vector<4x8x16xbf16>
    "tpu.trace_start"() <{level = 10 : i32, message = "bqk,bkd->bqd"}> : () -> ()
    %cst_50 = arith.constant dense<0.000000e+00> : vector<4x8x16xf32>
    %129 = tpu.matmul %128, %102, %cst_50 {dimension_numbers = #tpu.dot_dimension_numbers<[2], [1], [1], [2], [0, 0, 0, 1, 1, 2], [0], [0]>} : vector<4x8x16xbf16>, vector<4x16x16xbf16>, vector<4x8x16xf32> -> vector<4x8x16xf32>
    "tpu.trace_stop"() : () -> ()
    %130 = vector.extract_strided_slice %129 {offsets = [0, 0, 0], sizes = [2, 8, 16], strides = [1, 1, 1]} : vector<4x8x16xf32> to vector<2x8x16xf32>
    %131 = vector.extract_strided_slice %129 {offsets = [2, 0, 0], sizes = [2, 8, 16], strides = [1, 1, 1]} : vector<4x8x16xf32> to vector<2x8x16xf32>
    %132 = tpu.concatenate %130, %131 in 2 : vector<2x8x16xf32>, vector<2x8x16xf32> -> vector<2x8x32xf32>
    %133 = vector.shape_cast %132 : vector<2x8x32xf32> to vector<16x32xf32>
    %134 = arith.truncf %133 : vector<16x32xf32> to vector<16x32xbf16>
    %c0_51 = arith.constant 0 : index
    %c0_52 = arith.constant 0 : index
    %c0_53 = arith.constant 0 : index
    %135 = vector.load %arg9[%c0_51, %c0_52, %c0_53] : memref<1x32x32xbf16, #tpu.memory_space<vmem>>, vector<1x32x32xbf16>
    %136 = vector.shape_cast %135 : vector<1x32x32xbf16> to vector<32x32xbf16>
    %cst_54 = arith.constant dense<0.000000e+00> : vector<16x32xf32>
    %137 = tpu.matmul %134, %136, %cst_54 {dimension_numbers = #tpu.dot_dimension_numbers<[1], [0], [0], [1], [0, 0, 1, 1], [], []>} : vector<16x32xbf16>, vector<32x32xbf16>, vector<16x32xf32> -> vector<16x32xf32>
    %138 = arith.addf %137, %78 : vector<16x32xf32>
    %cst_55 = arith.constant dense<0.000000e+00> : vector<16xf32>
    %139 = vector.multi_reduction <add>, %138, %cst_55 [1] : vector<16x32xf32> to vector<16xf32>
    %140 = vector.shape_cast %139 : vector<16xf32> to vector<16x1xf32>
    %cst_56 = arith.constant 3.200000e+01 : f32
    %141 = vector.broadcast %cst_56 : f32 to vector<16x1xf32>
    %142 = arith.divf %140, %141 : vector<16x1xf32>
    %143 = vector.broadcast %142 : vector<16x1xf32> to vector<16x32xf32>
    %144 = arith.subf %138, %143 : vector<16x32xf32>
    %145 = arith.mulf %144, %144 : vector<16x32xf32>
    %cst_57 = arith.constant dense<0.000000e+00> : vector<16xf32>
    %146 = vector.multi_reduction <add>, %145, %cst_57 [1] : vector<16x32xf32> to vector<16xf32>
    %147 = vector.shape_cast %146 : vector<16xf32> to vector<16x1xf32>
    %cst_58 = arith.constant 3.200000e+01 : f32
    %148 = vector.broadcast %cst_58 : f32 to vector<16x1xf32>
    %149 = arith.divf %147, %148 : vector<16x1xf32>
    %150 = vector.broadcast %142 : vector<16x1xf32> to vector<16x32xf32>
    %151 = arith.subf %138, %150 : vector<16x32xf32>
    %cst_59 = arith.constant 9.99999997E-7 : f32
    %152 = vector.broadcast %cst_59 : f32 to vector<16x1xf32>
    %153 = arith.addf %149, %152 : vector<16x1xf32>
    %154 = math.rsqrt %153 : vector<16x1xf32>
    %155 = vector.broadcast %154 : vector<16x1xf32> to vector<16x32xf32>
    %156 = arith.mulf %151, %155 : vector<16x32xf32>
    %157 = vector.broadcast %9 : vector<1x32xf32> to vector<16x32xf32>
    %158 = arith.mulf %156, %157 : vector<16x32xf32>
    %159 = vector.broadcast %10 : vector<1x32xf32> to vector<16x32xf32>
    %160 = arith.addf %158, %159 : vector<16x32xf32>
    %161 = arith.truncf %160 : vector<16x32xf32> to vector<16x32xbf16>
    %c0_60 = arith.constant 0 : index
    %c0_61 = arith.constant 0 : index
    %c0_62 = arith.constant 0 : index
    %162 = vector.load %arg10[%c0_60, %c0_61, %c0_62] : memref<1x32x64xbf16, #tpu.memory_space<vmem>>, vector<1x32x64xbf16>
    %163 = vector.shape_cast %162 : vector<1x32x64xbf16> to vector<32x64xbf16>
    %cst_63 = arith.constant dense<0.000000e+00> : vector<16x64xf32>
    %164 = tpu.matmul %161, %163, %cst_63 {dimension_numbers = #tpu.dot_dimension_numbers<[1], [0], [0], [1], [0, 0, 1, 1], [], []>} : vector<16x32xbf16>, vector<32x64xbf16>, vector<16x64xf32> -> vector<16x64xf32>
    %c0_64 = arith.constant 0 : index
    %c0_65 = arith.constant 0 : index
    %c0_66 = arith.constant 0 : index
    %165 = vector.load %arg12[%c0_64, %c0_65, %c0_66] : memref<1x1x64xf32, #tpu.memory_space<vmem>>, vector<1x1x64xf32>
    %166 = vector.shape_cast %165 : vector<1x1x64xf32> to vector<1x64xf32>
    %167 = vector.broadcast %166 : vector<1x64xf32> to vector<16x64xf32>
    %168 = arith.addf %164, %167 : vector<16x64xf32>
    %cst_67 = arith.constant 0.000000e+00 : f32
    %169 = vector.broadcast %cst_67 : f32 to vector<16x64xf32>
    %170 = arith.maximumf %168, %169 : vector<16x64xf32>
    %171 = arith.truncf %170 : vector<16x64xf32> to vector<16x64xbf16>
    %c0_68 = arith.constant 0 : index
    %c0_69 = arith.constant 0 : index
    %c0_70 = arith.constant 0 : index
    %172 = vector.load %arg11[%c0_68, %c0_69, %c0_70] : memref<1x64x32xbf16, #tpu.memory_space<vmem>>, vector<1x64x32xbf16>
    %173 = vector.shape_cast %172 : vector<1x64x32xbf16> to vector<64x32xbf16>
    %cst_71 = arith.constant dense<0.000000e+00> : vector<16x32xf32>
    %174 = tpu.matmul %171, %173, %cst_71 {dimension_numbers = #tpu.dot_dimension_numbers<[1], [0], [0], [1], [0, 0, 1, 1], [], []>} : vector<16x64xbf16>, vector<64x32xbf16>, vector<16x32xf32> -> vector<16x32xf32>
    %175 = vector.broadcast %13 : vector<1x32xf32> to vector<16x32xf32>
    %176 = arith.addf %174, %175 : vector<16x32xf32>
    %177 = arith.addf %176, %160 : vector<16x32xf32>
    %cst_72 = arith.constant dense<0.000000e+00> : vector<16xf32>
    %178 = vector.multi_reduction <add>, %177, %cst_72 [1] : vector<16x32xf32> to vector<16xf32>
    %179 = vector.shape_cast %178 : vector<16xf32> to vector<16x1xf32>
    %cst_73 = arith.constant 3.200000e+01 : f32
    %180 = vector.broadcast %cst_73 : f32 to vector<16x1xf32>
    %181 = arith.divf %179, %180 : vector<16x1xf32>
    %182 = vector.broadcast %181 : vector<16x1xf32> to vector<16x32xf32>
    %183 = arith.subf %177, %182 : vector<16x32xf32>
    %184 = arith.mulf %183, %183 : vector<16x32xf32>
    %cst_74 = arith.constant dense<0.000000e+00> : vector<16xf32>
    %185 = vector.multi_reduction <add>, %184, %cst_74 [1] : vector<16x32xf32> to vector<16xf32>
    %186 = vector.shape_cast %185 : vector<16xf32> to vector<16x1xf32>
    %cst_75 = arith.constant 3.200000e+01 : f32
    %187 = vector.broadcast %cst_75 : f32 to vector<16x1xf32>
    %188 = arith.divf %186, %187 : vector<16x1xf32>
    %189 = vector.broadcast %181 : vector<16x1xf32> to vector<16x32xf32>
    %190 = arith.subf %177, %189 : vector<16x32xf32>
    %cst_76 = arith.constant 9.99999997E-7 : f32
    %191 = vector.broadcast %cst_76 : f32 to vector<16x1xf32>
    %192 = arith.addf %188, %191 : vector<16x1xf32>
    %193 = math.rsqrt %192 : vector<16x1xf32>
    %194 = vector.broadcast %193 : vector<16x1xf32> to vector<16x32xf32>
    %195 = arith.mulf %190, %194 : vector<16x32xf32>
    %196 = vector.broadcast %11 : vector<1x32xf32> to vector<16x32xf32>
    %197 = arith.mulf %195, %196 : vector<16x32xf32>
    %198 = vector.broadcast %12 : vector<1x32xf32> to vector<16x32xf32>
    %199 = arith.addf %197, %198 : vector<16x32xf32>
    %200 = vector.shape_cast %199 : vector<16x32xf32> to vector<2x8x32xf32>
    %c0_77 = arith.constant 0 : index
    %c0_78 = arith.constant 0 : index
    %c0_79 = arith.constant 0 : index
    %201 = vector.load %arg14[%c0_77, %c0_78, %c0_79] : memref<2x8x32xf32, #tpu.memory_space<vmem>>, vector<2x8x32xf32>
    tpu.vector_store %arg14[%c0_77, %c0_78, %c0_79], %200 {strides = array<i32>} : memref<2x8x32xf32, #tpu.memory_space<vmem>>, vector<2x8x32xf32>,
    return
  }
  func.func @transform_0(%arg0: i32, %arg1: i32) -> (i32, i32, i32) {
    %c0_i32 = arith.constant 0 : i32
    %c0_i32_0 = arith.constant 0 : i32
    %c0_i32_1 = arith.constant 0 : i32
    return %arg0, %c0_i32, %c0_i32_0 : i32, i32, i32
  }
  func.func @transform_1(%arg0: i32, %arg1: i32) -> (i32, i32, i32) {
    %c0_i32 = arith.constant 0 : i32
    %c0_i32_0 = arith.constant 0 : i32
    %c0_i32_1 = arith.constant 0 : i32
    return %arg0, %c0_i32, %c0_i32_0 : i32, i32, i32
  }
  func.func @transform_2(%arg0: i32, %arg1: i32) -> (i32, i32, i32) {
    %c0_i32 = arith.constant 0 : i32
    %c0_i32_0 = arith.constant 0 : i32
    %c0_i32_1 = arith.constant 0 : i32
    return %arg0, %c0_i32, %c0_i32_0 : i32, i32, i32
  }
  func.func @transform_3(%arg0: i32, %arg1: i32) -> (i32, i32, i32) {
    %c0_i32 = arith.constant 0 : i32
    %c0_i32_0 = arith.constant 0 : i32
    %c0_i32_1 = arith.constant 0 : i32
    return %arg1, %c0_i32, %c0_i32_0 : i32, i32, i32
  }
  func.func @transform_4(%arg0: i32, %arg1: i32) -> (i32, i32, i32) {
    %c0_i32 = arith.constant 0 : i32
    %c0_i32_0 = arith.constant 0 : i32
    %c0_i32_1 = arith.constant 0 : i32
    return %arg1, %c0_i32, %c0_i32_0 : i32, i32, i32
  }
  func.func @transform_5(%arg0: i32, %arg1: i32) -> (i32, i32, i32) {
    %c0_i32 = arith.constant 0 : i32
    %c0_i32_0 = arith.constant 0 : i32
    %c0_i32_1 = arith.constant 0 : i32
    return %arg1, %c0_i32, %c0_i32_0 : i32, i32, i32
  }
  func.func @transform_6(%arg0: i32, %arg1: i32) -> (i32, i32, i32) {
    %c0_i32 = arith.constant 0 : i32
    %c0_i32_0 = arith.constant 0 : i32
    %c0_i32_1 = arith.constant 0 : i32
    return %arg1, %c0_i32, %c0_i32_0 : i32, i32, i32
  }
  func.func @transform_7(%arg0: i32, %arg1: i32) -> (i32, i32, i32) {
    %c0_i32 = arith.constant 0 : i32
    %c0_i32_0 = arith.constant 0 : i32
    %c0_i32_1 = arith.constant 0 : i32
    return %arg1, %c0_i32, %c0_i32_0 : i32, i32, i32
  }
  func.func @transform_8(%arg0: i32, %arg1: i32) -> (i32, i32, i32) {
    %c0_i32 = arith.constant 0 : i32
    %c0_i32_0 = arith.constant 0 : i32
    %c0_i32_1 = arith.constant 0 : i32
    return %arg1, %c0_i32, %c0_i32_0 : i32, i32, i32
  }
  func.func @transform_9(%arg0: i32, %arg1: i32) -> (i32, i32, i32) {
    %c0_i32 = arith.constant 0 : i32
    %c0_i32_0 = arith.constant 0 : i32
    %c0_i32_1 = arith.constant 0 : i32
    return %arg1, %c0_i32, %c0_i32_0 : i32, i32, i32
  }
  func.func @transform_10(%arg0: i32, %arg1: i32) -> (i32, i32, i32) {
    %c0_i32 = arith.constant 0 : i32
    %c0_i32_0 = arith.constant 0 : i32
    %c0_i32_1 = arith.constant 0 : i32
    return %arg1, %c0_i32, %c0_i32_0 : i32, i32, i32
  }
  func.func @transform_11(%arg0: i32, %arg1: i32) -> (i32, i32, i32) {
    %c0_i32 = arith.constant 0 : i32
    %c0_i32_0 = arith.constant 0 : i32
    %c0_i32_1 = arith.constant 0 : i32
    return %arg1, %c0_i32, %c0_i32_0 : i32, i32, i32
  }
  func.func @transform_12(%arg0: i32, %arg1: i32) -> (i32, i32, i32) {
    %c0_i32 = arith.constant 0 : i32
    %c0_i32_0 = arith.constant 0 : i32
    %c0_i32_1 = arith.constant 0 : i32
    return %arg0, %c0_i32, %c0_i32_0 : i32, i32, i32
  }
  func.func @transform_13(%arg0: i32, %arg1: i32) -> (i32, i32, i32, i32) {
    %c0_i32 = arith.constant 0 : i32
    %c0_i32_0 = arith.constant 0 : i32
    %c0_i32_1 = arith.constant 0 : i32
    return %arg1, %arg0, %c0_i32, %c0_i32_0 : i32, i32, i32, i32
  }
  func.func @transform_14(%arg0: i32, %arg1: i32) -> (i32, i32, i32, i32) {
    %c0_i32 = arith.constant 0 : i32
    %c0_i32_0 = arith.constant 0 : i32
    %c0_i32_1 = arith.constant 0 : i32
    return %arg1, %arg0, %c0_i32, %c0_i32_0 : i32, i32, i32, i32
  }
  func.func @transform_15(%arg0: i32, %arg1: i32) -> (i32, i32, i32, i32) {
    %c0_i32 = arith.constant 0 : i32
    %c0_i32_0 = arith.constant 0 : i32
    %c0_i32_1 = arith.constant 0 : i32
    %c0_i32_2 = arith.constant 0 : i32
    return %c0_i32, %arg0, %c0_i32_0, %c0_i32_1 : i32, i32, i32, i32
  }
}

</mosaic_0001>

<llo_original>
// kernel: tpu_custom_call.1
$region0: #{tpu_custom_call.1}
  #allocation0 [shape = 'u32[]', space=smem, size = 0x4, offset = 0x4, fixed_abs, tag = 'smem constant byte address 0x4 - core index']
  #allocation1 [shape = 'u32[144,128]{1,0:T(1,128)}', space=vmem, size = 0x12000, scoped, tag = 'internal scratch']
  %s0 = inlined_call_operand.hbm [shape: f32[2,8,32], index: 0, kind: input, shape index: {}]
  %s1 = inlined_call_operand.hbm [shape: bf16[2,16,32], index: 1, kind: input, shape index: {}]
  %s2 = inlined_call_operand.hbm [shape: bf16[2,8,16], index: 2, kind: input, shape index: {}]
  %s3 = inlined_call_operand.vmem [shape: bf16[2,32,96], index: 3, kind: input, shape index: {}]
  %s4 = inlined_call_operand.vmem [shape: bf16[2,32,32], index: 4, kind: input, shape index: {}]
  %s5 = inlined_call_operand.vmem [shape: bf16[2,32,32], index: 5, kind: input, shape index: {}]
  %s6 = inlined_call_operand.hbm [shape: bf16[2,32,64], index: 6, kind: input, shape index: {}]
  %s7 = inlined_call_operand.hbm [shape: bf16[2,32,32], index: 7, kind: input, shape index: {}]
  %s8 = inlined_call_operand.hbm [shape: bf16[2,32,64], index: 8, kind: input, shape index: {}]
  %s9 = inlined_call_operand.vmem [shape: bf16[2,64,32], index: 9, kind: input, shape index: {}]
  %s10 = inlined_call_operand.vmem [shape: f32[2,1,64], index: 10, kind: input, shape index: {}]
  %s11 = inlined_call_operand.vmem [shape: f32[2,8,32], index: 11, kind: input, shape index: {}]
  %s12 = inlined_call_operand.hbm [shape: f32[2,8,32], index: 12, kind: output, shape index: {0}]
  %s13 = inlined_call_operand.hbm [shape: bf16[4,2,8,8], index: 13, kind: output, shape index: {1}]
  %s14 = inlined_call_operand.hbm [shape: bf16[4,2,8,16], index: 14, kind: output, shape index: {2}]
  %s15 = inlined_call_operand.hbm [shape: f32[2,2,8,16], index: 15, kind: output, shape index: {3}]
  %16 = xla_tuple %s12, %s13, %s14, %s15
  %s17 = sld [smem:[#allocation0]]
  $region137: #{tpu_custom_call.1} parent=0
    _
  %s19 = ssub.s32 1, %s17
  %s20 = scalar_select 0, %s19, %s17
  $region1: #{tpu_custom_call.1} parent=0
    #allocation2 [shape = 'u8[8192]{0}', space=vmem, size = 0x2000, scoped, tag = 'input window, operand 0, single buffered']
    #allocation3 [shape = 's32[2]{0}', space=sflag, size = 0x8, scoped, tag = 'scoped memory for tpu_custom_call.1']
    #allocation4 [shape = 's32[2]{0}', space=sflag, size = 0x8, scoped, tag = 'scoped memory for tpu_custom_call.1']
    #allocation5 [shape = 'u8[8192]{0}', space=vmem, size = 0x2000, scoped, tag = 'input window, operand 1, single buffered']
    #allocation6 [shape = 's32[1]{0}', space=sflag, size = 0x4, scoped, tag = 'scoped memory for tpu_custom_call.1']
    #allocation7 [shape = 'u8[4096]{0}', space=vmem, size = 0x1000, scoped, tag = 'input window, operand 2, single buffered']
    #allocation8 [shape = 'u8[16384]{0}', space=vmem, size = 0x4000, scoped, tag = 'input window, operand 6']
    #allocation9 [shape = 's32[2]{0}', space=sflag, size = 0x8, scoped, tag = 'scoped memory for tpu_custom_call.1']
    #allocation10 [shape = 'u8[16384]{0}', space=vmem, size = 0x4000, scoped, tag = 'input window, operand 7']
    #allocation11 [shape = 'u8[16384]{0}', space=vmem, size = 0x4000, scoped, tag = 'input window, operand 8']
    #allocation12 [shape = 's32[2]{0}', space=sflag, size = 0x8, scoped, tag = 'scoped memory for tpu_custom_call.1']
    #allocation13 [shape = 'u8[8192]{0}', space=vmem, size = 0x2000, scoped, tag = 'output window, operand 0, single buffered']
    #allocation14 [shape = 'u8[16384]{0}', space=vmem, size = 0x4000, scoped, tag = 'output window, operand 1']
    #allocation15 [shape = 's32[2]{0}', space=sflag, size = 0x8, scoped, tag = 'scoped memory for tpu_custom_call.1']
    #allocation16 [shape = 'u8[16384]{0}', space=vmem, size = 0x4000, scoped, tag = 'output window, operand 2']
    #allocation17 [shape = 'u8[16384]{0}', space=vmem, size = 0x4000, scoped, tag = 'output window, operand 3, single buffered']
    #allocation18 [shape = 's32[1]{0}', space=sflag, size = 0x4, scoped, tag = 'scoped memory for tpu_custom_call.1']
    %21 = vsyncpa [#allocation3], 0
    %22 = vsyncpa [#allocation6], 0
    %23 = vsyncpa [#allocation9], 0
    %s24 = scalar_lea.sflag [#allocation9], 1
    %25 = vsyncpa %s24, 0
    %26 = vsyncpa [#allocation12], 0
    %s27 = scalar_lea.sflag [#allocation12], 1
    %28 = vsyncpa %s27, 0
    %29 = vsyncpa [#allocation4], 0
    %30 = vsyncpa [#allocation15], 0
    %s31 = scalar_lea.sflag [#allocation15], 1
    %32 = vsyncpa %s31, 0
    %33 = vsyncpa [#allocation18], 0
    loop: start=0, step=1, limit=4
    $region2: #{tpu_custom_call.1} parent=1 // loop_pre_header
      _
    $region3: #{tpu_custom_call.1} parent=1 // loop_header
      %s35 = sphi 0, %s39
      %p36 = scmp.ge.s32.totalorder %s35, 4
      %s42 = sphi 0, %s54
      %s43 = sphi 0, %s50
      %s44 = sphi 0, %s42
      %s45 = sphi 0, %s43
      %s46 = sphi 0, %s44
      %s47 = sphi 0, %s45
      %s57 = sphi 0, %s59
      %s60 = sphi 0, %s57
      %s61 = sphi 0, %s60
      %s77 = sphi 0, %s61
      %s83 = sphi 0, %s85
      %s86 = sphi 0, %s83
      %s87 = sphi 0, %s86
      %s103 = sphi 0, %s87
      %s109 = sphi 0, %s111
      %s112 = sphi 0, %s109
      %s113 = sphi 0, %s112
      %s129 = sphi 0, %s113
      %s135 = sphi 0, %s137
      %s138 = sphi 0, %s135
      %s139 = sphi 0, %s138
      %s155 = sphi 0, %s139
      %s161 = sphi 0, %s163
      %s164 = sphi 0, %s161
      %s165 = sphi 0, %s164
      %s181 = sphi 0, %s165
      %s187 = sphi 0, %s189
      %s190 = sphi 0, %s187
      %s191 = sphi 0, %s190
      %s207 = sphi 0, %s191
      %s213 = sphi 0, %s215
      %s216 = sphi 0, %s213
      %s217 = sphi 0, %s216
      %s233 = sphi 0, %s217
      %s239 = sphi 0, %s241
      %s242 = sphi 0, %s239
      %s243 = sphi 0, %s242
      %s259 = sphi 0, %s243
      %s265 = sphi 0, %s267
      %s268 = sphi 0, %s265
      %s269 = sphi 0, %s268
      %s285 = sphi 0, %s269
      %s291 = sphi 0, %s293
      %s294 = sphi 0, %s291
      %s295 = sphi 0, %s294
      %s311 = sphi 0, %s295
      %s317 = sphi 0, %s319
      %s320 = sphi 0, %s317
      %s321 = sphi 0, %s320
      %s337 = sphi 0, %s321
      %s343 = sphi 0, %s345
      %s346 = sphi 0, %s343
      %s347 = sphi 0, %s346
      %s363 = sphi 0, %s347
      %s369 = sphi 0, %s371
      %s372 = sphi 0, %s369
      %s373 = sphi 0, %s372
      %s389 = sphi 0, %s373
      %s397 = sphi 0, %s399
      %s400 = sphi 0, %s397
      %s401 = sphi 0, %s400
      %s417 = sphi 0, %s401
      %s425 = sphi 0, %s427
      %s428 = sphi 0, %s425
      %s429 = sphi 0, %s428
      %s445 = sphi 0, %s429
      %s451 = sphi 0, %s453
      %s454 = sphi 0, %s451
      %s455 = sphi 0, %s454
      %s471 = sphi 0, %s455
    $region4: #{tpu_custom_call.1} parent=1 // loop_header_branch
      %38 = sbr.rel (%p36) target = $region8
    $region5: #{tpu_custom_call.1} parent=1 // loop_body
      %s40 = ssub.s32 %s35, 1
      %s41 = ssub.s32 %s35, 2
      %s48 = sadd.s32 1, %s43
      %p49 = scmp.ge.s32.totalorder %s48, 2
      %s50 = scalar_select %p49, 0, %s48
      %s51 = sadd.s32 1, %s42
      %s52 = scalar_select %p49, %s51, %s42
      %p53 = scmp.ge.s32.totalorder %s52, 1
      %s54 = scalar_select %p53, 0, %s52
      %s55 = ssub.s32 %s42, %s54
      %p56 = scmp.eq.s32.totalorder %s55, 0
      %s58 = sadd.s32 %s57, 1
      %s59 = scalar_select %p56, %s57, %s58
      %p62 = pneg %p56
      %p63 = scmp.eq.s32.totalorder %s35, 1
      %p64 = por %p62, %p63
      %p65 = scmp.ne.s32.totalorder %s57, %s60
      %p66 = scmp.eq.s32.totalorder %s35, 0
      %p67 = por %p65, %p66
      %p68 = scmp.ne.s32.totalorder %s57, %s60
      %p69 = scmp.eq.s32.totalorder %s40, 1
      %p70 = por %p68, %p69
      %p71 = scmp.ne.s32.totalorder %s60, %s61
      %p72 = scmp.eq.s32.totalorder %s40, 0
      %p73 = por %p71, %p72
      %p74 = scmp.ne.s32.totalorder %s60, %s61
      %p75 = scmp.eq.s32.totalorder %s41, 1
      %p76 = por %p74, %p75
      %p78 = scmp.ne.s32.totalorder %s61, %s77
      %p79 = scmp.eq.s32.totalorder %s41, 0
      %p80 = por %p78, %p79
      %s81 = ssub.s32 %s42, %s54
      %p82 = scmp.eq.s32.totalorder %s81, 0
      %s84 = sadd.s32 %s83, 1
      %s85 = scalar_select %p82, %s83, %s84
      %p88 = pneg %p82
      %p89 = scmp.eq.s32.totalorder %s35, 1
      %p90 = por %p88, %p89
      %p91 = scmp.ne.s32.totalorder %s83, %s86
      %p92 = scmp.eq.s32.totalorder %s35, 0
      %p93 = por %p91, %p92
      %p94 = scmp.ne.s32.totalorder %s83, %s86
      %p95 = scmp.eq.s32.totalorder %s40, 1
      %p96 = por %p94, %p95
      %p97 = scmp.ne.s32.totalorder %s86, %s87
      %p98 = scmp.eq.s32.totalorder %s40, 0
      %p99 = por %p97, %p98
      %p100 = scmp.ne.s32.totalorder %s86, %s87
      %p101 = scmp.eq.s32.totalorder %s41, 1
      %p102 = por %p100, %p101
      %p104 = scmp.ne.s32.totalorder %s87, %s103
      %p105 = scmp.eq.s32.totalorder %s41, 0
      %p106 = por %p104, %p105
      %s107 = ssub.s32 %s42, %s54
      %p108 = scmp.eq.s32.totalorder %s107, 0
      %s110 = sadd.s32 %s109, 1
      %s111 = scalar_select %p108, %s109, %s110
      %p114 = pneg %p108
      %p115 = scmp.eq.s32.totalorder %s35, 1
      %p116 = por %p114, %p115
      %p117 = scmp.ne.s32.totalorder %s109, %s112
      %p118 = scmp.eq.s32.totalorder %s35, 0
      %p119 = por %p117, %p118
      %p120 = scmp.ne.s32.totalorder %s109, %s112
      %p121 = scmp.eq.s32.totalorder %s40, 1
      %p122 = por %p120, %p121
      %p123 = scmp.ne.s32.totalorder %s112, %s113
      %p124 = scmp.eq.s32.totalorder %s40, 0
      %p125 = por %p123, %p124
      %p126 = scmp.ne.s32.totalorder %s112, %s113
      %p127 = scmp.eq.s32.totalorder %s41, 1
      %p128 = por %p126, %p127
      %p130 = scmp.ne.s32.totalorder %s113, %s129
      %p131 = scmp.eq.s32.totalorder %s41, 0
      %p132 = por %p130, %p131
      %s133 = ssub.s32 %s43, %s50
      %p134 = scmp.eq.s32.totalorder %s133, 0
      %s136 = sadd.s32 %s135, 1
      %s137 = scalar_select %p134, %s135, %s136
      %p140 = pneg %p134
      %p141 = scmp.eq.s32.totalorder %s35, 1
      %p142 = por %p140, %p141
      %p143 = scmp.ne.s32.totalorder %s135, %s138
      %p144 = scmp.eq.s32.totalorder %s35, 0
      %p145 = por %p143, %p144
      %p146 = scmp.ne.s32.totalorder %s135, %s138
      %p147 = scmp.eq.s32.totalorder %s40, 1
      %p148 = por %p146, %p147
      %p149 = scmp.ne.s32.totalorder %s138, %s139
      %p150 = scmp.eq.s32.totalorder %s40, 0
      %p151 = por %p149, %p150
      %p152 = scmp.ne.s32.totalorder %s138, %s139
      %p153 = scmp.eq.s32.totalorder %s41, 1
      %p154 = por %p152, %p153
      %p156 = scmp.ne.s32.totalorder %s139, %s155
      %p157 = scmp.eq.s32.totalorder %s41, 0
      %p158 = por %p156, %p157
      %s159 = ssub.s32 %s43, %s50
      %p160 = scmp.eq.s32.totalorder %s159, 0
      %s162 = sadd.s32 %s161, 1
      %s163 = scalar_select %p160, %s161, %s162
      %p166 = pneg %p160
      %p167 = scmp.eq.s32.totalorder %s35, 1
      %p168 = por %p166, %p167
      %p169 = scmp.ne.s32.totalorder %s161, %s164
      %p170 = scmp.eq.s32.totalorder %s35, 0
      %p171 = por %p169, %p170
      %p172 = scmp.ne.s32.totalorder %s161, %s164
      %p173 = scmp.eq.s32.totalorder %s40, 1
      %p174 = por %p172, %p173
      %p175 = scmp.ne.s32.totalorder %s164, %s165
      %p176 = scmp.eq.s32.totalorder %s40, 0
      %p177 = por %p175, %p176
      %p178 = scmp.ne.s32.totalorder %s164, %s165
      %p179 = scmp.eq.s32.totalorder %s41, 1
      %p180 = por %p178, %p179
      %p182 = scmp.ne.s32.totalorder %s165, %s181
      %p183 = scmp.eq.s32.totalorder %s41, 0
      %p184 = por %p182, %p183
      %s185 = ssub.s32 %s43, %s50
      %p186 = scmp.eq.s32.totalorder %s185, 0
      %s188 = sadd.s32 %s187, 1
      %s189 = scalar_select %p186, %s187, %s188
      %p192 = pneg %p186
      %p193 = scmp.eq.s32.totalorder %s35, 1
      %p194 = por %p192, %p193
      %p195 = scmp.ne.s32.totalorder %s187, %s190
      %p196 = scmp.eq.s32.totalorder %s35, 0
      %p197 = por %p195, %p196
      %p198 = scmp.ne.s32.totalorder %s187, %s190
      %p199 = scmp.eq.s32.totalorder %s40, 1
      %p200 = por %p198, %p199
      %p201 = scmp.ne.s32.totalorder %s190, %s191
      %p202 = scmp.eq.s32.totalorder %s40, 0
      %p203 = por %p201, %p202
      %p204 = scmp.ne.s32.totalorder %s190, %s191
      %p205 = scmp.eq.s32.totalorder %s41, 1
      %p206 = por %p204, %p205
      %p208 = scmp.ne.s32.totalorder %s191, %s207
      %p209 = scmp.eq.s32.totalorder %s41, 0
      %p210 = por %p208, %p209
      %s211 = ssub.s32 %s43, %s50
      %p212 = scmp.eq.s32.totalorder %s211, 0
      %s214 = sadd.s32 %s213, 1
      %s215 = scalar_select %p212, %s213, %s214
      %p218 = pneg %p212
      %p219 = scmp.eq.s32.totalorder %s35, 1
      %p220 = por %p218, %p219
      %p221 = scmp.ne.s32.totalorder %s213, %s216
      %p222 = scmp.eq.s32.totalorder %s35, 0
      %p223 = por %p221, %p222
      %p224 = scmp.ne.s32.totalorder %s213, %s216
      %p225 = scmp.eq.s32.totalorder %s40, 1
      %p226 = por %p224, %p225
      %p227 = scmp.ne.s32.totalorder %s216, %s217
      %p228 = scmp.eq.s32.totalorder %s40, 0
      %p229 = por %p227, %p228
      %p230 = scmp.ne.s32.totalorder %s216, %s217
      %p231 = scmp.eq.s32.totalorder %s41, 1
      %p232 = por %p230, %p231
      %p234 = scmp.ne.s32.totalorder %s217, %s233
      %p235 = scmp.eq.s32.totalorder %s41, 0
      %p236 = por %p234, %p235
      %s237 = ssub.s32 %s43, %s50
      %p238 = scmp.eq.s32.totalorder %s237, 0
      %s240 = sadd.s32 %s239, 1
      %s241 = scalar_select %p238, %s239, %s240
      %p244 = pneg %p238
      %p245 = scmp.eq.s32.totalorder %s35, 1
      %p246 = por %p244, %p245
      %p247 = scmp.ne.s32.totalorder %s239, %s242
      %p248 = scmp.eq.s32.totalorder %s35, 0
      %p249 = por %p247, %p248
      %p250 = scmp.ne.s32.totalorder %s239, %s242
      %p251 = scmp.eq.s32.totalorder %s40, 1
      %p252 = por %p250, %p251
      %p253 = scmp.ne.s32.totalorder %s242, %s243
      %p254 = scmp.eq.s32.totalorder %s40, 0
      %p255 = por %p253, %p254
      %p256 = scmp.ne.s32.totalorder %s242, %s243
      %p257 = scmp.eq.s32.totalorder %s41, 1
      %p258 = por %p256, %p257
      %p260 = scmp.ne.s32.totalorder %s243, %s259
      %p261 = scmp.eq.s32.totalorder %s41, 0
      %p262 = por %p260, %p261
      %s263 = ssub.s32 %s43, %s50
      %p264 = scmp.eq.s32.totalorder %s263, 0
      %s266 = sadd.s32 %s265, 1
      %s267 = scalar_select %p264, %s265, %s266
      %p270 = pneg %p264
      %p271 = scmp.eq.s32.totalorder %s35, 1
      %p272 = por %p270, %p271
      %p273 = scmp.ne.s32.totalorder %s265, %s268
      %p274 = scmp.eq.s32.totalorder %s35, 0
      %p275 = por %p273, %p274
      %p276 = scmp.ne.s32.totalorder %s265, %s268
      %p277 = scmp.eq.s32.totalorder %s40, 1
      %p278 = por %p276, %p277
      %p279 = scmp.ne.s32.totalorder %s268, %s269
      %p280 = scmp.eq.s32.totalorder %s40, 0
      %p281 = por %p279, %p280
      %p282 = scmp.ne.s32.totalorder %s268, %s269
      %p283 = scmp.eq.s32.totalorder %s41, 1
      %p284 = por %p282, %p283
      %p286 = scmp.ne.s32.totalorder %s269, %s285
      %p287 = scmp.eq.s32.totalorder %s41, 0
      %p288 = por %p286, %p287
      %s289 = ssub.s32 %s43, %s50
      %p290 = scmp.eq.s32.totalorder %s289, 0
      %s292 = sadd.s32 %s291, 1
      %s293 = scalar_select %p290, %s291, %s292
      %p296 = pneg %p290
      %p297 = scmp.eq.s32.totalorder %s35, 1
      %p298 = por %p296, %p297
      %p299 = scmp.ne.s32.totalorder %s291, %s294
      %p300 = scmp.eq.s32.totalorder %s35, 0
      %p301 = por %p299, %p300
      %p302 = scmp.ne.s32.totalorder %s291, %s294
      %p303 = scmp.eq.s32.totalorder %s40, 1
      %p304 = por %p302, %p303
      %p305 = scmp.ne.s32.totalorder %s294, %s295
      %p306 = scmp.eq.s32.totalorder %s40, 0
      %p307 = por %p305, %p306
      %p308 = scmp.ne.s32.totalorder %s294, %s295
      %p309 = scmp.eq.s32.totalorder %s41, 1
      %p310 = por %p308, %p309
      %p312 = scmp.ne.s32.totalorder %s295, %s311
      %p313 = scmp.eq.s32.totalorder %s41, 0
      %p314 = por %p312, %p313
      %s315 = ssub.s32 %s43, %s50
      %p316 = scmp.eq.s32.totalorder %s315, 0
      %s318 = sadd.s32 %s317, 1
      %s319 = scalar_select %p316, %s317, %s318
      %p322 = pneg %p316
      %p323 = scmp.eq.s32.totalorder %s35, 1
      %p324 = por %p322, %p323
      %p325 = scmp.ne.s32.totalorder %s317, %s320
      %p326 = scmp.eq.s32.totalorder %s35, 0
      %p327 = por %p325, %p326
      %p328 = scmp.ne.s32.totalorder %s317, %s320
      %p329 = scmp.eq.s32.totalorder %s40, 1
      %p330 = por %p328, %p329
      %p331 = scmp.ne.s32.totalorder %s320, %s321
      %p332 = scmp.eq.s32.totalorder %s40, 0
      %p333 = por %p331, %p332
      %p334 = scmp.ne.s32.totalorder %s320, %s321
      %p335 = scmp.eq.s32.totalorder %s41, 1
      %p336 = por %p334, %p335
      %p338 = scmp.ne.s32.totalorder %s321, %s337
      %p339 = scmp.eq.s32.totalorder %s41, 0
      %p340 = por %p338, %p339
      %s341 = ssub.s32 %s43, %s50
      %p342 = scmp.eq.s32.totalorder %s341, 0
      %s344 = sadd.s32 %s343, 1
      %s345 = scalar_select %p342, %s343, %s344
      %p348 = pneg %p342
      %p349 = scmp.eq.s32.totalorder %s35, 1
      %p350 = por %p348, %p349
      %p351 = scmp.ne.s32.totalorder %s343, %s346
      %p352 = scmp.eq.s32.totalorder %s35, 0
      %p353 = por %p351, %p352
      %p354 = scmp.ne.s32.totalorder %s343, %s346
      %p355 = scmp.eq.s32.totalorder %s40, 1
      %p356 = por %p354, %p355
      %p357 = scmp.ne.s32.totalorder %s346, %s347
      %p358 = scmp.eq.s32.totalorder %s40, 0
      %p359 = por %p357, %p358
      %p360 = scmp.ne.s32.totalorder %s346, %s347
      %p361 = scmp.eq.s32.totalorder %s41, 1
      %p362 = por %p360, %p361
      %p364 = scmp.ne.s32.totalorder %s347, %s363
      %p365 = scmp.eq.s32.totalorder %s41, 0
      %p366 = por %p364, %p365
      %s367 = ssub.s32 %s42, %s54
      %p368 = scmp.eq.s32.totalorder %s367, 0
      %s370 = sadd.s32 %s369, 1
      %s371 = scalar_select %p368, %s369, %s370
      %p374 = pneg %p368
      %p375 = scmp.eq.s32.totalorder %s35, 1
      %p376 = por %p374, %p375
      %p377 = scmp.ne.s32.totalorder %s369, %s372
      %p378 = scmp.eq.s32.totalorder %s35, 0
      %p379 = por %p377, %p378
      %p380 = scmp.ne.s32.totalorder %s369, %s372
      %p381 = scmp.eq.s32.totalorder %s40, 1
      %p382 = por %p380, %p381
      %p383 = scmp.ne.s32.totalorder %s372, %s373
      %p384 = scmp.eq.s32.totalorder %s40, 0
      %p385 = por %p383, %p384
      %p386 = scmp.ne.s32.totalorder %s372, %s373
      %p387 = scmp.eq.s32.totalorder %s41, 1
      %p388 = por %p386, %p387
      %p390 = scmp.ne.s32.totalorder %s373, %s389
      %p391 = scmp.eq.s32.totalorder %s41, 0
      %p392 = por %p390, %p391
      %s393 = ssub.s32 %s43, %s50
      %s394 = ssub.s32 %s42, %s54
      %s395 = sor.u32 %s393, %s394
      %p396 = scmp.eq.s32.totalorder %s395, 0
      %s398 = sadd.s32 %s397, 1
      %s399 = scalar_select %p396, %s397, %s398
      %p402 = pneg %p396
      %p403 = scmp.eq.s32.totalorder %s35, 1
      %p404 = por %p402, %p403
      %p405 = scmp.ne.s32.totalorder %s397, %s400
      %p406 = scmp.eq.s32.totalorder %s35, 0
      %p407 = por %p405, %p406
      %p408 = scmp.ne.s32.totalorder %s397, %s400
      %p409 = scmp.eq.s32.totalorder %s40, 1
      %p410 = por %p408, %p409
      %p411 = scmp.ne.s32.totalorder %s400, %s401
      %p412 = scmp.eq.s32.totalorder %s40, 0
      %p413 = por %p411, %p412
      %p414 = scmp.ne.s32.totalorder %s400, %s401
      %p415 = scmp.eq.s32.totalorder %s41, 1
      %p416 = por %p414, %p415
      %p418 = scmp.ne.s32.totalorder %s401, %s417
      %p419 = scmp.eq.s32.totalorder %s41, 0
      %p420 = por %p418, %p419
      %s421 = ssub.s32 %s43, %s50
      %s422 = ssub.s32 %s42, %s54
      %s423 = sor.u32 %s421, %s422
      %p424 = scmp.eq.s32.totalorder %s423, 0
      %s426 = sadd.s32 %s425, 1
      %s427 = scalar_select %p424, %s425, %s426
      %p430 = pneg %p424
      %p431 = scmp.eq.s32.totalorder %s35, 1
      %p432 = por %p430, %p431
      %p433 = scmp.ne.s32.totalorder %s425, %s428
      %p434 = scmp.eq.s32.totalorder %s35, 0
      %p435 = por %p433, %p434
      %p436 = scmp.ne.s32.totalorder %s425, %s428
      %p437 = scmp.eq.s32.totalorder %s40, 1
      %p438 = por %p436, %p437
      %p439 = scmp.ne.s32.totalorder %s428, %s429
      %p440 = scmp.eq.s32.totalorder %s40, 0
      %p441 = por %p439, %p440
      %p442 = scmp.ne.s32.totalorder %s428, %s429
      %p443 = scmp.eq.s32.totalorder %s41, 1
      %p444 = por %p442, %p443
      %p446 = scmp.ne.s32.totalorder %s429, %s445
      %p447 = scmp.eq.s32.totalorder %s41, 0
      %p448 = por %p446, %p447
      %s449 = ssub.s32 %s42, %s54
      %p450 = scmp.eq.s32.totalorder %s449, 0
      %s452 = sadd.s32 %s451, 1
      %s453 = scalar_select %p450, %s451, %s452
      %p456 = pneg %p450
      %p457 = scmp.eq.s32.totalorder %s35, 1
      %p458 = por %p456, %p457
      %p459 = scmp.ne.s32.totalorder %s451, %s454
      %p460 = scmp.eq.s32.totalorder %s35, 0
      %p461 = por %p459, %p460
      %p462 = scmp.ne.s32.totalorder %s451, %s454
      %p463 = scmp.eq.s32.totalorder %s40, 1
      %p464 = por %p462, %p463
      %p465 = scmp.ne.s32.totalorder %s454, %s455
      %p466 = scmp.eq.s32.totalorder %s40, 0
      %p467 = por %p465, %p466
      %p468 = scmp.ne.s32.totalorder %s454, %s455
      %p469 = scmp.eq.s32.totalorder %s41, 1
      %p470 = por %p468, %p469
      %p472 = scmp.ne.s32.totalorder %s455, %s471
      %p473 = scmp.eq.s32.totalorder %s41, 0
      %p474 = por %p472, %p473
      %p475 = scmp.le.s32.totalorder 1, %s35
      %p476 = scmp.lt.s32.totalorder %s35, 3
      %p477 = pnand %p475, %p476
      %p478 = pneg %p477
      // Predicated region
      $region9: #{tpu_custom_call.1} parent=5 // pred_check
        _
      $region10: #{tpu_custom_call.1} parent=5 // pred_check_branch
        %480 = sbr.rel (%p477) target = $region12
      $region11: #{tpu_custom_call.1} parent=5 // pred_region
        %s481 = ssub.s32 %s35, 1
        // Predicated region
        $region13: #{tpu_custom_call.1} parent=11 // pred_check
          %p482 = pneg %p73
        $region14: #{tpu_custom_call.1} parent=11 // pred_check_branch
          %484 = sbr.rel (%p482) target = $region16
        $region15: #{tpu_custom_call.1} parent=11 // pred_region
          %s485 = smul.u32 2, %s44
          %s487 = ssub.s32 256, 256
          %488 = vsyncadd [#allocation3], %s487
          %s489 = smul.addr %s485, 128
          %s490 = scalar_lea.hbm %s0, %s489
          %s491 = sshll.u32 [#allocation2], 4
          %s492 = int_to_ptr.vmem [resolvable:$true] %s491
          %497 = dma.hbm_to_vmem [thread:$0]  %s490, 256, %s492, [#allocation3], 128, 128, 8
        $region16: #{tpu_custom_call.1} parent=11 // pred_fallthru
          _
        // Predicated region
        $region17: #{tpu_custom_call.1} parent=11 // pred_check
          %p498 = pneg %p99
        $region18: #{tpu_custom_call.1} parent=11 // pred_check_branch
          %500 = sbr.rel (%p498) target = $region20
        $region19: #{tpu_custom_call.1} parent=11 // pred_region
          %s501 = smul.u32 2, %s44
          %s503 = ssub.s32 256, 256
          %504 = vsyncadd [#allocation6], %s503
          %s505 = smul.addr %s501, 2
          %s506 = smul.addr %s505, 64
          %s507 = scalar_lea.hbm %s1, %s506
          %s508 = sshll.u32 [#allocation5], 4
          %s509 = int_to_ptr.vmem [resolvable:$true] %s508
          %514 = dma.hbm_to_vmem [thread:$0]  %s507, 256, %s509, [#allocation6], 64, 64, 4
        $region20: #{tpu_custom_call.1} parent=11 // pred_fallthru
          _
        // Predicated region
        $region21: #{tpu_custom_call.1} parent=11 // pred_check
          %p515 = pneg %p125
        $region22: #{tpu_custom_call.1} parent=11 // pred_check_branch
          %517 = sbr.rel (%p515) target = $region24
        $region23: #{tpu_custom_call.1} parent=11 // pred_region
          %s518 = smul.u32 2, %s44
          %s520 = ssub.s32 128, 128
          %521 = vsyncadd [#allocation6], %s520
          %s522 = smul.addr %s518, 64
          %s523 = scalar_lea.hbm %s2, %s522
          %s524 = sshll.u32 [#allocation7], 4
          %s525 = int_to_ptr.vmem [resolvable:$true] %s524
          %530 = dma.hbm_to_vmem [thread:$0]  %s523, 128, %s525, [#allocation6], 64, 64, 4
        $region24: #{tpu_custom_call.1} parent=11 // pred_fallthru
          _
      $region12: #{tpu_custom_call.1} parent=5 // pred_fallthru
        _
      %p531 = scmp.lt.s32.totalorder %s35, 2
      // Predicated region
      $region25: #{tpu_custom_call.1} parent=5 // pred_check
        %p532 = pneg %p531
      $region26: #{tpu_custom_call.1} parent=5 // pred_check_branch
        %534 = sbr.rel (%p532) target = $region28
      $region27: #{tpu_custom_call.1} parent=5 // pred_region
        // Predicated region
        $region29: #{tpu_custom_call.1} parent=27 // pred_check
          %p535 = pneg %p145
        $region30: #{tpu_custom_call.1} parent=27 // pred_check_branch
          %537 = sbr.rel (%p535) target = $region32
        $region31: #{tpu_custom_call.1} parent=27 // pred_region
          %p538 = scmp.lt.s32.totalorder %s43, 1
          %s539 = scalar_select %p538, %s43, 1
          %s540 = smul.addr %s539, 4
          %s541 = smul.addr %s540, 4
          %s542 = scalar_lea.vmem %s3, %s541
        $region32: #{tpu_custom_call.1} parent=27 // pred_fallthru
          _
        // Predicated region
        $region33: #{tpu_custom_call.1} parent=27 // pred_check
          %p543 = pneg %p171
        $region34: #{tpu_custom_call.1} parent=27 // pred_check_branch
          %545 = sbr.rel (%p543) target = $region36
        $region35: #{tpu_custom_call.1} parent=27 // pred_region
          %p546 = scmp.lt.s32.totalorder %s43, 1
          %s547 = scalar_select %p546, %s43, 1
          %s548 = smul.addr %s547, 4
          %s549 = smul.addr %s548, 4
          %s550 = scalar_lea.vmem %s4, %s549
        $region36: #{tpu_custom_call.1} parent=27 // pred_fallthru
          _
        // Predicated region
        $region37: #{tpu_custom_call.1} parent=27 // pred_check
          %p551 = pneg %p197
        $region38: #{tpu_custom_call.1} parent=27 // pred_check_branch
          %553 = sbr.rel (%p551) target = $region40
        $region39: #{tpu_custom_call.1} parent=27 // pred_region
          %p554 = scmp.lt.s32.totalorder %s43, 1
          %s555 = scalar_select %p554, %s43, 1
          %s556 = smul.addr %s555, 4
          %s557 = smul.addr %s556, 4
          %s558 = scalar_lea.vmem %s5, %s557
        $region40: #{tpu_custom_call.1} parent=27 // pred_fallthru
          _
        // Predicated region
        $region41: #{tpu_custom_call.1} parent=27 // pred_check
          %p559 = pneg %p223
        $region42: #{tpu_custom_call.1} parent=27 // pred_check_branch
          %561 = sbr.rel (%p559) target = $region44
        $region43: #{tpu_custom_call.1} parent=27 // pred_region
          %s562 = sand.u32 %s35, 1
          %s563 = scalar_lea.sflag [#allocation9], %s562
          %s564 = sand.u32 %s213, 1
          %s565 = smul.addr %s564, 16
          %s566 = scalar_lea.vmem [#allocation8], %s565
          %s568 = ssub.s32 256, 256
          %569 = vsyncadd %s563, %s568
          %s570 = smul.addr %s43, 4
          %s571 = smul.addr %s570, 64
          %s572 = scalar_lea.hbm %s6, %s571
          %s573 = sshll.u32 %s566, 4
          %s574 = int_to_ptr.vmem [resolvable:$true] %s573
          %579 = dma.hbm_to_vmem [thread:$0]  %s572, 256, %s574, %s563, 64, 64, 4
        $region44: #{tpu_custom_call.1} parent=27 // pred_fallthru
          _
        // Predicated region
        $region45: #{tpu_custom_call.1} parent=27 // pred_check
          %p580 = pneg %p249
        $region46: #{tpu_custom_call.1} parent=27 // pred_check_branch
          %582 = sbr.rel (%p580) target = $region48
        $region47: #{tpu_custom_call.1} parent=27 // pred_region
          %s583 = sand.u32 %s35, 1
          %s584 = scalar_lea.sflag [#allocation9], %s583
          %s585 = sand.u32 %s239, 1
          %s586 = smul.addr %s585, 16
          %s587 = scalar_lea.vmem [#allocation10], %s586
          %s589 = ssub.s32 256, 256
          %590 = vsyncadd %s584, %s589
          %s591 = smul.addr %s43, 4
          %s592 = smul.addr %s591, 64
          %s593 = scalar_lea.hbm %s7, %s592
          %s594 = sshll.u32 %s587, 4
          %s595 = int_to_ptr.vmem [resolvable:$true] %s594
          %600 = dma.hbm_to_vmem [thread:$0]  %s593, 256, %s595, %s584, 64, 64, 4
        $region48: #{tpu_custom_call.1} parent=27 // pred_fallthru
          _
        // Predicated region
        $region49: #{tpu_custom_call.1} parent=27 // pred_check
          %p601 = pneg %p275
        $region50: #{tpu_custom_call.1} parent=27 // pred_check_branch
          %603 = sbr.rel (%p601) target = $region52
        $region51: #{tpu_custom_call.1} parent=27 // pred_region
          %s604 = sand.u32 %s265, 1
          %s605 = scalar_lea.sflag [#allocation12], %s604
          %s606 = sand.u32 %s265, 1
          %s607 = smul.addr %s606, 16
          %s608 = scalar_lea.vmem [#allocation11], %s607
          %s610 = ssub.s32 256, 256
          %611 = vsyncadd %s605, %s610
          %s612 = smul.addr %s43, 4
          %s613 = smul.addr %s612, 64
          %s614 = scalar_lea.hbm %s8, %s613
          %s615 = sshll.u32 %s608, 4
          %s616 = int_to_ptr.vmem [resolvable:$true] %s615
          %621 = dma.hbm_to_vmem [thread:$0]  %s614, 256, %s616, %s605, 64, 64, 4
        $region52: #{tpu_custom_call.1} parent=27 // pred_fallthru
          _
        // Predicated region
        $region53: #{tpu_custom_call.1} parent=27 // pred_check
          %p622 = pneg %p301
        $region54: #{tpu_custom_call.1} parent=27 // pred_check_branch
          %624 = sbr.rel (%p622) target = $region56
        $region55: #{tpu_custom_call.1} parent=27 // pred_region
          %p625 = scmp.lt.s32.totalorder %s43, 1
          %s626 = scalar_select %p625, %s43, 1
          %s627 = smul.addr %s626, 8
          %s628 = smul.addr %s627, 4
          %s629 = scalar_lea.vmem %s9, %s628
        $region56: #{tpu_custom_call.1} parent=27 // pred_fallthru
          _
        // Predicated region
        $region57: #{tpu_custom_call.1} parent=27 // pred_check
          %p630 = pneg %p327
        $region58: #{tpu_custom_call.1} parent=27 // pred_check_branch
          %632 = sbr.rel (%p630) target = $region60
        $region59: #{tpu_custom_call.1} parent=27 // pred_region
          %p633 = scmp.lt.s32.totalorder %s43, 1
          %s634 = scalar_select %p633, %s43, 1
          %s635 = scalar_lea.vmem %s10, %s634
        $region60: #{tpu_custom_call.1} parent=27 // pred_fallthru
          _
        // Predicated region
        $region61: #{tpu_custom_call.1} parent=27 // pred_check
          %p636 = pneg %p353
        $region62: #{tpu_custom_call.1} parent=27 // pred_check_branch
          %638 = sbr.rel (%p636) target = $region64
        $region63: #{tpu_custom_call.1} parent=27 // pred_region
          %p639 = scmp.lt.s32.totalorder %s43, 1
          %s640 = scalar_select %p639, %s43, 1
          %s641 = smul.addr %s640, 8
          %s642 = scalar_lea.vmem %s11, %s641
        $region64: #{tpu_custom_call.1} parent=27 // pred_fallthru
          _
      $region28: #{tpu_custom_call.1} parent=5 // pred_fallthru
        _
      %p643 = scmp.le.s32.totalorder 1, %s35
      %p644 = scmp.lt.s32.totalorder %s35, 3
      %p645 = pnand %p643, %p644
      %p646 = pneg %p645
      // Predicated region
      $region65: #{tpu_custom_call.1} parent=5 // pred_check
        _
      $region66: #{tpu_custom_call.1} parent=5 // pred_check_branch
        %648 = sbr.rel (%p645) target = $region68
      $region67: #{tpu_custom_call.1} parent=5 // pred_region
        %s649 = ssub.s32 %s35, 1
        // Predicated region
        $region69: #{tpu_custom_call.1} parent=67 // pred_check
          %p650 = pneg %p73
        $region70: #{tpu_custom_call.1} parent=67 // pred_check_branch
          %652 = sbr.rel (%p650) target = $region72
        $region71: #{tpu_custom_call.1} parent=67 // pred_region
          %653 = dma.done [#allocation3], 256
        $region72: #{tpu_custom_call.1} parent=67 // pred_fallthru
          _
        // Predicated region
        $region73: #{tpu_custom_call.1} parent=67 // pred_check
          %p654 = pneg %p99
        $region74: #{tpu_custom_call.1} parent=67 // pred_check_branch
          %656 = sbr.rel (%p654) target = $region76
        $region75: #{tpu_custom_call.1} parent=67 // pred_region
          %657 = dma.done [#allocation6], 256
        $region76: #{tpu_custom_call.1} parent=67 // pred_fallthru
          _
        // Predicated region
        $region77: #{tpu_custom_call.1} parent=67 // pred_check
          %p658 = pneg %p125
        $region78: #{tpu_custom_call.1} parent=67 // pred_check_branch
          %660 = sbr.rel (%p658) target = $region80
        $region79: #{tpu_custom_call.1} parent=67 // pred_region
          %661 = dma.done [#allocation6], 128
        $region80: #{tpu_custom_call.1} parent=67 // pred_fallthru
          _
        %s662 = sand.u32 %s40, 1
        %s663 = scalar_lea.sflag [#allocation9], %s662
        %s664 = sand.u32 %s216, 1
        %s665 = smul.addr %s664, 16
        %s666 = scalar_lea.vmem [#allocation8], %s665
        // Predicated region
        $region81: #{tpu_custom_call.1} parent=67 // pred_check
          %p667 = pneg %p229
        $region82: #{tpu_custom_call.1} parent=67 // pred_check_branch
          %669 = sbr.rel (%p667) target = $region84
        $region83: #{tpu_custom_call.1} parent=67 // pred_region
          %670 = dma.done %s663, 256
        $region84: #{tpu_custom_call.1} parent=67 // pred_fallthru
          _
        %s671 = sand.u32 %s40, 1
        %s672 = scalar_lea.sflag [#allocation9], %s671
        %s673 = sand.u32 %s242, 1
        %s674 = smul.addr %s673, 16
        %s675 = scalar_lea.vmem [#allocation10], %s674
        // Predicated region
        $region85: #{tpu_custom_call.1} parent=67 // pred_check
          %p676 = pneg %p255
        $region86: #{tpu_custom_call.1} parent=67 // pred_check_branch
          %678 = sbr.rel (%p676) target = $region88
        $region87: #{tpu_custom_call.1} parent=67 // pred_region
          %679 = dma.done %s672, 256
        $region88: #{tpu_custom_call.1} parent=67 // pred_fallthru
          _
        %s680 = sand.u32 %s268, 1
        %s681 = scalar_lea.sflag [#allocation12], %s680
        %s682 = sand.u32 %s268, 1
        %s683 = smul.addr %s682, 16
        %s684 = scalar_lea.vmem [#allocation11], %s683
        // Predicated region
        $region89: #{tpu_custom_call.1} parent=67 // pred_check
          %p685 = pneg %p281
        $region90: #{tpu_custom_call.1} parent=67 // pred_check_branch
          %687 = sbr.rel (%p685) target = $region92
        $region91: #{tpu_custom_call.1} parent=67 // pred_region
          %688 = dma.done %s681, 256
        $region92: #{tpu_custom_call.1} parent=67 // pred_fallthru
          _
        %p689 = pneg %p73
        %p690 = pneg %p70
        %p691 = pneg %p99
        %p692 = pneg %p96
        %p693 = pneg %p125
        %p694 = pneg %p122
        %p695 = scmp.lt.s32.totalorder %s45, 1
        %s696 = scalar_select %p695, %s45, 1
        %s697 = smul.addr %s696, 4
        %s698 = smul.addr %s697, 4
        %s699 = scalar_lea.vmem %s3, %s698
        %p700 = pneg %p151
        %p701 = pneg %p148
        %p702 = scmp.lt.s32.totalorder %s45, 1
        %s703 = scalar_select %p702, %s45, 1
        %s704 = smul.addr %s703, 4
        %s705 = smul.addr %s704, 4
        %s706 = scalar_lea.vmem %s4, %s705
        %p707 = pneg %p177
        %p708 = pneg %p174
        %p709 = scmp.lt.s32.totalorder %s45, 1
        %s710 = scalar_select %p709, %s45, 1
        %s711 = smul.addr %s710, 4
        %s712 = smul.addr %s711, 4
        %s713 = scalar_lea.vmem %s5, %s712
        %p714 = pneg %p203
        %p715 = pneg %p200
        %s716 = sand.u32 %s40, 1
        %s717 = scalar_lea.sflag [#allocation9], %s716
        %s718 = sand.u32 %s216, 1
        %s719 = smul.addr %s718, 16
        %s720 = scalar_lea.vmem [#allocation8], %s719
        %p721 = pneg %p229
        %p722 = pneg %p226
        %s723 = sand.u32 %s40, 1
        %s724 = scalar_lea.sflag [#allocation9], %s723
        %s725 = sand.u32 %s242, 1
        %s726 = smul.addr %s725, 16
        %s727 = scalar_lea.vmem [#allocation10], %s726
        %p728 = pneg %p255
        %p729 = pneg %p252
        %s730 = sand.u32 %s268, 1
        %s731 = scalar_lea.sflag [#allocation12], %s730
        %s732 = sand.u32 %s268, 1
        %s733 = smul.addr %s732, 16
        %s734 = scalar_lea.vmem [#allocation11], %s733
        %p735 = pneg %p281
        %p736 = pneg %p278
        %p737 = scmp.lt.s32.totalorder %s45, 1
        %s738 = scalar_select %p737, %s45, 1
        %s739 = smul.addr %s738, 8
        %s740 = smul.addr %s739, 4
        %s741 = scalar_lea.vmem %s9, %s740
        %p742 = pneg %p307
        %p743 = pneg %p304
        %p744 = scmp.lt.s32.totalorder %s45, 1
        %s745 = scalar_select %p744, %s45, 1
        %s746 = scalar_lea.vmem %s10, %s745
        %p747 = pneg %p333
        %p748 = pneg %p330
        %p749 = scmp.lt.s32.totalorder %s45, 1
        %s750 = scalar_select %p749, %s45, 1
        %s751 = smul.addr %s750, 8
        %s752 = scalar_lea.vmem %s11, %s751
        %p753 = pneg %p359
        %p754 = pneg %p356
        %p755 = pneg %p385
        %p756 = pneg %p382
        %p757 = pneg %p413
        %p758 = pneg %p410
        %s759 = sand.u32 %s40, 1
        %s760 = scalar_lea.sflag [#allocation15], %s759
        %s761 = sand.u32 %s400, 1
        %s762 = smul.addr %s761, 16
        %s763 = scalar_lea.vmem [#allocation14], %s762
        %p764 = pneg %p441
        %p765 = pneg %p438
        %s766 = sand.u32 %s40, 1
        %s767 = scalar_lea.sflag [#allocation15], %s766
        %s768 = sand.u32 %s428, 1
        %s769 = smul.addr %s768, 16
        %s770 = scalar_lea.vmem [#allocation16], %s769
        %p771 = pneg %p467
        %p772 = pneg %p464
        %s773 = smul.u32 2, %s44
        %s774 = smul.u32 2, %s44
        %s775 = smul.u32 2, %s44
        %p776 = scmp.lt.s32.totalorder %s45, 1
        %s777 = scalar_select %p776, %s45, 1
        %s778 = smul.addr %s777, 4
        %s779 = smul.addr %s778, 4
        %s780 = scalar_lea.vmem %s3, %s779
        %p781 = scmp.lt.s32.totalorder %s45, 1
        %s782 = scalar_select %p781, %s45, 1
        %s783 = smul.addr %s782, 4
        %s784 = smul.addr %s783, 4
        %s785 = scalar_lea.vmem %s4, %s784
        %p786 = scmp.lt.s32.totalorder %s45, 1
        %s787 = scalar_select %p786, %s45, 1
        %s788 = smul.addr %s787, 4
        %s789 = smul.addr %s788, 4
        %s790 = scalar_lea.vmem %s5, %s789
        %p791 = scmp.lt.s32.totalorder %s45, 1
        %s792 = scalar_select %p791, %s45, 1
        %s793 = smul.addr %s792, 8
        %s794 = smul.addr %s793, 4
        %s795 = scalar_lea.vmem %s9, %s794
        %p796 = scmp.lt.s32.totalorder %s45, 1
        %s797 = scalar_select %p796, %s45, 1
        %s798 = scalar_lea.vmem %s10, %s797
        %p799 = scmp.lt.s32.totalorder %s45, 1
        %s800 = scalar_select %p799, %s45, 1
        %s801 = smul.addr %s800, 8
        %s802 = scalar_lea.vmem %s11, %s801
        %s803 = smul.u32 2, %s44
        %s804 = smul.u32 2, %s45
        %s805 = smul.u32 2, %s44
        %s806 = smul.u32 2, %s45
        %s807 = smul.u32 2, %s44
        %s808 = smul.u32 2, %s44
        %p812 = scmp.eq.s32.totalorder %s45, 0
        // Predicated region
        $region93: #{tpu_custom_call.1} parent=67 // pred_check
          %p813 = pneg %p812
        $region94: #{tpu_custom_call.1} parent=67 // pred_check_branch
          %815 = sbr.rel (%p813) target = $region96
        $region95: #{tpu_custom_call.1} parent=67 // pred_region
          %v816 = vld [vmem:[#allocation2] sm:$0xff]
          %v817 = vld [vmem:[#allocation2 + $0x8] sm:$0xff]
          %vm818 = vcmask 261120
          %819 = vst.msk [vmem:[#allocation13] sm:$0xff] %vm818, %v816
          %820 = vst.msk [vmem:[#allocation13 + $0x8] sm:$0xff] %vm818, %v817
        $region96: #{tpu_custom_call.1} parent=67 // pred_fallthru
          _
        %v821 = vld [vmem:[#allocation13] sm:$0xff]
        %v822 = vld [vmem:[#allocation13 + $0x8] sm:$0xff]
        %v823 = vld [vmem:[%s802] sm:$0xff]
        %v824 = vpack.c.bf16 %v822, %v821
        %v825 = vld [vmem:[%s780] sm:$0xf]
        %v826 = vld [vmem:[%s780 + $0x4] sm:$0xf]
        %v827 = vld [vmem:[%s780 + $0x8] sm:$0xf]
        %v828 = vld [vmem:[%s780 + $0xc] sm:$0xf]
        %v833 = vunpack.c.l.b16 %v825
        %v834 = vunpack.c.l.b16 %v826
        %v835 = vunpack.c.l.b16 %v827
        %v836 = vunpack.c.l.b16 %v828
        %v837 = vpack.c.b16 %v834, %v833
        %v838 = vpack.c.b16 %v836, %v835
        %vm841 = vcmask 261120
        %v843 = vsel %vm841, %v824, 0
        %845 = vmatprep.subr.bf16.mxu0 0
        %846 = vmatpush1.bf16.msra.mxu0 0
        %847 = vmatprep.subr.bf16.mxu0 0
        %848 = vmatpush1.bf16.msra.mxu0 0
        %849 = vmatprep.subr.bf16.mxu0 0
        %850 = vmatpush1.bf16.msra.mxu0 0
        %851 = vmatprep.subr.bf16.mxu0 0
        %852 = vmatpush1.bf16.msra.mxu0 0
        %853 = vmatprep.subr.bf16.mxu0 0
        %854 = vmatpush1.bf16.msra.mxu0 0
        %855 = vmatprep.subr.bf16.mxu0 0
        %856 = vmatpush1.bf16.msra.mxu0 0
        %857 = vmatprep.subr.bf16.mxu0 0
        %858 = vmatpush1.bf16.msra.mxu0 %v838
        %859 = vmatprep.subr.bf16.mxu0 0
        %860 = vmatpush1.bf16.msra.mxu0 %v837
        %861 = vmatprep.subr.bf16.mxu0 0
        %862 = vmatpush2.bf16.msra.mxu0 0
        %863 = vmatprep.subr.bf16.mxu0 0
        %864 = vmatpush2.bf16.msra.mxu0 0
        %865 = vmatprep.subr.bf16.mxu0 0
        %866 = vmatpush2.bf16.msra.mxu0 0
        %867 = vmatprep.subr.bf16.mxu0 0
        %868 = vmatpush2.bf16.msra.mxu0 0
        %869 = vmatprep.subr.bf16.mxu0 0
        %870 = vmatpush2.bf16.msra.mxu0 0
        %871 = vmatprep.subr.bf16.mxu0 0
        %872 = vmatpush2.bf16.msra.mxu0 0
        %873 = vmatprep.subr.bf16.mxu0 0
        %874 = vmatpush2.bf16.msra.mxu0 0
        %875 = vmatprep.subr.bf16.mxu0 0
        %876 = vmatpush2.bf16.msra.mxu0 0
        %877 = vmatprep.mubr.bf16.mxu0 0
        %878 = vmatmul.mubr.bf16.gmra.mxu0 %v843
        %v879 = vpop.f32.mrf.mxu0
        %v880 = vadd.f32 0.0, %v879
        %v881 = vpop.f32.mrf.mxu0
        %v882 = vpop.f32.mrf.mxu0
        %v883 = vadd.f32 0.0, %v882
        %v884 = vpop.f32.mrf.mxu0
        %885 = vdwg.mxu0
        %888 = vrot.lane.b32.xlu0 %v880, 112
        %v889 = vpop.permute.xlu0 %888
        %890 = vrot.lane.b32.xlu0 %v883, 112
        %v891 = vpop.permute.xlu0 %890
        %v894 = vpack.c.bf16 %v880, %v880
        %v895 = vpack.c.bf16 %v883, %v883
        %v896 = vpack.c.bf16 %v889, %v889
        %v897 = vpack.c.bf16 %v891, %v891
        %899 = vrot.lane.b32.xlu0 %v894, 96
        %v900 = vpop.permute.xlu0 %899
        %vm901 = vcmask 130048
        %v903 = vsel %vm901, %v894, 0
        %v906 = vsel %vm901, %v900, 0
        %908 = vmatprep.subr.bf16.mxu0 0
        %909 = vmatpush1.bf16.xpose.msra.mxu0 0
        %910 = vmatprep.subr.bf16.mxu0 0
        %911 = vmatpush1.bf16.xpose.msra.mxu0 0
        %912 = vmatprep.subr.bf16.mxu0 0
        %913 = vmatpush1.bf16.xpose.msra.mxu0 0
        %914 = vmatprep.subr.bf16.mxu0 0
        %915 = vmatpush1.bf16.xpose.msra.mxu0 0
        %916 = vmatprep.subr.bf16.mxu0 0
        %917 = vmatpush1.bf16.xpose.msra.mxu0 0
        %918 = vmatprep.subr.bf16.mxu0 0
        %919 = vmatpush1.bf16.xpose.msra.mxu0 0
        %920 = vmatprep.subr.bf16.mxu0 0
        %921 = vmatpush1.bf16.xpose.msra.mxu0 0
        %922 = vmatprep.subr.bf16.mxu0 0
        %923 = vmatpush1.bf16.xpose.msra.mxu0 %v906
        %924 = vmatprep.subr.bf16.mxu0 0
        %925 = vmatpush2.bf16.xpose.msra.mxu0 0
        %926 = vmatprep.subr.bf16.mxu0 0
        %927 = vmatpush2.bf16.xpose.msra.mxu0 0
        %928 = vmatprep.subr.bf16.mxu0 0
        %929 = vmatpush2.bf16.xpose.msra.mxu0 0
        %930 = vmatprep.subr.bf16.mxu0 0
        %931 = vmatpush2.bf16.xpose.msra.mxu0 0
        %932 = vmatprep.subr.bf16.mxu0 0
        %933 = vmatpush2.bf16.xpose.msra.mxu0 0
        %934 = vmatprep.subr.bf16.mxu0 0
        %935 = vmatpush2.bf16.xpose.msra.mxu0 0
        %936 = vmatprep.subr.bf16.mxu0 0
        %937 = vmatpush2.bf16.xpose.msra.mxu0 0
        %938 = vmatprep.subr.bf16.mxu0 0
        %939 = vmatpush2.bf16.xpose.msra.mxu0 0
        %940 = vmatprep.mubr.bf16.mxu0 0
        %941 = vmatmul.mubr.bf16.gmra.mxu0 %v903
        %v942 = vpop.f32.mrf.mxu0
        %v943 = vadd.f32 0.0, %v942
        %v944 = vpop.f32.mrf.mxu0
        %v945 = vpop.f32.mrf.mxu0
        %v946 = vpop.f32.mrf.mxu0
        %947 = vdwg.mxu0
        %949 = vrot.lane.b32.xlu0 %v895, 96
        %v950 = vpop.permute.xlu0 %949
        %v952 = vsel %vm901, %v895, 0
        %v955 = vsel %vm901, %v950, 0
        %957 = vmatprep.subr.bf16.mxu0 0
        %958 = vmatpush1.bf16.xpose.msra.mxu0 0
        %959 = vmatprep.subr.bf16.mxu0 0
        %960 = vmatpush1.bf16.xpose.msra.mxu0 0
        %961 = vmatprep.subr.bf16.mxu0 0
        %962 = vmatpush1.bf16.xpose.msra.mxu0 0
        %963 = vmatprep.subr.bf16.mxu0 0
        %964 = vmatpush1.bf16.xpose.msra.mxu0 0
        %965 = vmatprep.subr.bf16.mxu0 0
        %966 = vmatpush1.bf16.xpose.msra.mxu0 0
        %967 = vmatprep.subr.bf16.mxu0 0
        %968 = vmatpush1.bf16.xpose.msra.mxu0 0
        %969 = vmatprep.subr.bf16.mxu0 0
        %970 = vmatpush1.bf16.xpose.msra.mxu0 0
        %971 = vmatprep.subr.bf16.mxu0 0
        %972 = vmatpush1.bf16.xpose.msra.mxu0 %v955
        %973 = vmatprep.subr.bf16.mxu0 0
        %974 = vmatpush2.bf16.xpose.msra.mxu0 0
        %975 = vmatprep.subr.bf16.mxu0 0
        %976 = vmatpush2.bf16.xpose.msra.mxu0 0
        %977 = vmatprep.subr.bf16.mxu0 0
        %978 = vmatpush2.bf16.xpose.msra.mxu0 0
        %979 = vmatprep.subr.bf16.mxu0 0
        %980 = vmatpush2.bf16.xpose.msra.mxu0 0
        %981 = vmatprep.subr.bf16.mxu0 0
        %982 = vmatpush2.bf16.xpose.msra.mxu0 0
        %983 = vmatprep.subr.bf16.mxu0 0
        %984 = vmatpush2.bf16.xpose.msra.mxu0 0
        %985 = vmatprep.subr.bf16.mxu0 0
        %986 = vmatpush2.bf16.xpose.msra.mxu0 0
        %987 = vmatprep.subr.bf16.mxu0 0
        %988 = vmatpush2.bf16.xpose.msra.mxu0 0
        %989 = vmatprep.mubr.bf16.mxu0 0
        %990 = vmatmul.mubr.bf16.gmra.mxu0 %v952
        %v991 = vpop.f32.mrf.mxu0
        %v992 = vadd.f32 0.0, %v991
        %v993 = vpop.f32.mrf.mxu0
        %v994 = vpop.f32.mrf.mxu0
        %v995 = vpop.f32.mrf.mxu0
        %996 = vdwg.mxu0
        %998 = vrot.lane.b32.xlu0 %v896, 96
        %v999 = vpop.permute.xlu0 %998
        %v1001 = vsel %vm901, %v896, 0
        %v1004 = vsel %vm901, %v999, 0
        %1006 = vmatprep.subr.bf16.mxu0 0
        %1007 = vmatpush1.bf16.xpose.msra.mxu0 0
        %1008 = vmatprep.subr.bf16.mxu0 0
        %1009 = vmatpush1.bf16.xpose.msra.mxu0 0
        %1010 = vmatprep.subr.bf16.mxu0 0
        %1011 = vmatpush1.bf16.xpose.msra.mxu0 0
        %1012 = vmatprep.subr.bf16.mxu0 0
        %1013 = vmatpush1.bf16.xpose.msra.mxu0 0
        %1014 = vmatprep.subr.bf16.mxu0 0
        %1015 = vmatpush1.bf16.xpose.msra.mxu0 0
        %1016 = vmatprep.subr.bf16.mxu0 0
        %1017 = vmatpush1.bf16.xpose.msra.mxu0 0
        %1018 = vmatprep.subr.bf16.mxu0 0
        %1019 = vmatpush1.bf16.xpose.msra.mxu0 0
        %1020 = vmatprep.subr.bf16.mxu0 0
        %1021 = vmatpush1.bf16.xpose.msra.mxu0 %v1004
        %1022 = vmatprep.subr.bf16.mxu0 0
        %1023 = vmatpush2.bf16.xpose.msra.mxu0 0
        %1024 = vmatprep.subr.bf16.mxu0 0
        %1025 = vmatpush2.bf16.xpose.msra.mxu0 0
        %1026 = vmatprep.subr.bf16.mxu0 0
        %1027 = vmatpush2.bf16.xpose.msra.mxu0 0
        %1028 = vmatprep.subr.bf16.mxu0 0
        %1029 = vmatpush2.bf16.xpose.msra.mxu0 0
        %1030 = vmatprep.subr.bf16.mxu0 0
        %1031 = vmatpush2.bf16.xpose.msra.mxu0 0
        %1032 = vmatprep.subr.bf16.mxu0 0
        %1033 = vmatpush2.bf16.xpose.msra.mxu0 0
        %1034 = vmatprep.subr.bf16.mxu0 0
        %1035 = vmatpush2.bf16.xpose.msra.mxu0 0
        %1036 = vmatprep.subr.bf16.mxu0 0
        %1037 = vmatpush2.bf16.xpose.msra.mxu0 0
        %1038 = vmatprep.mubr.bf16.mxu0 0
        %1039 = vmatmul.mubr.bf16.gmra.mxu0 %v1001
        %v1040 = vpop.f32.mrf.mxu0
        %v1041 = vadd.f32 0.0, %v1040
        %v1042 = vpop.f32.mrf.mxu0
        %v1043 = vpop.f32.mrf.mxu0
        %v1044 = vpop.f32.mrf.mxu0
        %1045 = vdwg.mxu0
        %1047 = vrot.lane.b32.xlu0 %v897, 96
        %v1048 = vpop.permute.xlu0 %1047
        %v1050 = vsel %vm901, %v897, 0
        %v1053 = vsel %vm901, %v1048, 0
        %1055 = vmatprep.subr.bf16.mxu0 0
        %1056 = vmatpush1.bf16.xpose.msra.mxu0 0
        %1057 = vmatprep.subr.bf16.mxu0 0
        %1058 = vmatpush1.bf16.xpose.msra.mxu0 0
        %1059 = vmatprep.subr.bf16.mxu0 0
        %1060 = vmatpush1.bf16.xpose.msra.mxu0 0
        %1061 = vmatprep.subr.bf16.mxu0 0
        %1062 = vmatpush1.bf16.xpose.msra.mxu0 0
        %1063 = vmatprep.subr.bf16.mxu0 0
        %1064 = vmatpush1.bf16.xpose.msra.mxu0 0
        %1065 = vmatprep.subr.bf16.mxu0 0
        %1066 = vmatpush1.bf16.xpose.msra.mxu0 0
        %1067 = vmatprep.subr.bf16.mxu0 0
        %1068 = vmatpush1.bf16.xpose.msra.mxu0 0
        %1069 = vmatprep.subr.bf16.mxu0 0
        %1070 = vmatpush1.bf16.xpose.msra.mxu0 %v1053
        %1071 = vmatprep.subr.bf16.mxu0 0
        %1072 = vmatpush2.bf16.xpose.msra.mxu0 0
        %1073 = vmatprep.subr.bf16.mxu0 0
        %1074 = vmatpush2.bf16.xpose.msra.mxu0 0
        %1075 = vmatprep.subr.bf16.mxu0 0
        %1076 = vmatpush2.bf16.xpose.msra.mxu0 0
        %1077 = vmatprep.subr.bf16.mxu0 0
        %1078 = vmatpush2.bf16.xpose.msra.mxu0 0
        %1079 = vmatprep.subr.bf16.mxu0 0
        %1080 = vmatpush2.bf16.xpose.msra.mxu0 0
        %1081 = vmatprep.subr.bf16.mxu0 0
        %1082 = vmatpush2.bf16.xpose.msra.mxu0 0
        %1083 = vmatprep.subr.bf16.mxu0 0
        %1084 = vmatpush2.bf16.xpose.msra.mxu0 0
        %1085 = vmatprep.subr.bf16.mxu0 0
        %1086 = vmatpush2.bf16.xpose.msra.mxu0 0
        %1087 = vmatprep.mubr.bf16.mxu0 0
        %1088 = vmatmul.mubr.bf16.gmra.mxu0 %v1050
        %v1089 = vpop.f32.mrf.mxu0
        %v1090 = vadd.f32 0.0, %v1089
        %v1091 = vpop.f32.mrf.mxu0
        %v1092 = vpop.f32.mrf.mxu0
        %v1093 = vpop.f32.mrf.mxu0
        %1094 = vdwg.mxu0
        %vm1095 = vcmask 64512
        %v1096 = vsel %vm1095, %v943, -inf
        %1097 = vmax.xlane.f32.xlu0 %v1096
        %v1098 = vpop.xlane.xlu0 %1097
        %v1099 = vsel %vm1095, %v992, -inf
        %1100 = vmax.xlane.f32.xlu0 %v1099
        %v1101 = vpop.xlane.xlu0 %1100
        %v1102 = vsel %vm1095, %v1041, -inf
        %1103 = vmax.xlane.f32.xlu0 %v1102
        %v1104 = vpop.xlane.xlu0 %1103
        %v1105 = vsel %vm1095, %v1090, -inf
        %1106 = vmax.xlane.f32.xlu0 %v1105
        %v1107 = vpop.xlane.xlu0 %1106
        %v1108 = vsub.f32 %v943, %v1098
        %v1109 = vsub.f32 %v992, %v1101
        %v1110 = vsub.f32 %v1041, %v1104
        %v1111 = vsub.f32 %v1090, %v1107
        %v1112 = vmul.f32 %v1108, 1.442695
        %v1113 = vpow.pop %v1112
        %v1114 = vmul.f32 %v1109, 1.442695
        %v1115 = vpow.pop %v1114
        %v1116 = vmul.f32 %v1110, 1.442695
        %v1117 = vpow.pop %v1116
        %v1118 = vmul.f32 %v1111, 1.442695
        %v1119 = vpow.pop %v1118
        %v1120 = vsel %vm1095, %v1113, 0.0
        %1121 = vadd.xlane.f32.xlu0 %v1120
        %v1122 = vpop.xlane.xlu0 %1121
        %v1123 = vsel %vm1095, %v1115, 0.0
        %1124 = vadd.xlane.f32.xlu0 %v1123
        %v1125 = vpop.xlane.xlu0 %1124
        %v1126 = vsel %vm1095, %v1117, 0.0
        %1127 = vadd.xlane.f32.xlu0 %v1126
        %v1128 = vpop.xlane.xlu0 %1127
        %v1129 = vsel %vm1095, %v1119, 0.0
        %1130 = vadd.xlane.f32.xlu0 %v1129
        %v1131 = vpop.xlane.xlu0 %1130
        %v1132 = vrcp.pop %v1122
        %v1133 = vmul.f32 %v1113, %v1132
        %v1134 = vrcp.pop %v1125
        %v1135 = vmul.f32 %v1115, %v1134
        %v1136 = vrcp.pop %v1128
        %v1137 = vmul.f32 %v1117, %v1136
        %v1138 = vrcp.pop %v1131
        %v1139 = vmul.f32 %v1119, %v1138
        %v1140 = vpack.c.bf16 %v1133, %v1133
        %v1141 = vpack.c.bf16 %v1135, %v1135
        %v1142 = vpack.c.bf16 %v1137, %v1137
        %v1143 = vpack.c.bf16 %v1139, %v1139
        %vm1144 = vcmask 60416
        %1145 = vst.msk [vmem:[%s763] sm:$0xf] %vm1144, %v1140
        %1146 = vst.msk [vmem:[%s763 + $0x4] sm:$0xf] %vm1144, %v1141
        %1147 = vst.msk [vmem:[%s763 + $0x8] sm:$0xf] %vm1144, %v1142
        %1148 = vst.msk [vmem:[%s763 + $0xc] sm:$0xf] %vm1144, %v1143
        %1149 = vrot.lane.b32.xlu0 %v894, 64
        %v1150 = vpop.permute.xlu0 %1149
        %v1152 = vsel %vm1095, %v1140, 0
        %vm1154 = vcmask 1043456
        %v1156 = vsel %vm1154, %v1150, 0
        %1158 = vmatprep.subr.bf16.mxu0 0
        %1159 = vmatpush1.bf16.msra.mxu0 0
        %1160 = vmatprep.subr.bf16.mxu0 0
        %1161 = vmatpush1.bf16.msra.mxu0 0
        %1162 = vmatprep.subr.bf16.mxu0 0
        %1163 = vmatpush1.bf16.msra.mxu0 0
        %1164 = vmatprep.subr.bf16.mxu0 0
        %1165 = vmatpush1.bf16.msra.mxu0 0
        %1166 = vmatprep.subr.bf16.mxu0 0
        %1167 = vmatpush1.bf16.msra.mxu0 0
        %1168 = vmatprep.subr.bf16.mxu0 0
        %1169 = vmatpush1.bf16.msra.mxu0 0
        %1170 = vmatprep.subr.bf16.mxu0 0
        %1171 = vmatpush1.bf16.msra.mxu0 0
        %1172 = vmatprep.subr.bf16.mxu0 0
        %1173 = vmatpush1.bf16.msra.mxu0 %v1156
        %1174 = vmatprep.subr.bf16.mxu0 0
        %1175 = vmatpush2.bf16.msra.mxu0 0
        %1176 = vmatprep.subr.bf16.mxu0 0
        %1177 = vmatpush2.bf16.msra.mxu0 0
        %1178 = vmatprep.subr.bf16.mxu0 0
        %1179 = vmatpush2.bf16.msra.mxu0 0
        %1180 = vmatprep.subr.bf16.mxu0 0
        %1181 = vmatpush2.bf16.msra.mxu0 0
        %1182 = vmatprep.subr.bf16.mxu0 0
        %1183 = vmatpush2.bf16.msra.mxu0 0
        %1184 = vmatprep.subr.bf16.mxu0 0
        %1185 = vmatpush2.bf16.msra.mxu0 0
        %1186 = vmatprep.subr.bf16.mxu0 0
        %1187 = vmatpush2.bf16.msra.mxu0 0
        %1188 = vmatprep.subr.bf16.mxu0 0
        %1189 = vmatpush2.bf16.msra.mxu0 0
        %1190 = vmatprep.mubr.bf16.mxu0 0
        %1191 = vmatmul.mubr.bf16.gmra.mxu0 %v1152
        %v1192 = vpop.f32.mrf.mxu0
        %v1193 = vadd.f32 0.0, %v1192
        %v1194 = vpop.f32.mrf.mxu0
        %v1195 = vpop.f32.mrf.mxu0
        %v1196 = vpop.f32.mrf.mxu0
        %1197 = vdwg.mxu0
        %1198 = vrot.lane.b32.xlu0 %v895, 64
        %v1199 = vpop.permute.xlu0 %1198
        %v1201 = vsel %vm1095, %v1141, 0
        %v1204 = vsel %vm1154, %v1199, 0
        %1206 = vmatprep.subr.bf16.mxu0 0
        %1207 = vmatpush1.bf16.msra.mxu0 0
        %1208 = vmatprep.subr.bf16.mxu0 0
        %1209 = vmatpush1.bf16.msra.mxu0 0
        %1210 = vmatprep.subr.bf16.mxu0 0
        %1211 = vmatpush1.bf16.msra.mxu0 0
        %1212 = vmatprep.subr.bf16.mxu0 0
        %1213 = vmatpush1.bf16.msra.mxu0 0
        %1214 = vmatprep.subr.bf16.mxu0 0
        %1215 = vmatpush1.bf16.msra.mxu0 0
        %1216 = vmatprep.subr.bf16.mxu0 0
        %1217 = vmatpush1.bf16.msra.mxu0 0
        %1218 = vmatprep.subr.bf16.mxu0 0
        %1219 = vmatpush1.bf16.msra.mxu0 0
        %1220 = vmatprep.subr.bf16.mxu0 0
        %1221 = vmatpush1.bf16.msra.mxu0 %v1204
        %1222 = vmatprep.subr.bf16.mxu0 0
        %1223 = vmatpush2.bf16.msra.mxu0 0
        %1224 = vmatprep.subr.bf16.mxu0 0
        %1225 = vmatpush2.bf16.msra.mxu0 0
        %1226 = vmatprep.subr.bf16.mxu0 0
        %1227 = vmatpush2.bf16.msra.mxu0 0
        %1228 = vmatprep.subr.bf16.mxu0 0
        %1229 = vmatpush2.bf16.msra.mxu0 0
        %1230 = vmatprep.subr.bf16.mxu0 0
        %1231 = vmatpush2.bf16.msra.mxu0 0
        %1232 = vmatprep.subr.bf16.mxu0 0
        %1233 = vmatpush2.bf16.msra.mxu0 0
        %1234 = vmatprep.subr.bf16.mxu0 0
        %1235 = vmatpush2.bf16.msra.mxu0 0
        %1236 = vmatprep.subr.bf16.mxu0 0
        %1237 = vmatpush2.bf16.msra.mxu0 0
        %1238 = vmatprep.mubr.bf16.mxu0 0
        %1239 = vmatmul.mubr.bf16.gmra.mxu0 %v1201
        %v1240 = vpop.f32.mrf.mxu0
        %v1241 = vadd.f32 0.0, %v1240
        %v1242 = vpop.f32.mrf.mxu0
        %v1243 = vpop.f32.mrf.mxu0
        %v1244 = vpop.f32.mrf.mxu0
        %1245 = vdwg.mxu0
        %1246 = vrot.lane.b32.xlu0 %v896, 64
        %v1247 = vpop.permute.xlu0 %1246
        %v1249 = vsel %vm1095, %v1142, 0
        %v1252 = vsel %vm1154, %v1247, 0
        %1254 = vmatprep.subr.bf16.mxu0 0
        %1255 = vmatpush1.bf16.msra.mxu0 0
        %1256 = vmatprep.subr.bf16.mxu0 0
        %1257 = vmatpush1.bf16.msra.mxu0 0
        %1258 = vmatprep.subr.bf16.mxu0 0
        %1259 = vmatpush1.bf16.msra.mxu0 0
        %1260 = vmatprep.subr.bf16.mxu0 0
        %1261 = vmatpush1.bf16.msra.mxu0 0
        %1262 = vmatprep.subr.bf16.mxu0 0
        %1263 = vmatpush1.bf16.msra.mxu0 0
        %1264 = vmatprep.subr.bf16.mxu0 0
        %1265 = vmatpush1.bf16.msra.mxu0 0
        %1266 = vmatprep.subr.bf16.mxu0 0
        %1267 = vmatpush1.bf16.msra.mxu0 0
        %1268 = vmatprep.subr.bf16.mxu0 0
        %1269 = vmatpush1.bf16.msra.mxu0 %v1252
        %1270 = vmatprep.subr.bf16.mxu0 0
        %1271 = vmatpush2.bf16.msra.mxu0 0
        %1272 = vmatprep.subr.bf16.mxu0 0
        %1273 = vmatpush2.bf16.msra.mxu0 0
        %1274 = vmatprep.subr.bf16.mxu0 0
        %1275 = vmatpush2.bf16.msra.mxu0 0
        %1276 = vmatprep.subr.bf16.mxu0 0
        %1277 = vmatpush2.bf16.msra.mxu0 0
        %1278 = vmatprep.subr.bf16.mxu0 0
        %1279 = vmatpush2.bf16.msra.mxu0 0
        %1280 = vmatprep.subr.bf16.mxu0 0
        %1281 = vmatpush2.bf16.msra.mxu0 0
        %1282 = vmatprep.subr.bf16.mxu0 0
        %1283 = vmatpush2.bf16.msra.mxu0 0
        %1284 = vmatprep.subr.bf16.mxu0 0
        %1285 = vmatpush2.bf16.msra.mxu0 0
        %1286 = vmatprep.mubr.bf16.mxu0 0
        %1287 = vmatmul.mubr.bf16.gmra.mxu0 %v1249
        %v1288 = vpop.f32.mrf.mxu0
        %v1289 = vadd.f32 0.0, %v1288
        %v1290 = vpop.f32.mrf.mxu0
        %v1291 = vpop.f32.mrf.mxu0
        %v1292 = vpop.f32.mrf.mxu0
        %1293 = vdwg.mxu0
        %1294 = vrot.lane.b32.xlu0 %v897, 64
        %v1295 = vpop.permute.xlu0 %1294
        %v1297 = vsel %vm1095, %v1143, 0
        %v1300 = vsel %vm1154, %v1295, 0
        %1302 = vmatprep.subr.bf16.mxu0 0
        %1303 = vmatpush1.bf16.msra.mxu0 0
        %1304 = vmatprep.subr.bf16.mxu0 0
        %1305 = vmatpush1.bf16.msra.mxu0 0
        %1306 = vmatprep.subr.bf16.mxu0 0
        %1307 = vmatpush1.bf16.msra.mxu0 0
        %1308 = vmatprep.subr.bf16.mxu0 0
        %1309 = vmatpush1.bf16.msra.mxu0 0
        %1310 = vmatprep.subr.bf16.mxu0 0
        %1311 = vmatpush1.bf16.msra.mxu0 0
        %1312 = vmatprep.subr.bf16.mxu0 0
        %1313 = vmatpush1.bf16.msra.mxu0 0
        %1314 = vmatprep.subr.bf16.mxu0 0
        %1315 = vmatpush1.bf16.msra.mxu0 0
        %1316 = vmatprep.subr.bf16.mxu0 0
        %1317 = vmatpush1.bf16.msra.mxu0 %v1300
        %1318 = vmatprep.subr.bf16.mxu0 0
        %1319 = vmatpush2.bf16.msra.mxu0 0
        %1320 = vmatprep.subr.bf16.mxu0 0
        %1321 = vmatpush2.bf16.msra.mxu0 0
        %1322 = vmatprep.subr.bf16.mxu0 0
        %1323 = vmatpush2.bf16.msra.mxu0 0
        %1324 = vmatprep.subr.bf16.mxu0 0
        %1325 = vmatpush2.bf16.msra.mxu0 0
        %1326 = vmatprep.subr.bf16.mxu0 0
        %1327 = vmatpush2.bf16.msra.mxu0 0
        %1328 = vmatprep.subr.bf16.mxu0 0
        %1329 = vmatpush2.bf16.msra.mxu0 0
        %1330 = vmatprep.subr.bf16.mxu0 0
        %1331 = vmatpush2.bf16.msra.mxu0 0
        %1332 = vmatprep.subr.bf16.mxu0 0
        %1333 = vmatpush2.bf16.msra.mxu0 0
        %1334 = vmatprep.mubr.bf16.mxu0 0
        %1335 = vmatmul.mubr.bf16.gmra.mxu0 %v1297
        %v1336 = vpop.f32.mrf.mxu0
        %v1337 = vadd.f32 0.0, %v1336
        %v1338 = vpop.f32.mrf.mxu0
        %v1339 = vpop.f32.mrf.mxu0
        %v1340 = vpop.f32.mrf.mxu0
        %1341 = vdwg.mxu0
        %1344 = vrot.lane.b32.xlu0 %v1289, 16
        %v1345 = vpop.permute.xlu0 %1344
        %1346 = vrot.lane.b32.xlu0 %v1337, 16
        %v1347 = vpop.permute.xlu0 %1346
        %v1350 = vsel %vm901, %v1193, %v1345
        %v1351 = vsel %vm901, %v1241, %v1347
        %v1352 = vpack.c.bf16 %v1351, %v1350
        %v1353 = vld [vmem:[%s785] sm:$0xf]
        %v1354 = vld [vmem:[%s785 + $0x4] sm:$0xf]
        %v1355 = vld [vmem:[%s785 + $0x8] sm:$0xf]
        %v1356 = vld [vmem:[%s785 + $0xc] sm:$0xf]
        %v1361 = vunpack.c.l.b16 %v1353
        %v1362 = vunpack.c.l.b16 %v1354
        %v1363 = vunpack.c.l.b16 %v1355
        %v1364 = vunpack.c.l.b16 %v1356
        %v1365 = vpack.c.b16 %v1362, %v1361
        %v1366 = vpack.c.b16 %v1364, %v1363
        %v1370 = vsel %vm841, %v1352, 0
        %1372 = vmatprep.subr.bf16.mxu0 0
        %1373 = vmatpush1.bf16.msra.mxu0 0
        %1374 = vmatprep.subr.bf16.mxu0 0
        %1375 = vmatpush1.bf16.msra.mxu0 0
        %1376 = vmatprep.subr.bf16.mxu0 0
        %1377 = vmatpush1.bf16.msra.mxu0 0
        %1378 = vmatprep.subr.bf16.mxu0 0
        %1379 = vmatpush1.bf16.msra.mxu0 0
        %1380 = vmatprep.subr.bf16.mxu0 0
        %1381 = vmatpush1.bf16.msra.mxu0 0
        %1382 = vmatprep.subr.bf16.mxu0 0
        %1383 = vmatpush1.bf16.msra.mxu0 0
        %1384 = vmatprep.subr.bf16.mxu0 0
        %1385 = vmatpush1.bf16.msra.mxu0 %v1366
        %1386 = vmatprep.subr.bf16.mxu0 0
        %1387 = vmatpush1.bf16.msra.mxu0 %v1365
        %1388 = vmatprep.subr.bf16.mxu0 0
        %1389 = vmatpush2.bf16.msra.mxu0 0
        %1390 = vmatprep.subr.bf16.mxu0 0
        %1391 = vmatpush2.bf16.msra.mxu0 0
        %1392 = vmatprep.subr.bf16.mxu0 0
        %1393 = vmatpush2.bf16.msra.mxu0 0
        %1394 = vmatprep.subr.bf16.mxu0 0
        %1395 = vmatpush2.bf16.msra.mxu0 0
        %1396 = vmatprep.subr.bf16.mxu0 0
        %1397 = vmatpush2.bf16.msra.mxu0 0
        %1398 = vmatprep.subr.bf16.mxu0 0
        %1399 = vmatpush2.bf16.msra.mxu0 0
        %1400 = vmatprep.subr.bf16.mxu0 0
        %1401 = vmatpush2.bf16.msra.mxu0 0
        %1402 = vmatprep.subr.bf16.mxu0 0
        %1403 = vmatpush2.bf16.msra.mxu0 0
        %1404 = vmatprep.mubr.bf16.mxu0 0
        %1405 = vmatmul.mubr.bf16.gmra.mxu0 %v1370
        %v1406 = vpop.f32.mrf.mxu0
        %v1407 = vadd.f32 %v821, %v1406
        %v1408 = vpop.f32.mrf.mxu0
        %v1409 = vpop.f32.mrf.mxu0
        %v1410 = vadd.f32 %v822, %v1409
        %v1411 = vpop.f32.mrf.mxu0
        %1412 = vdwg.mxu0
        %v1413 = vsel %vm841, %v1407, 0.0
        %1414 = vadd.xlane.f32.xlu0 %v1413
        %v1415 = vpop.xlane.xlu0 %1414
        %v1416 = vsel %vm841, %v1410, 0.0
        %1417 = vadd.xlane.f32.xlu0 %v1416
        %v1418 = vpop.xlane.xlu0 %1417
        %v1419 = vrcp.pop 32.0
        %v1420 = vmul.f32 %v1415, %v1419
        %v1421 = vmul.f32 %v1418, %v1419
        %v1422 = vsub.f32 %v1407, %v1420
        %v1423 = vsub.f32 %v1410, %v1421
        %v1424 = vmul.f32 %v1422, %v1422
        %v1425 = vmul.f32 %v1423, %v1423
        %v1426 = vsel %vm841, %v1424, 0.0
        %1427 = vadd.xlane.f32.xlu0 %v1426
        %v1428 = vpop.xlane.xlu0 %1427
        %v1429 = vsel %vm841, %v1425, 0.0
        %1430 = vadd.xlane.f32.xlu0 %v1429
        %v1431 = vpop.xlane.xlu0 %1430
        %v1432 = vmul.f32 %v1428, %v1419
        %v1433 = vmul.f32 %v1431, %v1419
        %v1434 = vadd.f32 %v1432, 1e-06
        %v1435 = vadd.f32 %v1433, 1e-06
        %v1436 = vrsqrt.pop %v1434
        %v1437 = vrsqrt.pop %v1435
        %v1438 = vmul.f32 %v1422, %v1436
        %v1439 = vmul.f32 %v1423, %v1437
        %v1440 = vlaneseq
        %v1441 = vshrl.u32 %v1440, 7
        %v1442 = vsub.s32 0, %v1441
        %v1443 = vrot.slane %v823, %v1442
        %v1444 = vmul.f32 %v1438, %v1443
        %v1445 = vmul.f32 %v1439, %v1443
        %v1446 = vlaneseq
        %v1447 = vshrl.u32 %v1446, 7
        %v1448 = vsub.s32 1, %v1447
        %v1449 = vrot.slane %v823, %v1448
        %v1450 = vadd.f32 %v1444, %v1449
        %v1451 = vadd.f32 %v1445, %v1449
        %v1452 = vld [vmem:[#allocation5] sm:$0xf]
        %v1453 = vld [vmem:[#allocation5 + $0x4] sm:$0xf]
        %v1454 = vld [vmem:[#allocation5 + $0x8] sm:$0xf]
        %v1455 = vld [vmem:[#allocation5 + $0xc] sm:$0xf]
        %v1456 = vld [vmem:[%s666] sm:$0xf]
        %v1457 = vld [vmem:[%s666 + $0x4] sm:$0xf]
        %v1458 = vld [vmem:[%s666 + $0x8] sm:$0xf]
        %v1459 = vld [vmem:[%s666 + $0xc] sm:$0xf]
        %v1464 = vunpack.c.l.b16 %v1452
        %v1465 = vunpack.c.l.b16 %v1453
        %v1466 = vunpack.c.l.b16 %v1454
        %v1467 = vunpack.c.l.b16 %v1455
        %v1468 = vpack.c.b16 %v1465, %v1464
        %v1469 = vpack.c.b16 %v1467, %v1466
        %v1474 = vunpack.c.l.b16 %v1456
        %v1475 = vunpack.c.l.b16 %v1457
        %v1476 = vunpack.c.l.b16 %v1458
        %v1477 = vunpack.c.l.b16 %v1459
        %v1478 = vpack.c.b16 %v1475, %v1474
        %v1479 = vpack.c.b16 %v1477, %v1476
        %v1483 = vsel %vm841, %v1468, 0
        %v1486 = vsel %vm841, %v1469, 0
        %1488 = vmatprep.subr.bf16.mxu0 0
        %1489 = vmatpush1.bf16.msra.mxu0 0
        %1490 = vmatprep.subr.bf16.mxu0 0
        %1491 = vmatpush1.bf16.msra.mxu0 0
        %1492 = vmatprep.subr.bf16.mxu0 0
        %1493 = vmatpush1.bf16.msra.mxu0 0
        %1494 = vmatprep.subr.bf16.mxu0 0
        %1495 = vmatpush1.bf16.msra.mxu0 0
        %1496 = vmatprep.subr.bf16.mxu0 0
        %1497 = vmatpush1.bf16.msra.mxu0 0
        %1498 = vmatprep.subr.bf16.mxu0 0
        %1499 = vmatpush1.bf16.msra.mxu0 0
        %1500 = vmatprep.subr.bf16.mxu0 0
        %1501 = vmatpush1.bf16.msra.mxu0 %v1479
        %1502 = vmatprep.subr.bf16.mxu0 0
        %1503 = vmatpush1.bf16.msra.mxu0 %v1478
        %1504 = vmatprep.subr.bf16.mxu0 0
        %1505 = vmatpush2.bf16.msra.mxu0 0
        %1506 = vmatprep.subr.bf16.mxu0 0
        %1507 = vmatpush2.bf16.msra.mxu0 0
        %1508 = vmatprep.subr.bf16.mxu0 0
        %1509 = vmatpush2.bf16.msra.mxu0 0
        %1510 = vmatprep.subr.bf16.mxu0 0
        %1511 = vmatpush2.bf16.msra.mxu0 0
        %1512 = vmatprep.subr.bf16.mxu0 0
        %1513 = vmatpush2.bf16.msra.mxu0 0
        %1514 = vmatprep.subr.bf16.mxu0 0
        %1515 = vmatpush2.bf16.msra.mxu0 0
        %1516 = vmatprep.subr.bf16.mxu0 0
        %1517 = vmatpush2.bf16.msra.mxu0 0
        %1518 = vmatprep.subr.bf16.mxu0 0
        %1519 = vmatpush2.bf16.msra.mxu0 0
        %1520 = vmatprep.mubr.bf16.mxu0 0
        %1521 = vmatmul.mubr.bf16.gmra.mxu0 %v1483
        %v1522 = vpop.f32.mrf.mxu0
        %v1523 = vadd.f32 0.0, %v1522
        %v1524 = vpop.f32.mrf.mxu0
        %v1525 = vpop.f32.mrf.mxu0
        %v1526 = vadd.f32 0.0, %v1525
        %v1527 = vpop.f32.mrf.mxu0
        %1528 = vmatprep.mubr.bf16.mxu0 0
        %1529 = vmatmul.mubr.bf16.gmra.mxu0 %v1486
        %v1530 = vpop.f32.mrf.mxu0
        %v1531 = vadd.f32 0.0, %v1530
        %v1532 = vpop.f32.mrf.mxu0
        %v1533 = vpop.f32.mrf.mxu0
        %v1534 = vadd.f32 0.0, %v1533
        %v1535 = vpop.f32.mrf.mxu0
        %1536 = vdwg.mxu0
        %v1537 = vpack.c.bf16 %v1451, %v1450
        %v1538 = vld [vmem:[%s790] sm:$0xf]
        %v1539 = vld [vmem:[%s790 + $0x4] sm:$0xf]
        %v1540 = vld [vmem:[%s790 + $0x8] sm:$0xf]
        %v1541 = vld [vmem:[%s790 + $0xc] sm:$0xf]
        %v1546 = vunpack.c.l.b16 %v1538
        %v1547 = vunpack.c.l.b16 %v1539
        %v1548 = vunpack.c.l.b16 %v1540
        %v1549 = vunpack.c.l.b16 %v1541
        %v1550 = vpack.c.b16 %v1547, %v1546
        %v1551 = vpack.c.b16 %v1549, %v1548
        %v1555 = vsel %vm841, %v1537, 0
        %1557 = vmatprep.subr.bf16.mxu0 0
        %1558 = vmatpush1.bf16.msra.mxu0 0
        %1559 = vmatprep.subr.bf16.mxu0 0
        %1560 = vmatpush1.bf16.msra.mxu0 0
        %1561 = vmatprep.subr.bf16.mxu0 0
        %1562 = vmatpush1.bf16.msra.mxu0 0
        %1563 = vmatprep.subr.bf16.mxu0 0
        %1564 = vmatpush1.bf16.msra.mxu0 0
        %1565 = vmatprep.subr.bf16.mxu0 0
        %1566 = vmatpush1.bf16.msra.mxu0 0
        %1567 = vmatprep.subr.bf16.mxu0 0
        %1568 = vmatpush1.bf16.msra.mxu0 0
        %1569 = vmatprep.subr.bf16.mxu0 0
        %1570 = vmatpush1.bf16.msra.mxu0 %v1551
        %1571 = vmatprep.subr.bf16.mxu0 0
        %1572 = vmatpush1.bf16.msra.mxu0 %v1550
        %1573 = vmatprep.subr.bf16.mxu0 0
        %1574 = vmatpush2.bf16.msra.mxu0 0
        %1575 = vmatprep.subr.bf16.mxu0 0
        %1576 = vmatpush2.bf16.msra.mxu0 0
        %1577 = vmatprep.subr.bf16.mxu0 0
        %1578 = vmatpush2.bf16.msra.mxu0 0
        %1579 = vmatprep.subr.bf16.mxu0 0
        %1580 = vmatpush2.bf16.msra.mxu0 0
        %1581 = vmatprep.subr.bf16.mxu0 0
        %1582 = vmatpush2.bf16.msra.mxu0 0
        %1583 = vmatprep.subr.bf16.mxu0 0
        %1584 = vmatpush2.bf16.msra.mxu0 0
        %1585 = vmatprep.subr.bf16.mxu0 0
        %1586 = vmatpush2.bf16.msra.mxu0 0
        %1587 = vmatprep.subr.bf16.mxu0 0
        %1588 = vmatpush2.bf16.msra.mxu0 0
        %1589 = vmatprep.mubr.bf16.mxu0 0
        %1590 = vmatmul.mubr.bf16.gmra.mxu0 %v1555
        %v1591 = vpop.f32.mrf.mxu0
        %v1592 = vadd.f32 0.0, %v1591
        %v1593 = vpop.f32.mrf.mxu0
        %v1594 = vpop.f32.mrf.mxu0
        %v1595 = vadd.f32 0.0, %v1594
        %v1596 = vpop.f32.mrf.mxu0
        %1597 = vdwg.mxu0
        %1600 = vrot.lane.b32.xlu0 %v1592, 112
        %v1601 = vpop.permute.xlu0 %1600
        %1602 = vrot.lane.b32.xlu0 %v1595, 112
        %v1603 = vpop.permute.xlu0 %1602
        %v1606 = vpack.c.bf16 %v1592, %v1592
        %v1607 = vpack.c.bf16 %v1595, %v1595
        %v1608 = vpack.c.bf16 %v1601, %v1601
        %v1609 = vpack.c.bf16 %v1603, %v1603
        %1614 = vrot.lane.b32.xlu0 %v1523, 112
        %v1615 = vpop.permute.xlu0 %1614
        %1616 = vrot.lane.b32.xlu0 %v1526, 112
        %v1617 = vpop.permute.xlu0 %1616
        %1618 = vrot.lane.b32.xlu0 %v1531, 112
        %v1619 = vpop.permute.xlu0 %1618
        %1620 = vrot.lane.b32.xlu0 %v1534, 112
        %v1621 = vpop.permute.xlu0 %1620
        %v1626 = vpack.c.bf16 %v1526, %v1523
        %v1627 = vpack.c.bf16 %v1534, %v1531
        %v1628 = vpack.c.bf16 %v1617, %v1615
        %v1629 = vpack.c.bf16 %v1621, %v1619
        %v1631 = vsel %vm901, %v1606, 0
        %v1634 = vsel %vm901, %v1626, 0
        %1636 = vmatprep.subr.bf16.mxu0 0
        %1637 = vmatpush1.bf16.xpose.msra.mxu0 0
        %1638 = vmatprep.subr.bf16.mxu0 0
        %1639 = vmatpush1.bf16.xpose.msra.mxu0 0
        %1640 = vmatprep.subr.bf16.mxu0 0
        %1641 = vmatpush1.bf16.xpose.msra.mxu0 0
        %1642 = vmatprep.subr.bf16.mxu0 0
        %1643 = vmatpush1.bf16.xpose.msra.mxu0 0
        %1644 = vmatprep.subr.bf16.mxu0 0
        %1645 = vmatpush1.bf16.xpose.msra.mxu0 0
        %1646 = vmatprep.subr.bf16.mxu0 0
        %1647 = vmatpush1.bf16.xpose.msra.mxu0 0
        %1648 = vmatprep.subr.bf16.mxu0 0
        %1649 = vmatpush1.bf16.xpose.msra.mxu0 0
        %1650 = vmatprep.subr.bf16.mxu0 0
        %1651 = vmatpush1.bf16.xpose.msra.mxu0 %v1634
        %1652 = vmatprep.subr.bf16.mxu0 0
        %1653 = vmatpush2.bf16.xpose.msra.mxu0 0
        %1654 = vmatprep.subr.bf16.mxu0 0
        %1655 = vmatpush2.bf16.xpose.msra.mxu0 0
        %1656 = vmatprep.subr.bf16.mxu0 0
        %1657 = vmatpush2.bf16.xpose.msra.mxu0 0
        %1658 = vmatprep.subr.bf16.mxu0 0
        %1659 = vmatpush2.bf16.xpose.msra.mxu0 0
        %1660 = vmatprep.subr.bf16.mxu0 0
        %1661 = vmatpush2.bf16.xpose.msra.mxu0 0
        %1662 = vmatprep.subr.bf16.mxu0 0
        %1663 = vmatpush2.bf16.xpose.msra.mxu0 0
        %1664 = vmatprep.subr.bf16.mxu0 0
        %1665 = vmatpush2.bf16.xpose.msra.mxu0 0
        %1666 = vmatprep.subr.bf16.mxu0 0
        %1667 = vmatpush2.bf16.xpose.msra.mxu0 0
        %1668 = vmatprep.mubr.bf16.mxu0 0
        %1669 = vmatmul.mubr.bf16.gmra.mxu0 %v1631
        %v1670 = vpop.f32.mrf.mxu0
        %v1671 = vadd.f32 0.0, %v1670
        %v1672 = vpop.f32.mrf.mxu0
        %v1673 = vpop.f32.mrf.mxu0
        %v1674 = vpop.f32.mrf.mxu0
        %1675 = vdwg.mxu0
        %v1677 = vsel %vm901, %v1607, 0
        %v1680 = vsel %vm901, %v1627, 0
        %1682 = vmatprep.subr.bf16.mxu0 0
        %1683 = vmatpush1.bf16.xpose.msra.mxu0 0
        %1684 = vmatprep.subr.bf16.mxu0 0
        %1685 = vmatpush1.bf16.xpose.msra.mxu0 0
        %1686 = vmatprep.subr.bf16.mxu0 0
        %1687 = vmatpush1.bf16.xpose.msra.mxu0 0
        %1688 = vmatprep.subr.bf16.mxu0 0
        %1689 = vmatpush1.bf16.xpose.msra.mxu0 0
        %1690 = vmatprep.subr.bf16.mxu0 0
        %1691 = vmatpush1.bf16.xpose.msra.mxu0 0
        %1692 = vmatprep.subr.bf16.mxu0 0
        %1693 = vmatpush1.bf16.xpose.msra.mxu0 0
        %1694 = vmatprep.subr.bf16.mxu0 0
        %1695 = vmatpush1.bf16.xpose.msra.mxu0 0
        %1696 = vmatprep.subr.bf16.mxu0 0
        %1697 = vmatpush1.bf16.xpose.msra.mxu0 %v1680
        %1698 = vmatprep.subr.bf16.mxu0 0
        %1699 = vmatpush2.bf16.xpose.msra.mxu0 0
        %1700 = vmatprep.subr.bf16.mxu0 0
        %1701 = vmatpush2.bf16.xpose.msra.mxu0 0
        %1702 = vmatprep.subr.bf16.mxu0 0
        %1703 = vmatpush2.bf16.xpose.msra.mxu0 0
        %1704 = vmatprep.subr.bf16.mxu0 0
        %1705 = vmatpush2.bf16.xpose.msra.mxu0 0
        %1706 = vmatprep.subr.bf16.mxu0 0
        %1707 = vmatpush2.bf16.xpose.msra.mxu0 0
        %1708 = vmatprep.subr.bf16.mxu0 0
        %1709 = vmatpush2.bf16.xpose.msra.mxu0 0
        %1710 = vmatprep.subr.bf16.mxu0 0
        %1711 = vmatpush2.bf16.xpose.msra.mxu0 0
        %1712 = vmatprep.subr.bf16.mxu0 0
        %1713 = vmatpush2.bf16.xpose.msra.mxu0 0
        %1714 = vmatprep.mubr.bf16.mxu0 0
        %1715 = vmatmul.mubr.bf16.gmra.mxu0 %v1677
        %v1716 = vpop.f32.mrf.mxu0
        %v1717 = vadd.f32 0.0, %v1716
        %v1718 = vpop.f32.mrf.mxu0
        %v1719 = vpop.f32.mrf.mxu0
        %v1720 = vpop.f32.mrf.mxu0
        %1721 = vdwg.mxu0
        %v1723 = vsel %vm901, %v1608, 0
        %v1726 = vsel %vm901, %v1628, 0
        %1728 = vmatprep.subr.bf16.mxu0 0
        %1729 = vmatpush1.bf16.xpose.msra.mxu0 0
        %1730 = vmatprep.subr.bf16.mxu0 0
        %1731 = vmatpush1.bf16.xpose.msra.mxu0 0
        %1732 = vmatprep.subr.bf16.mxu0 0
        %1733 = vmatpush1.bf16.xpose.msra.mxu0 0
        %1734 = vmatprep.subr.bf16.mxu0 0
        %1735 = vmatpush1.bf16.xpose.msra.mxu0 0
        %1736 = vmatprep.subr.bf16.mxu0 0
        %1737 = vmatpush1.bf16.xpose.msra.mxu0 0
        %1738 = vmatprep.subr.bf16.mxu0 0
        %1739 = vmatpush1.bf16.xpose.msra.mxu0 0
        %1740 = vmatprep.subr.bf16.mxu0 0
        %1741 = vmatpush1.bf16.xpose.msra.mxu0 0
        %1742 = vmatprep.subr.bf16.mxu0 0
        %1743 = vmatpush1.bf16.xpose.msra.mxu0 %v1726
        %1744 = vmatprep.subr.bf16.mxu0 0
        %1745 = vmatpush2.bf16.xpose.msra.mxu0 0
        %1746 = vmatprep.subr.bf16.mxu0 0
        %1747 = vmatpush2.bf16.xpose.msra.mxu0 0
        %1748 = vmatprep.subr.bf16.mxu0 0
        %1749 = vmatpush2.bf16.xpose.msra.mxu0 0
        %1750 = vmatprep.subr.bf16.mxu0 0
        %1751 = vmatpush2.bf16.xpose.msra.mxu0 0
        %1752 = vmatprep.subr.bf16.mxu0 0
        %1753 = vmatpush2.bf16.xpose.msra.mxu0 0
        %1754 = vmatprep.subr.bf16.mxu0 0
        %1755 = vmatpush2.bf16.xpose.msra.mxu0 0
        %1756 = vmatprep.subr.bf16.mxu0 0
        %1757 = vmatpush2.bf16.xpose.msra.mxu0 0
        %1758 = vmatprep.subr.bf16.mxu0 0
        %1759 = vmatpush2.bf16.xpose.msra.mxu0 0
        %1760 = vmatprep.mubr.bf16.mxu0 0
        %1761 = vmatmul.mubr.bf16.gmra.mxu0 %v1723
        %v1762 = vpop.f32.mrf.mxu0
        %v1763 = vadd.f32 0.0, %v1762
        %v1764 = vpop.f32.mrf.mxu0
        %v1765 = vpop.f32.mrf.mxu0
        %v1766 = vpop.f32.mrf.mxu0
        %1767 = vdwg.mxu0
        %v1769 = vsel %vm901, %v1609, 0
        %v1772 = vsel %vm901, %v1629, 0
        %1774 = vmatprep.subr.bf16.mxu0 0
        %1775 = vmatpush1.bf16.xpose.msra.mxu0 0
        %1776 = vmatprep.subr.bf16.mxu0 0
        %1777 = vmatpush1.bf16.xpose.msra.mxu0 0
        %1778 = vmatprep.subr.bf16.mxu0 0
        %1779 = vmatpush1.bf16.xpose.msra.mxu0 0
        %1780 = vmatprep.subr.bf16.mxu0 0
        %1781 = vmatpush1.bf16.xpose.msra.mxu0 0
        %1782 = vmatprep.subr.bf16.mxu0 0
        %1783 = vmatpush1.bf16.xpose.msra.mxu0 0
        %1784 = vmatprep.subr.bf16.mxu0 0
        %1785 = vmatpush1.bf16.xpose.msra.mxu0 0
        %1786 = vmatprep.subr.bf16.mxu0 0
        %1787 = vmatpush1.bf16.xpose.msra.mxu0 0
        %1788 = vmatprep.subr.bf16.mxu0 0
        %1789 = vmatpush1.bf16.xpose.msra.mxu0 %v1772
        %1790 = vmatprep.subr.bf16.mxu0 0
        %1791 = vmatpush2.bf16.xpose.msra.mxu0 0
        %1792 = vmatprep.subr.bf16.mxu0 0
        %1793 = vmatpush2.bf16.xpose.msra.mxu0 0
        %1794 = vmatprep.subr.bf16.mxu0 0
        %1795 = vmatpush2.bf16.xpose.msra.mxu0 0
        %1796 = vmatprep.subr.bf16.mxu0 0
        %1797 = vmatpush2.bf16.xpose.msra.mxu0 0
        %1798 = vmatprep.subr.bf16.mxu0 0
        %1799 = vmatpush2.bf16.xpose.msra.mxu0 0
        %1800 = vmatprep.subr.bf16.mxu0 0
        %1801 = vmatpush2.bf16.xpose.msra.mxu0 0
        %1802 = vmatprep.subr.bf16.mxu0 0
        %1803 = vmatpush2.bf16.xpose.msra.mxu0 0
        %1804 = vmatprep.subr.bf16.mxu0 0
        %1805 = vmatpush2.bf16.xpose.msra.mxu0 0
        %1806 = vmatprep.mubr.bf16.mxu0 0
        %1807 = vmatmul.mubr.bf16.gmra.mxu0 %v1769
        %v1808 = vpop.f32.mrf.mxu0
        %v1809 = vadd.f32 0.0, %v1808
        %v1810 = vpop.f32.mrf.mxu0
        %v1811 = vpop.f32.mrf.mxu0
        %v1812 = vpop.f32.mrf.mxu0
        %1813 = vdwg.mxu0
        %v1814 = vld [vmem:[#allocation7] sm:$0xf]
        %v1815 = vld [vmem:[#allocation7 + $0x4] sm:$0xf]
        %vm1816 = vcmp.ne.bf16.partialorder %v1814, 0
        %vm1817 = vcmp.ne.bf16.partialorder %v1815, 0
        %v1818 = vsel %vm1816, 65537, 0
        %v1819 = vsel %vm1817, 65537, 0
        %v1820 = vunpack.c.l.b16 %v1818
        %v1821 = vunpack.c.l.b16 %v1819
        %vm1822 = vcmp.ne.s32.totalorder %v1820, 0
        %vm1823 = vcmp.ne.s32.totalorder %v1821, 0
        %v1824 = vsel %vm1822, 1, 0
        %v1825 = vsel %vm1823, 1, 0
        %vm1826 = vcmp.eq.s32.totalorder %v1824, 1
        %vm1827 = vcmp.eq.s32.totalorder %v1825, 1
        %v1828 = vsel %vm1826, %v1671, -1e+09
        %v1829 = vsel %vm1827, %v1717, -1e+09
        %v1830 = vsel %vm1826, %v1763, -1e+09
        %v1831 = vsel %vm1827, %v1809, -1e+09
        %p1832 = scmp.eq.s32.totalorder %s45, 1
        // Predicated region
        $region97: #{tpu_custom_call.1} parent=67 // pred_check
          %p1833 = pneg %p1832
        $region98: #{tpu_custom_call.1} parent=67 // pred_check_branch
          %1835 = sbr.rel (%p1833) target = $region100
        $region99: #{tpu_custom_call.1} parent=67 // pred_region
          %1836 = vst.msk [vmem:[#allocation17] sm:$0xff] %vm901, %v1828
          %1837 = vst.msk [vmem:[#allocation17 + $0x8] sm:$0xff] %vm901, %v1829
          %1838 = vst.msk [vmem:[#allocation17 + $0x10] sm:$0xff] %vm901, %v1830
          %1839 = vst.msk [vmem:[#allocation17 + $0x18] sm:$0xff] %vm901, %v1831
        $region100: #{tpu_custom_call.1} parent=67 // pred_fallthru
          _
        %v1840 = vsel %vm901, %v1828, -inf
        %1841 = vmax.xlane.f32.xlu0 %v1840
        %v1842 = vpop.xlane.xlu0 %1841
        %v1843 = vsel %vm901, %v1829, -inf
        %1844 = vmax.xlane.f32.xlu0 %v1843
        %v1845 = vpop.xlane.xlu0 %1844
        %v1846 = vsel %vm901, %v1830, -inf
        %1847 = vmax.xlane.f32.xlu0 %v1846
        %v1848 = vpop.xlane.xlu0 %1847
        %v1849 = vsel %vm901, %v1831, -inf
        %1850 = vmax.xlane.f32.xlu0 %v1849
        %v1851 = vpop.xlane.xlu0 %1850
        %v1852 = vsub.f32 %v1828, %v1842
        %v1853 = vsub.f32 %v1829, %v1845
        %v1854 = vsub.f32 %v1830, %v1848
        %v1855 = vsub.f32 %v1831, %v1851
        %v1856 = vmul.f32 %v1852, 1.442695
        %v1857 = vpow.pop %v1856
        %v1858 = vmul.f32 %v1853, 1.442695
        %v1859 = vpow.pop %v1858
        %v1860 = vmul.f32 %v1854, 1.442695
        %v1861 = vpow.pop %v1860
        %v1862 = vmul.f32 %v1855, 1.442695
        %v1863 = vpow.pop %v1862
        %v1864 = vsel %vm901, %v1857, 0.0
        %1865 = vadd.xlane.f32.xlu0 %v1864
        %v1866 = vpop.xlane.xlu0 %1865
        %v1867 = vsel %vm901, %v1859, 0.0
        %1868 = vadd.xlane.f32.xlu0 %v1867
        %v1869 = vpop.xlane.xlu0 %1868
        %v1870 = vsel %vm901, %v1861, 0.0
        %1871 = vadd.xlane.f32.xlu0 %v1870
        %v1872 = vpop.xlane.xlu0 %1871
        %v1873 = vsel %vm901, %v1863, 0.0
        %1874 = vadd.xlane.f32.xlu0 %v1873
        %v1875 = vpop.xlane.xlu0 %1874
        %v1876 = vrcp.pop %v1866
        %v1877 = vmul.f32 %v1857, %v1876
        %v1878 = vrcp.pop %v1869
        %v1879 = vmul.f32 %v1859, %v1878
        %v1880 = vrcp.pop %v1872
        %v1881 = vmul.f32 %v1861, %v1880
        %v1882 = vrcp.pop %v1875
        %v1883 = vmul.f32 %v1863, %v1882
        %v1884 = vpack.c.bf16 %v1877, %v1877
        %v1885 = vpack.c.bf16 %v1879, %v1879
        %v1886 = vpack.c.bf16 %v1881, %v1881
        %v1887 = vpack.c.bf16 %v1883, %v1883
        %vm1888 = vcmask 125952
        %1889 = vst.msk [vmem:[%s770] sm:$0xf] %vm1888, %v1884
        %1890 = vst.msk [vmem:[%s770 + $0x4] sm:$0xf] %vm1888, %v1885
        %1891 = vst.msk [vmem:[%s770 + $0x8] sm:$0xf] %vm1888, %v1886
        %1892 = vst.msk [vmem:[%s770 + $0xc] sm:$0xf] %vm1888, %v1887
        %1894 = vrot.lane.b32.xlu0 %v1626, 96
        %v1895 = vpop.permute.xlu0 %1894
        %v1898 = vsel %vm901, %v1884, 0
        %1900 = vmatprep.subr.bf16.mxu0 0
        %1901 = vmatpush1.bf16.msra.mxu0 0
        %1902 = vmatprep.subr.bf16.mxu0 0
        %1903 = vmatpush1.bf16.msra.mxu0 0
        %1904 = vmatprep.subr.bf16.mxu0 0
        %1905 = vmatpush1.bf16.msra.mxu0 0
        %1906 = vmatprep.subr.bf16.mxu0 0
        %1907 = vmatpush1.bf16.msra.mxu0 0
        %1908 = vmatprep.subr.bf16.mxu0 0
        %1909 = vmatpush1.bf16.msra.mxu0 0
        %1910 = vmatprep.subr.bf16.mxu0 0
        %1911 = vmatpush1.bf16.msra.mxu0 0
        %1912 = vmatprep.subr.bf16.mxu0 0
        %1913 = vmatpush1.bf16.msra.mxu0 0
        %1914 = vmatprep.subr.bf16.mxu0 0
        %1915 = vmatpush1.bf16.msra.mxu0 %v1895
        %1916 = vmatprep.subr.bf16.mxu0 0
        %1917 = vmatpush2.bf16.msra.mxu0 0
        %1918 = vmatprep.subr.bf16.mxu0 0
        %1919 = vmatpush2.bf16.msra.mxu0 0
        %1920 = vmatprep.subr.bf16.mxu0 0
        %1921 = vmatpush2.bf16.msra.mxu0 0
        %1922 = vmatprep.subr.bf16.mxu0 0
        %1923 = vmatpush2.bf16.msra.mxu0 0
        %1924 = vmatprep.subr.bf16.mxu0 0
        %1925 = vmatpush2.bf16.msra.mxu0 0
        %1926 = vmatprep.subr.bf16.mxu0 0
        %1927 = vmatpush2.bf16.msra.mxu0 0
        %1928 = vmatprep.subr.bf16.mxu0 0
        %1929 = vmatpush2.bf16.msra.mxu0 0
        %1930 = vmatprep.subr.bf16.mxu0 0
        %1931 = vmatpush2.bf16.msra.mxu0 0
        %1932 = vmatprep.mubr.bf16.mxu0 0
        %1933 = vmatmul.mubr.bf16.gmra.mxu0 %v1898
        %v1934 = vpop.f32.mrf.mxu0
        %v1935 = vadd.f32 0.0, %v1934
        %v1936 = vpop.f32.mrf.mxu0
        %v1937 = vpop.f32.mrf.mxu0
        %v1938 = vpop.f32.mrf.mxu0
        %1939 = vdwg.mxu0
        %1941 = vrot.lane.b32.xlu0 %v1627, 96
        %v1942 = vpop.permute.xlu0 %1941
        %v1945 = vsel %vm901, %v1885, 0
        %1947 = vmatprep.subr.bf16.mxu0 0
        %1948 = vmatpush1.bf16.msra.mxu0 0
        %1949 = vmatprep.subr.bf16.mxu0 0
        %1950 = vmatpush1.bf16.msra.mxu0 0
        %1951 = vmatprep.subr.bf16.mxu0 0
        %1952 = vmatpush1.bf16.msra.mxu0 0
        %1953 = vmatprep.subr.bf16.mxu0 0
        %1954 = vmatpush1.bf16.msra.mxu0 0
        %1955 = vmatprep.subr.bf16.mxu0 0
        %1956 = vmatpush1.bf16.msra.mxu0 0
        %1957 = vmatprep.subr.bf16.mxu0 0
        %1958 = vmatpush1.bf16.msra.mxu0 0
        %1959 = vmatprep.subr.bf16.mxu0 0
        %1960 = vmatpush1.bf16.msra.mxu0 0
        %1961 = vmatprep.subr.bf16.mxu0 0
        %1962 = vmatpush1.bf16.msra.mxu0 %v1942
        %1963 = vmatprep.subr.bf16.mxu0 0
        %1964 = vmatpush2.bf16.msra.mxu0 0
        %1965 = vmatprep.subr.bf16.mxu0 0
        %1966 = vmatpush2.bf16.msra.mxu0 0
        %1967 = vmatprep.subr.bf16.mxu0 0
        %1968 = vmatpush2.bf16.msra.mxu0 0
        %1969 = vmatprep.subr.bf16.mxu0 0
        %1970 = vmatpush2.bf16.msra.mxu0 0
        %1971 = vmatprep.subr.bf16.mxu0 0
        %1972 = vmatpush2.bf16.msra.mxu0 0
        %1973 = vmatprep.subr.bf16.mxu0 0
        %1974 = vmatpush2.bf16.msra.mxu0 0
        %1975 = vmatprep.subr.bf16.mxu0 0
        %1976 = vmatpush2.bf16.msra.mxu0 0
        %1977 = vmatprep.subr.bf16.mxu0 0
        %1978 = vmatpush2.bf16.msra.mxu0 0
        %1979 = vmatprep.mubr.bf16.mxu0 0
        %1980 = vmatmul.mubr.bf16.gmra.mxu0 %v1945
        %v1981 = vpop.f32.mrf.mxu0
        %v1982 = vadd.f32 0.0, %v1981
        %v1983 = vpop.f32.mrf.mxu0
        %v1984 = vpop.f32.mrf.mxu0
        %v1985 = vpop.f32.mrf.mxu0
        %1986 = vdwg.mxu0
        %1988 = vrot.lane.b32.xlu0 %v1628, 96
        %v1989 = vpop.permute.xlu0 %1988
        %v1992 = vsel %vm901, %v1886, 0
        %1994 = vmatprep.subr.bf16.mxu0 0
        %1995 = vmatpush1.bf16.msra.mxu0 0
        %1996 = vmatprep.subr.bf16.mxu0 0
        %1997 = vmatpush1.bf16.msra.mxu0 0
        %1998 = vmatprep.subr.bf16.mxu0 0
        %1999 = vmatpush1.bf16.msra.mxu0 0
        %2000 = vmatprep.subr.bf16.mxu0 0
        %2001 = vmatpush1.bf16.msra.mxu0 0
        %2002 = vmatprep.subr.bf16.mxu0 0
        %2003 = vmatpush1.bf16.msra.mxu0 0
        %2004 = vmatprep.subr.bf16.mxu0 0
        %2005 = vmatpush1.bf16.msra.mxu0 0
        %2006 = vmatprep.subr.bf16.mxu0 0
        %2007 = vmatpush1.bf16.msra.mxu0 0
        %2008 = vmatprep.subr.bf16.mxu0 0
        %2009 = vmatpush1.bf16.msra.mxu0 %v1989
        %2010 = vmatprep.subr.bf16.mxu0 0
        %2011 = vmatpush2.bf16.msra.mxu0 0
        %2012 = vmatprep.subr.bf16.mxu0 0
        %2013 = vmatpush2.bf16.msra.mxu0 0
        %2014 = vmatprep.subr.bf16.mxu0 0
        %2015 = vmatpush2.bf16.msra.mxu0 0
        %2016 = vmatprep.subr.bf16.mxu0 0
        %2017 = vmatpush2.bf16.msra.mxu0 0
        %2018 = vmatprep.subr.bf16.mxu0 0
        %2019 = vmatpush2.bf16.msra.mxu0 0
        %2020 = vmatprep.subr.bf16.mxu0 0
        %2021 = vmatpush2.bf16.msra.mxu0 0
        %2022 = vmatprep.subr.bf16.mxu0 0
        %2023 = vmatpush2.bf16.msra.mxu0 0
        %2024 = vmatprep.subr.bf16.mxu0 0
        %2025 = vmatpush2.bf16.msra.mxu0 0
        %2026 = vmatprep.mubr.bf16.mxu0 0
        %2027 = vmatmul.mubr.bf16.gmra.mxu0 %v1992
        %v2028 = vpop.f32.mrf.mxu0
        %v2029 = vadd.f32 0.0, %v2028
        %v2030 = vpop.f32.mrf.mxu0
        %v2031 = vpop.f32.mrf.mxu0
        %v2032 = vpop.f32.mrf.mxu0
        %2033 = vdwg.mxu0
        %2035 = vrot.lane.b32.xlu0 %v1629, 96
        %v2036 = vpop.permute.xlu0 %2035
        %v2039 = vsel %vm901, %v1887, 0
        %2041 = vmatprep.subr.bf16.mxu0 0
        %2042 = vmatpush1.bf16.msra.mxu0 0
        %2043 = vmatprep.subr.bf16.mxu0 0
        %2044 = vmatpush1.bf16.msra.mxu0 0
        %2045 = vmatprep.subr.bf16.mxu0 0
        %2046 = vmatpush1.bf16.msra.mxu0 0
        %2047 = vmatprep.subr.bf16.mxu0 0
        %2048 = vmatpush1.bf16.msra.mxu0 0
        %2049 = vmatprep.subr.bf16.mxu0 0
        %2050 = vmatpush1.bf16.msra.mxu0 0
        %2051 = vmatprep.subr.bf16.mxu0 0
        %2052 = vmatpush1.bf16.msra.mxu0 0
        %2053 = vmatprep.subr.bf16.mxu0 0
        %2054 = vmatpush1.bf16.msra.mxu0 0
        %2055 = vmatprep.subr.bf16.mxu0 0
        %2056 = vmatpush1.bf16.msra.mxu0 %v2036
        %2057 = vmatprep.subr.bf16.mxu0 0
        %2058 = vmatpush2.bf16.msra.mxu0 0
        %2059 = vmatprep.subr.bf16.mxu0 0
        %2060 = vmatpush2.bf16.msra.mxu0 0
        %2061 = vmatprep.subr.bf16.mxu0 0
        %2062 = vmatpush2.bf16.msra.mxu0 0
        %2063 = vmatprep.subr.bf16.mxu0 0
        %2064 = vmatpush2.bf16.msra.mxu0 0
        %2065 = vmatprep.subr.bf16.mxu0 0
        %2066 = vmatpush2.bf16.msra.mxu0 0
        %2067 = vmatprep.subr.bf16.mxu0 0
        %2068 = vmatpush2.bf16.msra.mxu0 0
        %2069 = vmatprep.subr.bf16.mxu0 0
        %2070 = vmatpush2.bf16.msra.mxu0 0
        %2071 = vmatprep.subr.bf16.mxu0 0
        %2072 = vmatpush2.bf16.msra.mxu0 0
        %2073 = vmatprep.mubr.bf16.mxu0 0
        %2074 = vmatmul.mubr.bf16.gmra.mxu0 %v2039
        %v2075 = vpop.f32.mrf.mxu0
        %v2076 = vadd.f32 0.0, %v2075
        %v2077 = vpop.f32.mrf.mxu0
        %v2078 = vpop.f32.mrf.mxu0
        %v2079 = vpop.f32.mrf.mxu0
        %2080 = vdwg.mxu0
        %2083 = vrot.lane.b32.xlu0 %v2029, 16
        %v2084 = vpop.permute.xlu0 %2083
        %2085 = vrot.lane.b32.xlu0 %v2076, 16
        %v2086 = vpop.permute.xlu0 %2085
        %v2089 = vsel %vm901, %v1935, %v2084
        %v2090 = vsel %vm901, %v1982, %v2086
        %v2091 = vpack.c.bf16 %v2090, %v2089
        %v2092 = vld [vmem:[%s675] sm:$0xf]
        %v2093 = vld [vmem:[%s675 + $0x4] sm:$0xf]
        %v2094 = vld [vmem:[%s675 + $0x8] sm:$0xf]
        %v2095 = vld [vmem:[%s675 + $0xc] sm:$0xf]
        %v2100 = vunpack.c.l.b16 %v2092
        %v2101 = vunpack.c.l.b16 %v2093
        %v2102 = vunpack.c.l.b16 %v2094
        %v2103 = vunpack.c.l.b16 %v2095
        %v2104 = vpack.c.b16 %v2101, %v2100
        %v2105 = vpack.c.b16 %v2103, %v2102
        %v2109 = vsel %vm841, %v2091, 0
        %2111 = vmatprep.subr.bf16.mxu0 0
        %2112 = vmatpush1.bf16.msra.mxu0 0
        %2113 = vmatprep.subr.bf16.mxu0 0
        %2114 = vmatpush1.bf16.msra.mxu0 0
        %2115 = vmatprep.subr.bf16.mxu0 0
        %2116 = vmatpush1.bf16.msra.mxu0 0
        %2117 = vmatprep.subr.bf16.mxu0 0
        %2118 = vmatpush1.bf16.msra.mxu0 0
        %2119 = vmatprep.subr.bf16.mxu0 0
        %2120 = vmatpush1.bf16.msra.mxu0 0
        %2121 = vmatprep.subr.bf16.mxu0 0
        %2122 = vmatpush1.bf16.msra.mxu0 0
        %2123 = vmatprep.subr.bf16.mxu0 0
        %2124 = vmatpush1.bf16.msra.mxu0 %v2105
        %2125 = vmatprep.subr.bf16.mxu0 0
        %2126 = vmatpush1.bf16.msra.mxu0 %v2104
        %2127 = vmatprep.subr.bf16.mxu0 0
        %2128 = vmatpush2.bf16.msra.mxu0 0
        %2129 = vmatprep.subr.bf16.mxu0 0
        %2130 = vmatpush2.bf16.msra.mxu0 0
        %2131 = vmatprep.subr.bf16.mxu0 0
        %2132 = vmatpush2.bf16.msra.mxu0 0
        %2133 = vmatprep.subr.bf16.mxu0 0
        %2134 = vmatpush2.bf16.msra.mxu0 0
        %2135 = vmatprep.subr.bf16.mxu0 0
        %2136 = vmatpush2.bf16.msra.mxu0 0
        %2137 = vmatprep.subr.bf16.mxu0 0
        %2138 = vmatpush2.bf16.msra.mxu0 0
        %2139 = vmatprep.subr.bf16.mxu0 0
        %2140 = vmatpush2.bf16.msra.mxu0 0
        %2141 = vmatprep.subr.bf16.mxu0 0
        %2142 = vmatpush2.bf16.msra.mxu0 0
        %2143 = vmatprep.mubr.bf16.mxu0 0
        %2144 = vmatmul.mubr.bf16.gmra.mxu0 %v2109
        %v2145 = vpop.f32.mrf.mxu0
        %v2146 = vadd.f32 %v1450, %v2145
        %v2147 = vpop.f32.mrf.mxu0
        %v2148 = vpop.f32.mrf.mxu0
        %v2149 = vadd.f32 %v1451, %v2148
        %v2150 = vpop.f32.mrf.mxu0
        %2151 = vdwg.mxu0
        %v2152 = vsel %vm841, %v2146, 0.0
        %2153 = vadd.xlane.f32.xlu0 %v2152
        %v2154 = vpop.xlane.xlu0 %2153
        %v2155 = vsel %vm841, %v2149, 0.0
        %2156 = vadd.xlane.f32.xlu0 %v2155
        %v2157 = vpop.xlane.xlu0 %2156
        %v2158 = vmul.f32 %v2154, %v1419
        %v2159 = vmul.f32 %v2157, %v1419
        %v2160 = vsub.f32 %v2146, %v2158
        %v2161 = vsub.f32 %v2149, %v2159
        %v2162 = vmul.f32 %v2160, %v2160
        %v2163 = vmul.f32 %v2161, %v2161
        %v2164 = vsel %vm841, %v2162, 0.0
        %2165 = vadd.xlane.f32.xlu0 %v2164
        %v2166 = vpop.xlane.xlu0 %2165
        %v2167 = vsel %vm841, %v2163, 0.0
        %2168 = vadd.xlane.f32.xlu0 %v2167
        %v2169 = vpop.xlane.xlu0 %2168
        %v2170 = vmul.f32 %v2166, %v1419
        %v2171 = vmul.f32 %v2169, %v1419
        %v2172 = vadd.f32 %v2170, 1e-06
        %v2173 = vadd.f32 %v2171, 1e-06
        %v2174 = vrsqrt.pop %v2172
        %v2175 = vrsqrt.pop %v2173
        %v2176 = vmul.f32 %v2160, %v2174
        %v2177 = vmul.f32 %v2161, %v2175
        %v2178 = vlaneseq
        %v2179 = vshrl.u32 %v2178, 7
        %v2180 = vsub.s32 2, %v2179
        %v2181 = vrot.slane %v823, %v2180
        %v2182 = vmul.f32 %v2176, %v2181
        %v2183 = vmul.f32 %v2177, %v2181
        %v2184 = vlaneseq
        %v2185 = vshrl.u32 %v2184, 7
        %v2186 = vsub.s32 3, %v2185
        %v2187 = vrot.slane %v823, %v2186
        %v2188 = vadd.f32 %v2182, %v2187
        %v2189 = vadd.f32 %v2183, %v2187
        %v2190 = vpack.c.bf16 %v2189, %v2188
        %v2191 = vld [vmem:[%s684] sm:$0xf]
        %v2192 = vld [vmem:[%s684 + $0x4] sm:$0xf]
        %v2193 = vld [vmem:[%s684 + $0x8] sm:$0xf]
        %v2194 = vld [vmem:[%s684 + $0xc] sm:$0xf]
        %v2195 = vld [vmem:[%s798] sm:$0x1]
        %v2197 = vlaneseq
        %v2198 = vshrl.u32 %v2197, 7
        %v2199 = vsub.s32 0, %v2198
        %v2200 = vrot.slane %v2195, %v2199
        %v2206 = vunpack.c.l.b16 %v2191
        %v2207 = vunpack.c.l.b16 %v2192
        %v2208 = vunpack.c.l.b16 %v2193
        %v2209 = vunpack.c.l.b16 %v2194
        %v2210 = vpack.c.b16 %v2207, %v2206
        %v2211 = vpack.c.b16 %v2209, %v2208
        %v2215 = vsel %vm841, %v2190, 0
        %2217 = vmatprep.subr.bf16.mxu0 0
        %2218 = vmatpush1.bf16.msra.mxu0 0
        %2219 = vmatprep.subr.bf16.mxu0 0
        %2220 = vmatpush1.bf16.msra.mxu0 0
        %2221 = vmatprep.subr.bf16.mxu0 0
        %2222 = vmatpush1.bf16.msra.mxu0 0
        %2223 = vmatprep.subr.bf16.mxu0 0
        %2224 = vmatpush1.bf16.msra.mxu0 0
        %2225 = vmatprep.subr.bf16.mxu0 0
        %2226 = vmatpush1.bf16.msra.mxu0 0
        %2227 = vmatprep.subr.bf16.mxu0 0
        %2228 = vmatpush1.bf16.msra.mxu0 0
        %2229 = vmatprep.subr.bf16.mxu0 0
        %2230 = vmatpush1.bf16.msra.mxu0 %v2211
        %2231 = vmatprep.subr.bf16.mxu0 0
        %2232 = vmatpush1.bf16.msra.mxu0 %v2210
        %2233 = vmatprep.subr.bf16.mxu0 0
        %2234 = vmatpush2.bf16.msra.mxu0 0
        %2235 = vmatprep.subr.bf16.mxu0 0
        %2236 = vmatpush2.bf16.msra.mxu0 0
        %2237 = vmatprep.subr.bf16.mxu0 0
        %2238 = vmatpush2.bf16.msra.mxu0 0
        %2239 = vmatprep.subr.bf16.mxu0 0
        %2240 = vmatpush2.bf16.msra.mxu0 0
        %2241 = vmatprep.subr.bf16.mxu0 0
        %2242 = vmatpush2.bf16.msra.mxu0 0
        %2243 = vmatprep.subr.bf16.mxu0 0
        %2244 = vmatpush2.bf16.msra.mxu0 0
        %2245 = vmatprep.subr.bf16.mxu0 0
        %2246 = vmatpush2.bf16.msra.mxu0 0
        %2247 = vmatprep.subr.bf16.mxu0 0
        %2248 = vmatpush2.bf16.msra.mxu0 0
        %2249 = vmatprep.mubr.bf16.mxu0 0
        %2250 = vmatmul.mubr.bf16.gmra.mxu0 %v2215
        %v2251 = vpop.f32.mrf.mxu0
        %v2252 = vadd.f32 %v2200, %v2251
        %v2253 = vpop.f32.mrf.mxu0
        %v2254 = vpop.f32.mrf.mxu0
        %v2255 = vadd.f32 %v2200, %v2254
        %v2256 = vpop.f32.mrf.mxu0
        %2257 = vdwg.mxu0
        %v2258 = vmax.f32 %v2252, 0.0
        %v2259 = vmax.f32 %v2255, 0.0
        %v2260 = vpack.c.bf16 %v2259, %v2258
        %v2261 = vld [vmem:[%s795] sm:$0xf]
        %v2262 = vld [vmem:[%s795 + $0x4] sm:$0xf]
        %v2263 = vld [vmem:[%s795 + $0x8] sm:$0xf]
        %v2264 = vld [vmem:[%s795 + $0xc] sm:$0xf]
        %v2265 = vld [vmem:[%s795 + $0x10] sm:$0xf]
        %v2266 = vld [vmem:[%s795 + $0x14] sm:$0xf]
        %v2267 = vld [vmem:[%s795 + $0x18] sm:$0xf]
        %v2268 = vld [vmem:[%s795 + $0x1c] sm:$0xf]
        %v2269 = vlaneseq
        %v2270 = vshrl.u32 %v2269, 7
        %v2271 = vsub.s32 6, %v2270
        %v2272 = vrot.slane %v823, %v2271
        %v2281 = vunpack.c.l.b16 %v2261
        %v2282 = vunpack.c.l.b16 %v2262
        %v2283 = vunpack.c.l.b16 %v2263
        %v2284 = vunpack.c.l.b16 %v2264
        %v2285 = vunpack.c.l.b16 %v2265
        %v2286 = vunpack.c.l.b16 %v2266
        %v2287 = vunpack.c.l.b16 %v2267
        %v2288 = vunpack.c.l.b16 %v2268
        %v2289 = vpack.c.b16 %v2282, %v2281
        %v2290 = vpack.c.b16 %v2284, %v2283
        %v2291 = vpack.c.b16 %v2286, %v2285
        %v2292 = vpack.c.b16 %v2288, %v2287
        %vm2297 = vcmask 523264
        %v2299 = vsel %vm2297, %v2260, 0
        %2301 = vmatprep.subr.bf16.mxu0 0
        %2302 = vmatpush1.bf16.msra.mxu0 0
        %2303 = vmatprep.subr.bf16.mxu0 0
        %2304 = vmatpush1.bf16.msra.mxu0 0
        %2305 = vmatprep.subr.bf16.mxu0 0
        %2306 = vmatpush1.bf16.msra.mxu0 0
        %2307 = vmatprep.subr.bf16.mxu0 0
        %2308 = vmatpush1.bf16.msra.mxu0 0
        %2309 = vmatprep.subr.bf16.mxu0 0
        %2310 = vmatpush1.bf16.msra.mxu0 %v2292
        %2311 = vmatprep.subr.bf16.mxu0 0
        %2312 = vmatpush1.bf16.msra.mxu0 %v2291
        %2313 = vmatprep.subr.bf16.mxu0 0
        %2314 = vmatpush1.bf16.msra.mxu0 %v2290
        %2315 = vmatprep.subr.bf16.mxu0 0
        %2316 = vmatpush1.bf16.msra.mxu0 %v2289
        %2317 = vmatprep.subr.bf16.mxu0 0
        %2318 = vmatpush2.bf16.msra.mxu0 0
        %2319 = vmatprep.subr.bf16.mxu0 0
        %2320 = vmatpush2.bf16.msra.mxu0 0
        %2321 = vmatprep.subr.bf16.mxu0 0
        %2322 = vmatpush2.bf16.msra.mxu0 0
        %2323 = vmatprep.subr.bf16.mxu0 0
        %2324 = vmatpush2.bf16.msra.mxu0 0
        %2325 = vmatprep.subr.bf16.mxu0 0
        %2326 = vmatpush2.bf16.msra.mxu0 0
        %2327 = vmatprep.subr.bf16.mxu0 0
        %2328 = vmatpush2.bf16.msra.mxu0 0
        %2329 = vmatprep.subr.bf16.mxu0 0
        %2330 = vmatpush2.bf16.msra.mxu0 0
        %2331 = vmatprep.subr.bf16.mxu0 0
        %2332 = vmatpush2.bf16.msra.mxu0 0
        %2333 = vmatprep.mubr.bf16.mxu0 0
        %2334 = vmatmul.mubr.bf16.gmra.mxu0 %v2299
        %v2335 = vpop.f32.mrf.mxu0
        %v2336 = vadd.f32 %v2272, %v2335
        %v2337 = vpop.f32.mrf.mxu0
        %v2338 = vpop.f32.mrf.mxu0
        %v2339 = vadd.f32 %v2272, %v2338
        %v2340 = vpop.f32.mrf.mxu0
        %2341 = vdwg.mxu0
        %v2342 = vadd.f32 %v2336, %v2188
        %v2343 = vadd.f32 %v2339, %v2189
        %v2344 = vsel %vm841, %v2342, 0.0
        %2345 = vadd.xlane.f32.xlu0 %v2344
        %v2346 = vpop.xlane.xlu0 %2345
        %v2347 = vsel %vm841, %v2343, 0.0
        %2348 = vadd.xlane.f32.xlu0 %v2347
        %v2349 = vpop.xlane.xlu0 %2348
        %v2350 = vmul.f32 %v2346, %v1419
        %v2351 = vmul.f32 %v2349, %v1419
        %v2352 = vsub.f32 %v2342, %v2350
        %v2353 = vsub.f32 %v2343, %v2351
        %v2354 = vmul.f32 %v2352, %v2352
        %v2355 = vmul.f32 %v2353, %v2353
        %v2356 = vsel %vm841, %v2354, 0.0
        %2357 = vadd.xlane.f32.xlu0 %v2356
        %v2358 = vpop.xlane.xlu0 %2357
        %v2359 = vsel %vm841, %v2355, 0.0
        %2360 = vadd.xlane.f32.xlu0 %v2359
        %v2361 = vpop.xlane.xlu0 %2360
        %v2362 = vmul.f32 %v2358, %v1419
        %v2363 = vmul.f32 %v2361, %v1419
        %v2364 = vadd.f32 %v2362, 1e-06
        %v2365 = vadd.f32 %v2363, 1e-06
        %v2366 = vrsqrt.pop %v2364
        %v2367 = vrsqrt.pop %v2365
        %v2368 = vmul.f32 %v2352, %v2366
        %v2369 = vmul.f32 %v2353, %v2367
        %v2370 = vlaneseq
        %v2371 = vshrl.u32 %v2370, 7
        %v2372 = vsub.s32 4, %v2371
        %v2373 = vrot.slane %v823, %v2372
        %v2374 = vmul.f32 %v2368, %v2373
        %v2375 = vmul.f32 %v2369, %v2373
        %v2376 = vlaneseq
        %v2377 = vshrl.u32 %v2376, 7
        %v2378 = vsub.s32 5, %v2377
        %v2379 = vrot.slane %v823, %v2378
        %v2380 = vadd.f32 %v2374, %v2379
        %v2381 = vadd.f32 %v2375, %v2379
        %2382 = vst.msk [vmem:[#allocation13] sm:$0xff] %vm841, %v2380
        %2383 = vst.msk [vmem:[#allocation13 + $0x8] sm:$0xff] %vm841, %v2381
        %s2384 = sand.u32 %s40, 1
        %s2385 = scalar_lea.sflag [#allocation15], %s2384
        %s2386 = sand.u32 %s400, 1
        %s2387 = smul.addr %s2386, 16
        %s2388 = scalar_lea.vmem [#allocation14], %s2387
        %s2389 = sand.u32 %s40, 1
        %s2390 = scalar_lea.sflag [#allocation15], %s2389
        %s2391 = sand.u32 %s428, 1
        %s2392 = smul.addr %s2391, 16
        %s2393 = scalar_lea.vmem [#allocation16], %s2392
        // Predicated region
        $region101: #{tpu_custom_call.1} parent=67 // pred_check
          %p2394 = pneg %p382
        $region102: #{tpu_custom_call.1} parent=67 // pred_check_branch
          %2396 = sbr.rel (%p2394) target = $region104
        $region103: #{tpu_custom_call.1} parent=67 // pred_region
          %s2397 = smul.u32 2, %s44
          %s2399 = ssub.s32 256, 256
          %2400 = vsyncadd [#allocation4], %s2399
          %s2401 = smul.addr %s2397, 128
          %s2402 = scalar_lea.hbm %s12, %s2401
          %s2403 = sshll.u32 [#allocation13], 4
          %s2404 = int_to_ptr.vmem [resolvable:$true] %s2403
          %2409 = dma.vmem_to_hbm [thread:$0]  %s2404, 256, %s2402, [#allocation4], 128, 128, 8
        $region104: #{tpu_custom_call.1} parent=67 // pred_fallthru
          _
        // Predicated region
        $region105: #{tpu_custom_call.1} parent=67 // pred_check
          %p2410 = pneg %p410
        $region106: #{tpu_custom_call.1} parent=67 // pred_check_branch
          %2412 = sbr.rel (%p2410) target = $region108
        $region107: #{tpu_custom_call.1} parent=67 // pred_region
          %s2413 = smul.u32 2, %s45
          %s2414 = smul.u32 2, %s44
          %s2416 = ssub.s32 256, 256
          %2417 = vsyncadd %s2385, %s2416
          %s2418 = smul.addr %s2413, 2
          %s2419 = sadd.s32 %s2414, %s2418
          %s2420 = smul.addr %s2419, 64
          %s2421 = scalar_lea.hbm %s13, %s2420
          %s2422 = sshll.u32 %s2388, 4
          %s2423 = int_to_ptr.vmem [resolvable:$true] %s2422
          %2428 = dma.vmem_to_hbm [thread:$0]  %s2423, 256, %s2421, %s2385, 64, 64, 4
        $region108: #{tpu_custom_call.1} parent=67 // pred_fallthru
          _
        // Predicated region
        $region109: #{tpu_custom_call.1} parent=67 // pred_check
          %p2429 = pneg %p438
        $region110: #{tpu_custom_call.1} parent=67 // pred_check_branch
          %2431 = sbr.rel (%p2429) target = $region112
        $region111: #{tpu_custom_call.1} parent=67 // pred_region
          %s2432 = smul.u32 2, %s45
          %s2433 = smul.u32 2, %s44
          %s2435 = ssub.s32 256, 256
          %2436 = vsyncadd %s2390, %s2435
          %s2437 = smul.addr %s2432, 2
          %s2438 = sadd.s32 %s2433, %s2437
          %s2439 = smul.addr %s2438, 64
          %s2440 = scalar_lea.hbm %s14, %s2439
          %s2441 = sshll.u32 %s2393, 4
          %s2442 = int_to_ptr.vmem [resolvable:$true] %s2441
          %2447 = dma.vmem_to_hbm [thread:$0]  %s2442, 256, %s2440, %s2390, 64, 64, 4
        $region112: #{tpu_custom_call.1} parent=67 // pred_fallthru
          _
        // Predicated region
        $region113: #{tpu_custom_call.1} parent=67 // pred_check
          %p2448 = pneg %p464
        $region114: #{tpu_custom_call.1} parent=67 // pred_check_branch
          %2450 = sbr.rel (%p2448) target = $region116
        $region115: #{tpu_custom_call.1} parent=67 // pred_region
          %s2451 = smul.u32 2, %s44
          %s2453 = ssub.s32 512, 512
          %2454 = vsyncadd [#allocation18], %s2453
          %s2455 = smul.addr %s2451, 128
          %s2456 = scalar_lea.hbm %s15, %s2455
          %s2457 = sshll.u32 [#allocation17], 4
          %s2458 = int_to_ptr.vmem [resolvable:$true] %s2457
          %2463 = dma.vmem_to_hbm [thread:$0]  %s2458, 512, %s2456, [#allocation18], 128, 128, 8
        $region116: #{tpu_custom_call.1} parent=67 // pred_fallthru
          _
        // Predicated region
        $region117: #{tpu_custom_call.1} parent=67 // pred_check
          %p2464 = pneg %p382
        $region118: #{tpu_custom_call.1} parent=67 // pred_check_branch
          %2466 = sbr.rel (%p2464) target = $region120
        $region119: #{tpu_custom_call.1} parent=67 // pred_region
          %2467 = dma.done [#allocation4], 256
        $region120: #{tpu_custom_call.1} parent=67 // pred_fallthru
          _
        // Predicated region
        $region121: #{tpu_custom_call.1} parent=67 // pred_check
          %p2468 = pneg %p464
        $region122: #{tpu_custom_call.1} parent=67 // pred_check_branch
          %2470 = sbr.rel (%p2468) target = $region124
        $region123: #{tpu_custom_call.1} parent=67 // pred_region
          %2471 = dma.done [#allocation18], 512
        $region124: #{tpu_custom_call.1} parent=67 // pred_fallthru
          _
      $region68: #{tpu_custom_call.1} parent=5 // pred_fallthru
        _
      %p2472 = scmp.le.s32.totalorder 2, %s35
      // Predicated region
      $region125: #{tpu_custom_call.1} parent=5 // pred_check
        %p2473 = pneg %p2472
      $region126: #{tpu_custom_call.1} parent=5 // pred_check_branch
        %2475 = sbr.rel (%p2473) target = $region128
      $region127: #{tpu_custom_call.1} parent=5 // pred_region
        %s2476 = ssub.s32 %s35, 2
        // Predicated region
        $region129: #{tpu_custom_call.1} parent=127 // pred_check
          %p2477 = pneg %p416
        $region130: #{tpu_custom_call.1} parent=127 // pred_check_branch
          %2479 = sbr.rel (%p2477) target = $region132
        $region131: #{tpu_custom_call.1} parent=127 // pred_region
          %s2480 = sand.u32 %s41, 1
          %s2481 = scalar_lea.sflag [#allocation15], %s2480
          %s2482 = sand.u32 %s401, 1
          %s2483 = smul.addr %s2482, 16
          %s2484 = scalar_lea.vmem [#allocation14], %s2483
          %2485 = dma.done %s2481, 256
        $region132: #{tpu_custom_call.1} parent=127 // pred_fallthru
          _
        // Predicated region
        $region133: #{tpu_custom_call.1} parent=127 // pred_check
          %p2486 = pneg %p444
        $region134: #{tpu_custom_call.1} parent=127 // pred_check_branch
          %2488 = sbr.rel (%p2486) target = $region136
        $region135: #{tpu_custom_call.1} parent=127 // pred_region
          %s2489 = sand.u32 %s41, 1
          %s2490 = scalar_lea.sflag [#allocation15], %s2489
          %s2491 = sand.u32 %s429, 1
          %s2492 = smul.addr %s2491, 16
          %s2493 = scalar_lea.vmem [#allocation16], %s2492
          %2494 = dma.done %s2490, 256
        $region136: #{tpu_custom_call.1} parent=127 // pred_fallthru
          _
      $region128: #{tpu_custom_call.1} parent=5 // pred_fallthru
        _
    $region6: #{tpu_custom_call.1} parent=1 // loop_footer
      %s39 = sadd.s32 1, %s35
    $region7: #{tpu_custom_call.1} parent=1 // loop_footer_branch
      %34 = sbr.rel target = $region3
    $region8: #{tpu_custom_call.1} parent=1 // loop_exit
      _
    %2495 = vsyncpa [#allocation3], 1
    %s2496 = scalar_lea.sflag [#allocation3], 1
    %2497 = vsyncpa %s2496, 1
    %2498 = vsyncpa [#allocation6], 1
    %2499 = vsyncpa [#allocation9], 1
    %s2500 = scalar_lea.sflag [#allocation9], 1
    %2501 = vsyncpa %s2500, 1
    %2502 = vsyncpa [#allocation12], 1
    %s2503 = scalar_lea.sflag [#allocation12], 1
    %2504 = vsyncpa %s2503, 1
    %2505 = vsyncpa [#allocation4], 1
    %s2506 = scalar_lea.sflag [#allocation4], 1
    %2507 = vsyncpa %s2506, 1
    %2508 = vsyncpa [#allocation15], 1
    %s2509 = scalar_lea.sflag [#allocation15], 1
    %2510 = vsyncpa %s2509, 1
    %2511 = vsyncpa [#allocation18], 1

</llo_original>
